<compile_context>
chip_gen: v5e
topology: v5e:2x2
jax: 0.10.0
libtpu: 0.0.40
codegen_flags: <defaults>
</compile_context>

<pallas_src>
import jax
import jax.numpy as jnp
from jax.experimental import pallas as pl
from jax.experimental.pallas import tpu as pltpu

# ------------------------------- configuration --------------------------------
N = 2                      # batch (small stand-in)
CIN, H, W = 3, 16, 16      # 16x16 stand-in for 256x256 images
KH = KW = 5
PAD = 2
KK = KH * KW               # 25 taps
COUT = 32
HP, WP = H // 2, W // 2
P = HP * WP                # pooled positions per image (64)

K_PAD = 128                # im2col K (75) lane-padded to 128
LANE = 4                   # pooled positions packed per conv-matmul row
A_COLS = LANE * K_PAD      # 512  (quadrant-packed patch width)
CONV_N = LANE * COUT       # 128  (lane-dense conv-matmul output width)

FLAT = P * COUT            # 2048 flattened features
TK = 512                   # w1 K-tile
KT = FLAT // TK            # 4 streamed w1 tiles

H1, H1_PAD = 500, 512      # Linear(flat, 500), lane-padded to 512
H2 = 512                   # stand-in for hidden 4096
N_CLASSES, C_PAD = 10, 128 # logits lane-padded to 128 (sliced in the wrapper)


# --------------------------------- the kernel ---------------------------------
def net_kernel(patches_ref, wblk_ref, cb_ref,
               w1_ref, b1_ref, w2_ref, b2_ref, w3_ref, b3_ref, w4_ref, b4_ref,
               o_ref, flat_sc, acc_sc):
    k = pl.program_id(0)
    nk = pl.num_programs(0)
    n_img = o_ref.shape[0]
    conv_n = cb_ref.shape[-1]            # 128 (4 quadrant-packed x 32 channels)
    tk = w1_ref.shape[0]                 # 512 (streamed w1 K-tile)
    rpt = tk // conv_n                   # pooled-row groups per K tile (4)

    @pl.when(k == 0)
    def _conv_pool():
        # One MXU pass for the whole batch: quadrants packed along lanes via a
        # block-diagonal weight -> output already 128 lanes wide.
        z = jnp.dot(patches_ref[...], wblk_ref[...],
                    preferred_element_type=jnp.float32)          # (N*64, 128)
        rows_per_img = z.shape[0] // n_img                        # 64
        q = rows_per_img // 4                                     # 16
        for n in range(n_img):
            zi = z[n * rows_per_img:(n + 1) * rows_per_img]
            # 2x2 max-pool == max over the 4 quadrant row groups (sublane-aligned).
            y = jnp.maximum(jnp.maximum(zi[0:q], zi[q:2 * q]),
                            jnp.maximum(zi[2 * q:3 * q], zi[3 * q:4 * q]))
            # max-then-(bias, ReLU) == maxpool(ReLU(conv + bias)).
            y = jnp.maximum(y + cb_ref[...], 0.0).astype(flat_sc.dtype)   # (16, 128)
            # Scatter rows into per-K-tile, lane-dense flat-activation slabs
            # (all-static indices; flat order == (pooled_pos, channel)).
            for r in range(q):
                off = conv_n * (r % rpt)
                flat_sc[r // rpt, n:n + 1, off:off + conv_n] = y[r:r + 1, :]
        acc_sc[...] = jnp.zeros(acc_sc.shape, acc_sc.dtype)

    # Layer-1 partial product for the w1 K-tile streamed by the pipeline.
    acc_sc[...] += jnp.dot(flat_sc[k], w1_ref[...],
                           preferred_element_type=jnp.float32)    # (N, 512)

    @pl.when(k == nk - 1)
    def _mlp_tail():
        h = jnp.maximum(acc_sc[...] + b1_ref[...], 0.0).astype(jnp.bfloat16)
        # TODO(synk): nn.Dropout is identity here (eval mode); train-mode RNG
        # masking is not replicated.
        h = jnp.maximum(jnp.dot(h, w2_ref[...], preferred_element_type=jnp.float32)
                        + b2_ref[...], 0.0).astype(jnp.bfloat16)
        h = jnp.maximum(jnp.dot(h, w3_ref[...], preferred_element_type=jnp.float32)
                        + b3_ref[...], 0.0).astype(jnp.bfloat16)
        o_ref[...] = (jnp.dot(h, w4_ref[...], preferred_element_type=jnp.float32)
                      + b4_ref[...]).astype(o_ref.dtype)


# --------------------------- pallas_call wrapper -------------------------------
def net_forward(x_nchw, params, *, n_classes=N_CLASSES):
    patches = build_patches(x_nchw)                  # (N*64, 512) bf16
    n = x_nchw.shape[0]
    m_rows = patches.shape[0]

    def const2(shape):
        return pl.BlockSpec(shape, lambda k: (0, 0))

    grid_spec = pltpu.PrefetchScalarGridSpec(
        num_scalar_prefetch=0,
        grid=(KT,),
        in_specs=[
            const2((m_rows, A_COLS)),                     # patches (whole batch)
            const2((A_COLS, CONV_N)),                     # block-diag conv weight
            const2((1, CONV_N)),                          # tiled conv bias
            pl.BlockSpec((TK, H1_PAD), lambda k: (k, 0)),  # w1 K-tile stream
            const2((1, H1_PAD)),                          # b1
            const2((H1_PAD, H2)), const2((1, H2)),        # w2, b2
            const2((H2, H2)), const2((1, H2)),            # w3, b3
            const2((H2, C_PAD)), const2((1, C_PAD)),      # w4, b4
        ],
        out_specs=pl.BlockSpec((n, C_PAD), lambda k: (0, 0)),
        scratch_shapes=[
            pltpu.VMEM((KT, n, TK), jnp.bfloat16),        # flat activation (per K-tile)
            pltpu.VMEM((n, H1_PAD), jnp.float32),         # layer-1 accumulator
        ],
    )
    out = pl.pallas_call(
        net_kernel,
        out_shape=jax.ShapeDtypeStruct((n, C_PAD), jnp.float32),
        grid_spec=grid_spec,
        compiler_params=pltpu.CompilerParams(
            dimension_semantics=("arbitrary",)),
    )(patches, params["wblk"], params["cb"],
      params["w1"], params["b1"], params["w2"], params["b2"],
      params["w3"], params["b3"], params["w4"], params["b4"])
    return out[:, :n_classes]                             # drop lane padding


# ------------------------------ glue (plain JAX) -------------------------------
def build_patches(x_nchw):
    """NCHW -> quadrant-packed im2col patches (N*P/LANE*4, LANE*K_PAD), bf16."""
    n = x_nchw.shape[0]
    x = jnp.transpose(x_nchw, (0, 2, 3, 1))                          # NHWC
    xp = jnp.pad(x, ((0, 0), (PAD, PAD), (PAD, PAD), (0, 0)))
    cols = [xp[:, a:a + H, b:b + W, :] for a in range(KH) for b in range(KW)]
    pt = jnp.stack(cols, axis=3).reshape(n, H, W, KK * CIN)          # k = (kh,kw,cin)
    pt = jnp.pad(pt, ((0, 0), (0, 0), (0, 0), (0, K_PAD - KK * CIN)))
    pt = pt.reshape(n, HP, 2, WP, 2, K_PAD)
    pt = jnp.transpose(pt, (0, 2, 4, 1, 3, 5))                       # (N, dy, dx, HP, WP, Kp)
    pt = pt.reshape(n, 4, P, K_PAD)                                   # q = 2*dy+dx, p = pi*WP+pj
    pt = pt.reshape(n, 4, P // LANE, A_COLS)                          # 4 pooled pos per row
    pt = pt.reshape(n * 4 * (P // LANE), A_COLS)                      # row = img*64 + q*16 + r
    return pt.astype(jnp.bfloat16)


def make_params(key):
    def uniform(k, shape, fan_in):
        bound = 1.0 / jnp.sqrt(jnp.float32(fan_in))
        return jax.random.uniform(k, shape, jnp.float32, -bound, bound)

    ks = jax.random.split(key, 10)
    fan_conv = KK * CIN

    conv_w = uniform(ks[0], (KK * CIN, COUT), fan_conv)      # rows in (kh,kw,cin) order
    conv_b = uniform(ks[1], (1, COUT), fan_conv)

    # Block-diagonal conv weight: 4 quadrant lane-groups of K_PAD rows each.
    wblk = jnp.zeros((A_COLS, CONV_N), jnp.float32)
    for j in range(LANE):
        wblk = wblk.at[K_PAD * j:K_PAD * j + KK * CIN,
                       COUT * j:COUT * (j + 1)].set(conv_w)
    cb = jnp.tile(conv_b, (1, LANE))                          # (1, 128)

    # torch flatten order is (channel, pooled_pos); kernel flat order is
    # (pooled_pos, channel) -> bake the permutation into w1's rows once.
    w1_torch = uniform(ks[2], (FLAT, H1), FLAT)
    w1 = jnp.transpose(w1_torch.reshape(COUT, P, H1), (1, 0, 2)).reshape(FLAT, H1)
    w1 = jnp.pad(w1, ((0, 0), (0, H1_PAD - H1)))              # lane-pad 500 -> 512
    b1 = jnp.pad(uniform(ks[3], (1, H1), FLAT), ((0, 0), (0, H1_PAD - H1)))

    w2 = jnp.pad(uniform(ks[4], (H1, H2), H1), ((0, H1_PAD - H1), (0, 0)))
    b2 = uniform(ks[5], (1, H2), H1)
    w3 = uniform(ks[6], (H2, H2), H2)
    b3 = uniform(ks[7], (1, H2), H2)
    w4 = jnp.pad(uniform(ks[8], (H2, N_CLASSES), H2),
                 ((0, 0), (0, C_PAD - N_CLASSES)))            # lane-pad 10 -> 128
    b4 = jnp.pad(uniform(ks[9], (1, N_CLASSES), H2),
                 ((0, 0), (0, C_PAD - N_CLASSES)))

    bf = lambda a: a.astype(jnp.bfloat16)
    return {
        "wblk": bf(wblk), "cb": cb,
        "w1": bf(w1), "b1": b1,
        "w2": bf(w2), "b2": b2,
        "w3": bf(w3), "b3": b3,
        "w4": bf(w4), "b4": b4,
    }


# ------------------------------------ main -------------------------------------
if __name__ == "__main__":
    key = jax.random.PRNGKey(0)
    kx, kp = jax.random.split(key)
    x = jax.random.normal(kx, (N, CIN, H, W), jnp.float32)
    params = make_params(kp)

    fwd = jax.jit(net_forward)
    out = jax.block_until_ready(fwd(x, params))
    assert out.shape == (N, N_CLASSES), out.shape
    assert out.dtype == jnp.float32
    print("KERNEL_OK")
</pallas_src>

<mosaic_0001>
module attributes {stable_mosaic.version = 11 : i64} {
  func.func @net_kernel(%arg0: i32, %arg1: memref<128x512xbf16, #tpu.memory_space<vmem>>, %arg2: memref<512x128xbf16, #tpu.memory_space<vmem>>, %arg3: memref<1x128xf32, #tpu.memory_space<vmem>>, %arg4: memref<512x512xbf16, #tpu.memory_space<vmem>>, %arg5: memref<1x512xf32, #tpu.memory_space<vmem>>, %arg6: memref<512x512xbf16, #tpu.memory_space<vmem>>, %arg7: memref<1x512xf32, #tpu.memory_space<vmem>>, %arg8: memref<512x512xbf16, #tpu.memory_space<vmem>>, %arg9: memref<1x512xf32, #tpu.memory_space<vmem>>, %arg10: memref<512x128xbf16, #tpu.memory_space<vmem>>, %arg11: memref<1x128xf32, #tpu.memory_space<vmem>>, %arg12: memref<2x128xf32, #tpu.memory_space<vmem>>, %arg13: memref<4x2x512xbf16, #tpu.memory_space<vmem>>, %arg14: memref<2x512xf32, #tpu.memory_space<vmem>>) attributes {dimension_semantics = [#tpu.dimension_semantics<arbitrary>], iteration_bounds = array<i64: 4>, scalar_prefetch = 0 : i64, scratch_operands = 2 : i64, tpu.core_type = #tpu.core_type<tc>, window_params = [{pipeline_mode = #tpu.pipeline_mode<synchronous>, transform_indices = @transform_0, window_bounds = array<i64: 128, 512>}, {pipeline_mode = #tpu.pipeline_mode<synchronous>, transform_indices = @transform_1, window_bounds = array<i64: 512, 128>}, {pipeline_mode = #tpu.pipeline_mode<synchronous>, transform_indices = @transform_2, window_bounds = array<i64: 1, 128>}, {transform_indices = @transform_3, window_bounds = array<i64: 512, 512>}, {pipeline_mode = #tpu.pipeline_mode<synchronous>, transform_indices = @transform_4, window_bounds = array<i64: 1, 512>}, {pipeline_mode = #tpu.pipeline_mode<synchronous>, transform_indices = @transform_5, window_bounds = array<i64: 512, 512>}, {pipeline_mode = #tpu.pipeline_mode<synchronous>, transform_indices = @transform_6, window_bounds = array<i64: 1, 512>}, {pipeline_mode = #tpu.pipeline_mode<synchronous>, transform_indices = @transform_7, window_bounds = array<i64: 512, 512>}, {pipeline_mode = #tpu.pipeline_mode<synchronous>, transform_indices = @transform_8, window_bounds = array<i64: 1, 512>}, {pipeline_mode = #tpu.pipeline_mode<synchronous>, transform_indices = @transform_9, window_bounds = array<i64: 512, 128>}, {pipeline_mode = #tpu.pipeline_mode<synchronous>, transform_indices = @transform_10, window_bounds = array<i64: 1, 128>}, {pipeline_mode = #tpu.pipeline_mode<synchronous>, transform_indices = @transform_11, window_bounds = array<i64: 2, 128>}]} {
    %c0_i32 = arith.constant 0 : i32
    %0 = arith.cmpi eq, %arg0, %c0_i32 : i32
    %1 = arith.extui %0 : i1 to i32
    %c0_i32_0 = arith.constant 0 : i32
    %2 = arith.cmpi ne, %1, %c0_i32_0 : i32
    scf.if %2 {
      %c0_9 = arith.constant 0 : index
      %c0_10 = arith.constant 0 : index
      %14 = vector.load %arg1[%c0_9, %c0_10] : memref<128x512xbf16, #tpu.memory_space<vmem>>, vector<128x512xbf16>
      %c0_11 = arith.constant 0 : index
      %c0_12 = arith.constant 0 : index
      %15 = vector.load %arg2[%c0_11, %c0_12] : memref<512x128xbf16, #tpu.memory_space<vmem>>, vector<512x128xbf16>
      %cst_13 = arith.constant dense<0.000000e+00> : vector<128x128xf32>
      %16 = tpu.matmul %14, %15, %cst_13 {dimension_numbers = #tpu.dot_dimension_numbers<[1], [0], [0], [1], [0, 0, 1, 1], [], []>} : vector<128x512xbf16>, vector<512x128xbf16>, vector<128x128xf32> -> vector<128x128xf32>
      %17 = vector.extract_strided_slice %16 {offsets = [0, 0], sizes = [64, 128], strides = [1, 1]} : vector<128x128xf32> to vector<64x128xf32>
      %18 = vector.extract_strided_slice %17 {offsets = [0, 0], sizes = [16, 128], strides = [1, 1]} : vector<64x128xf32> to vector<16x128xf32>
      %19 = vector.extract_strided_slice %17 {offsets = [16, 0], sizes = [16, 128], strides = [1, 1]} : vector<64x128xf32> to vector<16x128xf32>
      %20 = arith.maximumf %18, %19 : vector<16x128xf32>
      %21 = vector.extract_strided_slice %17 {offsets = [32, 0], sizes = [16, 128], strides = [1, 1]} : vector<64x128xf32> to vector<16x128xf32>
      %22 = vector.extract_strided_slice %17 {offsets = [48, 0], sizes = [16, 128], strides = [1, 1]} : vector<64x128xf32> to vector<16x128xf32>
      %23 = arith.maximumf %21, %22 : vector<16x128xf32>
      %24 = arith.maximumf %20, %23 : vector<16x128xf32>
      %c0_14 = arith.constant 0 : index
      %c0_15 = arith.constant 0 : index
      %25 = vector.load %arg3[%c0_14, %c0_15] : memref<1x128xf32, #tpu.memory_space<vmem>>, vector<1x128xf32>
      %26 = vector.broadcast %25 : vector<1x128xf32> to vector<16x128xf32>
      %27 = arith.addf %24, %26 : vector<16x128xf32>
      %cst_16 = arith.constant 0.000000e+00 : f32
      %28 = vector.broadcast %cst_16 : f32 to vector<16x128xf32>
      %29 = arith.maximumf %27, %28 : vector<16x128xf32>
      %30 = arith.truncf %29 : vector<16x128xf32> to vector<16x128xbf16>
      %31 = vector.extract_strided_slice %30 {offsets = [0, 0], sizes = [1, 128], strides = [1, 1]} : vector<16x128xbf16> to vector<1x128xbf16>
      %c0_17 = arith.constant 0 : index
      %c0_18 = arith.constant 0 : index
      %c0_19 = arith.constant 0 : index
      %32 = vector.load %arg13[%c0_17, %c0_18, %c0_19] : memref<4x2x512xbf16, #tpu.memory_space<vmem>>, vector<1x1x128xbf16>
      %33 = vector.shape_cast %32 : vector<1x1x128xbf16> to vector<1x128xbf16>
      %34 = vector.shape_cast %31 : vector<1x128xbf16> to vector<1x1x128xbf16>
      tpu.vector_store %arg13[%c0_17, %c0_18, %c0_19], %34 {strides = array<i32>} : memref<4x2x512xbf16, #tpu.memory_space<vmem>>, vector<1x1x128xbf16>,
      %35 = vector.extract_strided_slice %30 {offsets = [1, 0], sizes = [1, 128], strides = [1, 1]} : vector<16x128xbf16> to vector<1x128xbf16>
      %c0_20 = arith.constant 0 : index
      %c0_21 = arith.constant 0 : index
      %c128 = arith.constant 128 : index
      %36 = vector.load %arg13[%c0_20, %c0_21, %c128] : memref<4x2x512xbf16, #tpu.memory_space<vmem>>, vector<1x1x128xbf16>
      %37 = vector.shape_cast %36 : vector<1x1x128xbf16> to vector<1x128xbf16>
      %38 = vector.shape_cast %35 : vector<1x128xbf16> to vector<1x1x128xbf16>
      tpu.vector_store %arg13[%c0_20, %c0_21, %c128], %38 {strides = array<i32>} : memref<4x2x512xbf16, #tpu.memory_space<vmem>>, vector<1x1x128xbf16>,
      %39 = vector.extract_strided_slice %30 {offsets = [2, 0], sizes = [1, 128], strides = [1, 1]} : vector<16x128xbf16> to vector<1x128xbf16>
      %c0_22 = arith.constant 0 : index
      %c0_23 = arith.constant 0 : index
      %c256 = arith.constant 256 : index
      %40 = vector.load %arg13[%c0_22, %c0_23, %c256] : memref<4x2x512xbf16, #tpu.memory_space<vmem>>, vector<1x1x128xbf16>
      %41 = vector.shape_cast %40 : vector<1x1x128xbf16> to vector<1x128xbf16>
      %42 = vector.shape_cast %39 : vector<1x128xbf16> to vector<1x1x128xbf16>
      tpu.vector_store %arg13[%c0_22, %c0_23, %c256], %42 {strides = array<i32>} : memref<4x2x512xbf16, #tpu.memory_space<vmem>>, vector<1x1x128xbf16>,
      %43 = vector.extract_strided_slice %30 {offsets = [3, 0], sizes = [1, 128], strides = [1, 1]} : vector<16x128xbf16> to vector<1x128xbf16>
      %c0_24 = arith.constant 0 : index
      %c0_25 = arith.constant 0 : index
      %c384 = arith.constant 384 : index
      %44 = vector.load %arg13[%c0_24, %c0_25, %c384] : memref<4x2x512xbf16, #tpu.memory_space<vmem>>, vector<1x1x128xbf16>
      %45 = vector.shape_cast %44 : vector<1x1x128xbf16> to vector<1x128xbf16>
      %46 = vector.shape_cast %43 : vector<1x128xbf16> to vector<1x1x128xbf16>
      tpu.vector_store %arg13[%c0_24, %c0_25, %c384], %46 {strides = array<i32>} : memref<4x2x512xbf16, #tpu.memory_space<vmem>>, vector<1x1x128xbf16>,
      %47 = vector.extract_strided_slice %30 {offsets = [4, 0], sizes = [1, 128], strides = [1, 1]} : vector<16x128xbf16> to vector<1x128xbf16>
      %c1 = arith.constant 1 : index
      %c0_26 = arith.constant 0 : index
      %c0_27 = arith.constant 0 : index
      %48 = vector.load %arg13[%c1, %c0_26, %c0_27] : memref<4x2x512xbf16, #tpu.memory_space<vmem>>, vector<1x1x128xbf16>
      %49 = vector.shape_cast %48 : vector<1x1x128xbf16> to vector<1x128xbf16>
      %50 = vector.shape_cast %47 : vector<1x128xbf16> to vector<1x1x128xbf16>
      tpu.vector_store %arg13[%c1, %c0_26, %c0_27], %50 {strides = array<i32>} : memref<4x2x512xbf16, #tpu.memory_space<vmem>>, vector<1x1x128xbf16>,
      %51 = vector.extract_strided_slice %30 {offsets = [5, 0], sizes = [1, 128], strides = [1, 1]} : vector<16x128xbf16> to vector<1x128xbf16>
      %c1_28 = arith.constant 1 : index
      %c0_29 = arith.constant 0 : index
      %c128_30 = arith.constant 128 : index
      %52 = vector.load %arg13[%c1_28, %c0_29, %c128_30] : memref<4x2x512xbf16, #tpu.memory_space<vmem>>, vector<1x1x128xbf16>
      %53 = vector.shape_cast %52 : vector<1x1x128xbf16> to vector<1x128xbf16>
      %54 = vector.shape_cast %51 : vector<1x128xbf16> to vector<1x1x128xbf16>
      tpu.vector_store %arg13[%c1_28, %c0_29, %c128_30], %54 {strides = array<i32>} : memref<4x2x512xbf16, #tpu.memory_space<vmem>>, vector<1x1x128xbf16>,
      %55 = vector.extract_strided_slice %30 {offsets = [6, 0], sizes = [1, 128], strides = [1, 1]} : vector<16x128xbf16> to vector<1x128xbf16>
      %c1_31 = arith.constant 1 : index
      %c0_32 = arith.constant 0 : index
      %c256_33 = arith.constant 256 : index
      %56 = vector.load %arg13[%c1_31, %c0_32, %c256_33] : memref<4x2x512xbf16, #tpu.memory_space<vmem>>, vector<1x1x128xbf16>
      %57 = vector.shape_cast %56 : vector<1x1x128xbf16> to vector<1x128xbf16>
      %58 = vector.shape_cast %55 : vector<1x128xbf16> to vector<1x1x128xbf16>
      tpu.vector_store %arg13[%c1_31, %c0_32, %c256_33], %58 {strides = array<i32>} : memref<4x2x512xbf16, #tpu.memory_space<vmem>>, vector<1x1x128xbf16>,
      %59 = vector.extract_strided_slice %30 {offsets = [7, 0], sizes = [1, 128], strides = [1, 1]} : vector<16x128xbf16> to vector<1x128xbf16>
      %c1_34 = arith.constant 1 : index
      %c0_35 = arith.constant 0 : index
      %c384_36 = arith.constant 384 : index
      %60 = vector.load %arg13[%c1_34, %c0_35, %c384_36] : memref<4x2x512xbf16, #tpu.memory_space<vmem>>, vector<1x1x128xbf16>
      %61 = vector.shape_cast %60 : vector<1x1x128xbf16> to vector<1x128xbf16>
      %62 = vector.shape_cast %59 : vector<1x128xbf16> to vector<1x1x128xbf16>
      tpu.vector_store %arg13[%c1_34, %c0_35, %c384_36], %62 {strides = array<i32>} : memref<4x2x512xbf16, #tpu.memory_space<vmem>>, vector<1x1x128xbf16>,
      %63 = vector.extract_strided_slice %30 {offsets = [8, 0], sizes = [1, 128], strides = [1, 1]} : vector<16x128xbf16> to vector<1x128xbf16>
      %c2 = arith.constant 2 : index
      %c0_37 = arith.constant 0 : index
      %c0_38 = arith.constant 0 : index
      %64 = vector.load %arg13[%c2, %c0_37, %c0_38] : memref<4x2x512xbf16, #tpu.memory_space<vmem>>, vector<1x1x128xbf16>
      %65 = vector.shape_cast %64 : vector<1x1x128xbf16> to vector<1x128xbf16>
      %66 = vector.shape_cast %63 : vector<1x128xbf16> to vector<1x1x128xbf16>
      tpu.vector_store %arg13[%c2, %c0_37, %c0_38], %66 {strides = array<i32>} : memref<4x2x512xbf16, #tpu.memory_space<vmem>>, vector<1x1x128xbf16>,
      %67 = vector.extract_strided_slice %30 {offsets = [9, 0], sizes = [1, 128], strides = [1, 1]} : vector<16x128xbf16> to vector<1x128xbf16>
      %c2_39 = arith.constant 2 : index
      %c0_40 = arith.constant 0 : index
      %c128_41 = arith.constant 128 : index
      %68 = vector.load %arg13[%c2_39, %c0_40, %c128_41] : memref<4x2x512xbf16, #tpu.memory_space<vmem>>, vector<1x1x128xbf16>
      %69 = vector.shape_cast %68 : vector<1x1x128xbf16> to vector<1x128xbf16>
      %70 = vector.shape_cast %67 : vector<1x128xbf16> to vector<1x1x128xbf16>
      tpu.vector_store %arg13[%c2_39, %c0_40, %c128_41], %70 {strides = array<i32>} : memref<4x2x512xbf16, #tpu.memory_space<vmem>>, vector<1x1x128xbf16>,
      %71 = vector.extract_strided_slice %30 {offsets = [10, 0], sizes = [1, 128], strides = [1, 1]} : vector<16x128xbf16> to vector<1x128xbf16>
      %c2_42 = arith.constant 2 : index
      %c0_43 = arith.constant 0 : index
      %c256_44 = arith.constant 256 : index
      %72 = vector.load %arg13[%c2_42, %c0_43, %c256_44] : memref<4x2x512xbf16, #tpu.memory_space<vmem>>, vector<1x1x128xbf16>
      %73 = vector.shape_cast %72 : vector<1x1x128xbf16> to vector<1x128xbf16>
      %74 = vector.shape_cast %71 : vector<1x128xbf16> to vector<1x1x128xbf16>
      tpu.vector_store %arg13[%c2_42, %c0_43, %c256_44], %74 {strides = array<i32>} : memref<4x2x512xbf16, #tpu.memory_space<vmem>>, vector<1x1x128xbf16>,
      %75 = vector.extract_strided_slice %30 {offsets = [11, 0], sizes = [1, 128], strides = [1, 1]} : vector<16x128xbf16> to vector<1x128xbf16>
      %c2_45 = arith.constant 2 : index
      %c0_46 = arith.constant 0 : index
      %c384_47 = arith.constant 384 : index
      %76 = vector.load %arg13[%c2_45, %c0_46, %c384_47] : memref<4x2x512xbf16, #tpu.memory_space<vmem>>, vector<1x1x128xbf16>
      %77 = vector.shape_cast %76 : vector<1x1x128xbf16> to vector<1x128xbf16>
      %78 = vector.shape_cast %75 : vector<1x128xbf16> to vector<1x1x128xbf16>
      tpu.vector_store %arg13[%c2_45, %c0_46, %c384_47], %78 {strides = array<i32>} : memref<4x2x512xbf16, #tpu.memory_space<vmem>>, vector<1x1x128xbf16>,
      %79 = vector.extract_strided_slice %30 {offsets = [12, 0], sizes = [1, 128], strides = [1, 1]} : vector<16x128xbf16> to vector<1x128xbf16>
      %c3 = arith.constant 3 : index
      %c0_48 = arith.constant 0 : index
      %c0_49 = arith.constant 0 : index
      %80 = vector.load %arg13[%c3, %c0_48, %c0_49] : memref<4x2x512xbf16, #tpu.memory_space<vmem>>, vector<1x1x128xbf16>
      %81 = vector.shape_cast %80 : vector<1x1x128xbf16> to vector<1x128xbf16>
      %82 = vector.shape_cast %79 : vector<1x128xbf16> to vector<1x1x128xbf16>
      tpu.vector_store %arg13[%c3, %c0_48, %c0_49], %82 {strides = array<i32>} : memref<4x2x512xbf16, #tpu.memory_space<vmem>>, vector<1x1x128xbf16>,
      %83 = vector.extract_strided_slice %30 {offsets = [13, 0], sizes = [1, 128], strides = [1, 1]} : vector<16x128xbf16> to vector<1x128xbf16>
      %c3_50 = arith.constant 3 : index
      %c0_51 = arith.constant 0 : index
      %c128_52 = arith.constant 128 : index
      %84 = vector.load %arg13[%c3_50, %c0_51, %c128_52] : memref<4x2x512xbf16, #tpu.memory_space<vmem>>, vector<1x1x128xbf16>
      %85 = vector.shape_cast %84 : vector<1x1x128xbf16> to vector<1x128xbf16>
      %86 = vector.shape_cast %83 : vector<1x128xbf16> to vector<1x1x128xbf16>
      tpu.vector_store %arg13[%c3_50, %c0_51, %c128_52], %86 {strides = array<i32>} : memref<4x2x512xbf16, #tpu.memory_space<vmem>>, vector<1x1x128xbf16>,
      %87 = vector.extract_strided_slice %30 {offsets = [14, 0], sizes = [1, 128], strides = [1, 1]} : vector<16x128xbf16> to vector<1x128xbf16>
      %c3_53 = arith.constant 3 : index
      %c0_54 = arith.constant 0 : index
      %c256_55 = arith.constant 256 : index
      %88 = vector.load %arg13[%c3_53, %c0_54, %c256_55] : memref<4x2x512xbf16, #tpu.memory_space<vmem>>, vector<1x1x128xbf16>
      %89 = vector.shape_cast %88 : vector<1x1x128xbf16> to vector<1x128xbf16>
      %90 = vector.shape_cast %87 : vector<1x128xbf16> to vector<1x1x128xbf16>
      tpu.vector_store %arg13[%c3_53, %c0_54, %c256_55], %90 {strides = array<i32>} : memref<4x2x512xbf16, #tpu.memory_space<vmem>>, vector<1x1x128xbf16>,
      %91 = vector.extract_strided_slice %30 {offsets = [15, 0], sizes = [1, 128], strides = [1, 1]} : vector<16x128xbf16> to vector<1x128xbf16>
      %c3_56 = arith.constant 3 : index
      %c0_57 = arith.constant 0 : index
      %c384_58 = arith.constant 384 : index
      %92 = vector.load %arg13[%c3_56, %c0_57, %c384_58] : memref<4x2x512xbf16, #tpu.memory_space<vmem>>, vector<1x1x128xbf16>
      %93 = vector.shape_cast %92 : vector<1x1x128xbf16> to vector<1x128xbf16>
      %94 = vector.shape_cast %91 : vector<1x128xbf16> to vector<1x1x128xbf16>
      tpu.vector_store %arg13[%c3_56, %c0_57, %c384_58], %94 {strides = array<i32>} : memref<4x2x512xbf16, #tpu.memory_space<vmem>>, vector<1x1x128xbf16>,
      %95 = vector.extract_strided_slice %16 {offsets = [64, 0], sizes = [64, 128], strides = [1, 1]} : vector<128x128xf32> to vector<64x128xf32>
      %96 = vector.extract_strided_slice %95 {offsets = [0, 0], sizes = [16, 128], strides = [1, 1]} : vector<64x128xf32> to vector<16x128xf32>
      %97 = vector.extract_strided_slice %95 {offsets = [16, 0], sizes = [16, 128], strides = [1, 1]} : vector<64x128xf32> to vector<16x128xf32>
      %98 = arith.maximumf %96, %97 : vector<16x128xf32>
      %99 = vector.extract_strided_slice %95 {offsets = [32, 0], sizes = [16, 128], strides = [1, 1]} : vector<64x128xf32> to vector<16x128xf32>
      %100 = vector.extract_strided_slice %95 {offsets = [48, 0], sizes = [16, 128], strides = [1, 1]} : vector<64x128xf32> to vector<16x128xf32>
      %101 = arith.maximumf %99, %100 : vector<16x128xf32>
      %102 = arith.maximumf %98, %101 : vector<16x128xf32>
      %c0_59 = arith.constant 0 : index
      %c0_60 = arith.constant 0 : index
      %103 = vector.load %arg3[%c0_59, %c0_60] : memref<1x128xf32, #tpu.memory_space<vmem>>, vector<1x128xf32>
      %104 = vector.broadcast %103 : vector<1x128xf32> to vector<16x128xf32>
      %105 = arith.addf %102, %104 : vector<16x128xf32>
      %cst_61 = arith.constant 0.000000e+00 : f32
      %106 = vector.broadcast %cst_61 : f32 to vector<16x128xf32>
      %107 = arith.maximumf %105, %106 : vector<16x128xf32>
      %108 = arith.truncf %107 : vector<16x128xf32> to vector<16x128xbf16>
      %109 = vector.extract_strided_slice %108 {offsets = [0, 0], sizes = [1, 128], strides = [1, 1]} : vector<16x128xbf16> to vector<1x128xbf16>
      %c0_62 = arith.constant 0 : index
      %c1_63 = arith.constant 1 : index
      %c0_64 = arith.constant 0 : index
      %110 = vector.load %arg13[%c0_62, %c1_63, %c0_64] : memref<4x2x512xbf16, #tpu.memory_space<vmem>>, vector<1x1x128xbf16>
      %111 = vector.shape_cast %110 : vector<1x1x128xbf16> to vector<1x128xbf16>
      %112 = vector.shape_cast %109 : vector<1x128xbf16> to vector<1x1x128xbf16>
      tpu.vector_store %arg13[%c0_62, %c1_63, %c0_64], %112 {strides = array<i32>} : memref<4x2x512xbf16, #tpu.memory_space<vmem>>, vector<1x1x128xbf16>,
      %113 = vector.extract_strided_slice %108 {offsets = [1, 0], sizes = [1, 128], strides = [1, 1]} : vector<16x128xbf16> to vector<1x128xbf16>
      %c0_65 = arith.constant 0 : index
      %c1_66 = arith.constant 1 : index
      %c128_67 = arith.constant 128 : index
      %114 = vector.load %arg13[%c0_65, %c1_66, %c128_67] : memref<4x2x512xbf16, #tpu.memory_space<vmem>>, vector<1x1x128xbf16>
      %115 = vector.shape_cast %114 : vector<1x1x128xbf16> to vector<1x128xbf16>
      %116 = vector.shape_cast %113 : vector<1x128xbf16> to vector<1x1x128xbf16>
      tpu.vector_store %arg13[%c0_65, %c1_66, %c128_67], %116 {strides = array<i32>} : memref<4x2x512xbf16, #tpu.memory_space<vmem>>, vector<1x1x128xbf16>,
      %117 = vector.extract_strided_slice %108 {offsets = [2, 0], sizes = [1, 128], strides = [1, 1]} : vector<16x128xbf16> to vector<1x128xbf16>
      %c0_68 = arith.constant 0 : index
      %c1_69 = arith.constant 1 : index
      %c256_70 = arith.constant 256 : index
      %118 = vector.load %arg13[%c0_68, %c1_69, %c256_70] : memref<4x2x512xbf16, #tpu.memory_space<vmem>>, vector<1x1x128xbf16>
      %119 = vector.shape_cast %118 : vector<1x1x128xbf16> to vector<1x128xbf16>
      %120 = vector.shape_cast %117 : vector<1x128xbf16> to vector<1x1x128xbf16>
      tpu.vector_store %arg13[%c0_68, %c1_69, %c256_70], %120 {strides = array<i32>} : memref<4x2x512xbf16, #tpu.memory_space<vmem>>, vector<1x1x128xbf16>,
      %121 = vector.extract_strided_slice %108 {offsets = [3, 0], sizes = [1, 128], strides = [1, 1]} : vector<16x128xbf16> to vector<1x128xbf16>
      %c0_71 = arith.constant 0 : index
      %c1_72 = arith.constant 1 : index
      %c384_73 = arith.constant 384 : index
      %122 = vector.load %arg13[%c0_71, %c1_72, %c384_73] : memref<4x2x512xbf16, #tpu.memory_space<vmem>>, vector<1x1x128xbf16>
      %123 = vector.shape_cast %122 : vector<1x1x128xbf16> to vector<1x128xbf16>
      %124 = vector.shape_cast %121 : vector<1x128xbf16> to vector<1x1x128xbf16>
      tpu.vector_store %arg13[%c0_71, %c1_72, %c384_73], %124 {strides = array<i32>} : memref<4x2x512xbf16, #tpu.memory_space<vmem>>, vector<1x1x128xbf16>,
      %125 = vector.extract_strided_slice %108 {offsets = [4, 0], sizes = [1, 128], strides = [1, 1]} : vector<16x128xbf16> to vector<1x128xbf16>
      %c1_74 = arith.constant 1 : index
      %c1_75 = arith.constant 1 : index
      %c0_76 = arith.constant 0 : index
      %126 = vector.load %arg13[%c1_74, %c1_75, %c0_76] : memref<4x2x512xbf16, #tpu.memory_space<vmem>>, vector<1x1x128xbf16>
      %127 = vector.shape_cast %126 : vector<1x1x128xbf16> to vector<1x128xbf16>
      %128 = vector.shape_cast %125 : vector<1x128xbf16> to vector<1x1x128xbf16>
      tpu.vector_store %arg13[%c1_74, %c1_75, %c0_76], %128 {strides = array<i32>} : memref<4x2x512xbf16, #tpu.memory_space<vmem>>, vector<1x1x128xbf16>,
      %129 = vector.extract_strided_slice %108 {offsets = [5, 0], sizes = [1, 128], strides = [1, 1]} : vector<16x128xbf16> to vector<1x128xbf16>
      %c1_77 = arith.constant 1 : index
      %c1_78 = arith.constant 1 : index
      %c128_79 = arith.constant 128 : index
      %130 = vector.load %arg13[%c1_77, %c1_78, %c128_79] : memref<4x2x512xbf16, #tpu.memory_space<vmem>>, vector<1x1x128xbf16>
      %131 = vector.shape_cast %130 : vector<1x1x128xbf16> to vector<1x128xbf16>
      %132 = vector.shape_cast %129 : vector<1x128xbf16> to vector<1x1x128xbf16>
      tpu.vector_store %arg13[%c1_77, %c1_78, %c128_79], %132 {strides = array<i32>} : memref<4x2x512xbf16, #tpu.memory_space<vmem>>, vector<1x1x128xbf16>,
      %133 = vector.extract_strided_slice %108 {offsets = [6, 0], sizes = [1, 128], strides = [1, 1]} : vector<16x128xbf16> to vector<1x128xbf16>
      %c1_80 = arith.constant 1 : index
      %c1_81 = arith.constant 1 : index
      %c256_82 = arith.constant 256 : index
      %134 = vector.load %arg13[%c1_80, %c1_81, %c256_82] : memref<4x2x512xbf16, #tpu.memory_space<vmem>>, vector<1x1x128xbf16>
      %135 = vector.shape_cast %134 : vector<1x1x128xbf16> to vector<1x128xbf16>
      %136 = vector.shape_cast %133 : vector<1x128xbf16> to vector<1x1x128xbf16>
      tpu.vector_store %arg13[%c1_80, %c1_81, %c256_82], %136 {strides = array<i32>} : memref<4x2x512xbf16, #tpu.memory_space<vmem>>, vector<1x1x128xbf16>,
      %137 = vector.extract_strided_slice %108 {offsets = [7, 0], sizes = [1, 128], strides = [1, 1]} : vector<16x128xbf16> to vector<1x128xbf16>
      %c1_83 = arith.constant 1 : index
      %c1_84 = arith.constant 1 : index
      %c384_85 = arith.constant 384 : index
      %138 = vector.load %arg13[%c1_83, %c1_84, %c384_85] : memref<4x2x512xbf16, #tpu.memory_space<vmem>>, vector<1x1x128xbf16>
      %139 = vector.shape_cast %138 : vector<1x1x128xbf16> to vector<1x128xbf16>
      %140 = vector.shape_cast %137 : vector<1x128xbf16> to vector<1x1x128xbf16>
      tpu.vector_store %arg13[%c1_83, %c1_84, %c384_85], %140 {strides = array<i32>} : memref<4x2x512xbf16, #tpu.memory_space<vmem>>, vector<1x1x128xbf16>,
      %141 = vector.extract_strided_slice %108 {offsets = [8, 0], sizes = [1, 128], strides = [1, 1]} : vector<16x128xbf16> to vector<1x128xbf16>
      %c2_86 = arith.constant 2 : index
      %c1_87 = arith.constant 1 : index
      %c0_88 = arith.constant 0 : index
      %142 = vector.load %arg13[%c2_86, %c1_87, %c0_88] : memref<4x2x512xbf16, #tpu.memory_space<vmem>>, vector<1x1x128xbf16>
      %143 = vector.shape_cast %142 : vector<1x1x128xbf16> to vector<1x128xbf16>
      %144 = vector.shape_cast %141 : vector<1x128xbf16> to vector<1x1x128xbf16>
      tpu.vector_store %arg13[%c2_86, %c1_87, %c0_88], %144 {strides = array<i32>} : memref<4x2x512xbf16, #tpu.memory_space<vmem>>, vector<1x1x128xbf16>,
      %145 = vector.extract_strided_slice %108 {offsets = [9, 0], sizes = [1, 128], strides = [1, 1]} : vector<16x128xbf16> to vector<1x128xbf16>
      %c2_89 = arith.constant 2 : index
      %c1_90 = arith.constant 1 : index
      %c128_91 = arith.constant 128 : index
      %146 = vector.load %arg13[%c2_89, %c1_90, %c128_91] : memref<4x2x512xbf16, #tpu.memory_space<vmem>>, vector<1x1x128xbf16>
      %147 = vector.shape_cast %146 : vector<1x1x128xbf16> to vector<1x128xbf16>
      %148 = vector.shape_cast %145 : vector<1x128xbf16> to vector<1x1x128xbf16>
      tpu.vector_store %arg13[%c2_89, %c1_90, %c128_91], %148 {strides = array<i32>} : memref<4x2x512xbf16, #tpu.memory_space<vmem>>, vector<1x1x128xbf16>,
      %149 = vector.extract_strided_slice %108 {offsets = [10, 0], sizes = [1, 128], strides = [1, 1]} : vector<16x128xbf16> to vector<1x128xbf16>
      %c2_92 = arith.constant 2 : index
      %c1_93 = arith.constant 1 : index
      %c256_94 = arith.constant 256 : index
      %150 = vector.load %arg13[%c2_92, %c1_93, %c256_94] : memref<4x2x512xbf16, #tpu.memory_space<vmem>>, vector<1x1x128xbf16>
      %151 = vector.shape_cast %150 : vector<1x1x128xbf16> to vector<1x128xbf16>
      %152 = vector.shape_cast %149 : vector<1x128xbf16> to vector<1x1x128xbf16>
      tpu.vector_store %arg13[%c2_92, %c1_93, %c256_94], %152 {strides = array<i32>} : memref<4x2x512xbf16, #tpu.memory_space<vmem>>, vector<1x1x128xbf16>,
      %153 = vector.extract_strided_slice %108 {offsets = [11, 0], sizes = [1, 128], strides = [1, 1]} : vector<16x128xbf16> to vector<1x128xbf16>
      %c2_95 = arith.constant 2 : index
      %c1_96 = arith.constant 1 : index
      %c384_97 = arith.constant 384 : index
      %154 = vector.load %arg13[%c2_95, %c1_96, %c384_97] : memref<4x2x512xbf16, #tpu.memory_space<vmem>>, vector<1x1x128xbf16>
      %155 = vector.shape_cast %154 : vector<1x1x128xbf16> to vector<1x128xbf16>
      %156 = vector.shape_cast %153 : vector<1x128xbf16> to vector<1x1x128xbf16>
      tpu.vector_store %arg13[%c2_95, %c1_96, %c384_97], %156 {strides = array<i32>} : memref<4x2x512xbf16, #tpu.memory_space<vmem>>, vector<1x1x128xbf16>,
      %157 = vector.extract_strided_slice %108 {offsets = [12, 0], sizes = [1, 128], strides = [1, 1]} : vector<16x128xbf16> to vector<1x128xbf16>
      %c3_98 = arith.constant 3 : index
      %c1_99 = arith.constant 1 : index
      %c0_100 = arith.constant 0 : index
      %158 = vector.load %arg13[%c3_98, %c1_99, %c0_100] : memref<4x2x512xbf16, #tpu.memory_space<vmem>>, vector<1x1x128xbf16>
      %159 = vector.shape_cast %158 : vector<1x1x128xbf16> to vector<1x128xbf16>
      %160 = vector.shape_cast %157 : vector<1x128xbf16> to vector<1x1x128xbf16>
      tpu.vector_store %arg13[%c3_98, %c1_99, %c0_100], %160 {strides = array<i32>} : memref<4x2x512xbf16, #tpu.memory_space<vmem>>, vector<1x1x128xbf16>,
      %161 = vector.extract_strided_slice %108 {offsets = [13, 0], sizes = [1, 128], strides = [1, 1]} : vector<16x128xbf16> to vector<1x128xbf16>
      %c3_101 = arith.constant 3 : index
      %c1_102 = arith.constant 1 : index
      %c128_103 = arith.constant 128 : index
      %162 = vector.load %arg13[%c3_101, %c1_102, %c128_103] : memref<4x2x512xbf16, #tpu.memory_space<vmem>>, vector<1x1x128xbf16>
      %163 = vector.shape_cast %162 : vector<1x1x128xbf16> to vector<1x128xbf16>
      %164 = vector.shape_cast %161 : vector<1x128xbf16> to vector<1x1x128xbf16>
      tpu.vector_store %arg13[%c3_101, %c1_102, %c128_103], %164 {strides = array<i32>} : memref<4x2x512xbf16, #tpu.memory_space<vmem>>, vector<1x1x128xbf16>,
      %165 = vector.extract_strided_slice %108 {offsets = [14, 0], sizes = [1, 128], strides = [1, 1]} : vector<16x128xbf16> to vector<1x128xbf16>
      %c3_104 = arith.constant 3 : index
      %c1_105 = arith.constant 1 : index
      %c256_106 = arith.constant 256 : index
      %166 = vector.load %arg13[%c3_104, %c1_105, %c256_106] : memref<4x2x512xbf16, #tpu.memory_space<vmem>>, vector<1x1x128xbf16>
      %167 = vector.shape_cast %166 : vector<1x1x128xbf16> to vector<1x128xbf16>
      %168 = vector.shape_cast %165 : vector<1x128xbf16> to vector<1x1x128xbf16>
      tpu.vector_store %arg13[%c3_104, %c1_105, %c256_106], %168 {strides = array<i32>} : memref<4x2x512xbf16, #tpu.memory_space<vmem>>, vector<1x1x128xbf16>,
      %169 = vector.extract_strided_slice %108 {offsets = [15, 0], sizes = [1, 128], strides = [1, 1]} : vector<16x128xbf16> to vector<1x128xbf16>
      %c3_107 = arith.constant 3 : index
      %c1_108 = arith.constant 1 : index
      %c384_109 = arith.constant 384 : index
      %170 = vector.load %arg13[%c3_107, %c1_108, %c384_109] : memref<4x2x512xbf16, #tpu.memory_space<vmem>>, vector<1x1x128xbf16>
      %171 = vector.shape_cast %170 : vector<1x1x128xbf16> to vector<1x128xbf16>
      %172 = vector.shape_cast %169 : vector<1x128xbf16> to vector<1x1x128xbf16>
      tpu.vector_store %arg13[%c3_107, %c1_108, %c384_109], %172 {strides = array<i32>} : memref<4x2x512xbf16, #tpu.memory_space<vmem>>, vector<1x1x128xbf16>,
      %cst_110 = arith.constant 0.000000e+00 : f32
      %173 = vector.broadcast %cst_110 : f32 to vector<2x512xf32>
      %c0_111 = arith.constant 0 : index
      %c0_112 = arith.constant 0 : index
      %174 = vector.load %arg14[%c0_111, %c0_112] : memref<2x512xf32, #tpu.memory_space<vmem>>, vector<2x512xf32>
      tpu.vector_store %arg14[%c0_111, %c0_112], %173 {strides = array<i32>} : memref<2x512xf32, #tpu.memory_space<vmem>>, vector<2x512xf32>,
    } else {
    }
    %c0 = arith.constant 0 : index
    %c0_1 = arith.constant 0 : index
    %3 = vector.load %arg14[%c0, %c0_1] : memref<2x512xf32, #tpu.memory_space<vmem>>, vector<2x512xf32>
    %4 = arith.index_cast %arg0 : i32 to index
    %c0_2 = arith.constant 0 : index
    %c0_3 = arith.constant 0 : index
    %5 = vector.load %arg13[%4, %c0_2, %c0_3] : memref<4x2x512xbf16, #tpu.memory_space<vmem>>, vector<1x2x512xbf16>
    %6 = vector.shape_cast %5 : vector<1x2x512xbf16> to vector<2x512xbf16>
    %c0_4 = arith.constant 0 : index
    %c0_5 = arith.constant 0 : index
    %7 = vector.load %arg4[%c0_4, %c0_5] : memref<512x512xbf16, #tpu.memory_space<vmem>>, vector<512x512xbf16>
    %cst = arith.constant dense<0.000000e+00> : vector<2x512xf32>
    %8 = tpu.matmul %6, %7, %cst {dimension_numbers = #tpu.dot_dimension_numbers<[1], [0], [0], [1], [0, 0, 1, 1], [], []>} : vector<2x512xbf16>, vector<512x512xbf16>, vector<2x512xf32> -> vector<2x512xf32>
    %9 = arith.addf %3, %8 : vector<2x512xf32>
    %c0_6 = arith.constant 0 : index
    %c0_7 = arith.constant 0 : index
    %10 = vector.load %arg14[%c0_6, %c0_7] : memref<2x512xf32, #tpu.memory_space<vmem>>, vector<2x512xf32>
    tpu.vector_store %arg14[%c0_6, %c0_7], %9 {strides = array<i32>} : memref<2x512xf32, #tpu.memory_space<vmem>>, vector<2x512xf32>,
    %c3_i32 = arith.constant 3 : i32
    %11 = arith.cmpi eq, %arg0, %c3_i32 : i32
    %12 = arith.extui %11 : i1 to i32
    %c0_i32_8 = arith.constant 0 : i32
    %13 = arith.cmpi ne, %12, %c0_i32_8 : i32
    scf.if %13 {
      %c0_9 = arith.constant 0 : index
      %c0_10 = arith.constant 0 : index
      %14 = vector.load %arg14[%c0_9, %c0_10] : memref<2x512xf32, #tpu.memory_space<vmem>>, vector<2x512xf32>
      %c0_11 = arith.constant 0 : index
      %c0_12 = arith.constant 0 : index
      %15 = vector.load %arg5[%c0_11, %c0_12] : memref<1x512xf32, #tpu.memory_space<vmem>>, vector<1x512xf32>
      %16 = vector.broadcast %15 : vector<1x512xf32> to vector<2x512xf32>
      %17 = arith.addf %14, %16 : vector<2x512xf32>
      %cst_13 = arith.constant 0.000000e+00 : f32
      %18 = vector.broadcast %cst_13 : f32 to vector<2x512xf32>
      %19 = arith.maximumf %17, %18 : vector<2x512xf32>
      %20 = arith.truncf %19 : vector<2x512xf32> to vector<2x512xbf16>
      %c0_14 = arith.constant 0 : index
      %c0_15 = arith.constant 0 : index
      %21 = vector.load %arg6[%c0_14, %c0_15] : memref<512x512xbf16, #tpu.memory_space<vmem>>, vector<512x512xbf16>
      %cst_16 = arith.constant dense<0.000000e+00> : vector<2x512xf32>
      %22 = tpu.matmul %20, %21, %cst_16 {dimension_numbers = #tpu.dot_dimension_numbers<[1], [0], [0], [1], [0, 0, 1, 1], [], []>} : vector<2x512xbf16>, vector<512x512xbf16>, vector<2x512xf32> -> vector<2x512xf32>
      %c0_17 = arith.constant 0 : index
      %c0_18 = arith.constant 0 : index
      %23 = vector.load %arg7[%c0_17, %c0_18] : memref<1x512xf32, #tpu.memory_space<vmem>>, vector<1x512xf32>
      %24 = vector.broadcast %23 : vector<1x512xf32> to vector<2x512xf32>
      %25 = arith.addf %22, %24 : vector<2x512xf32>
      %cst_19 = arith.constant 0.000000e+00 : f32
      %26 = vector.broadcast %cst_19 : f32 to vector<2x512xf32>
      %27 = arith.maximumf %25, %26 : vector<2x512xf32>
      %28 = arith.truncf %27 : vector<2x512xf32> to vector<2x512xbf16>
      %c0_20 = arith.constant 0 : index
      %c0_21 = arith.constant 0 : index
      %29 = vector.load %arg8[%c0_20, %c0_21] : memref<512x512xbf16, #tpu.memory_space<vmem>>, vector<512x512xbf16>
      %cst_22 = arith.constant dense<0.000000e+00> : vector<2x512xf32>
      %30 = tpu.matmul %28, %29, %cst_22 {dimension_numbers = #tpu.dot_dimension_numbers<[1], [0], [0], [1], [0, 0, 1, 1], [], []>} : vector<2x512xbf16>, vector<512x512xbf16>, vector<2x512xf32> -> vector<2x512xf32>
      %c0_23 = arith.constant 0 : index
      %c0_24 = arith.constant 0 : index
      %31 = vector.load %arg9[%c0_23, %c0_24] : memref<1x512xf32, #tpu.memory_space<vmem>>, vector<1x512xf32>
      %32 = vector.broadcast %31 : vector<1x512xf32> to vector<2x512xf32>
      %33 = arith.addf %30, %32 : vector<2x512xf32>
      %cst_25 = arith.constant 0.000000e+00 : f32
      %34 = vector.broadcast %cst_25 : f32 to vector<2x512xf32>
      %35 = arith.maximumf %33, %34 : vector<2x512xf32>
      %36 = arith.truncf %35 : vector<2x512xf32> to vector<2x512xbf16>
      %c0_26 = arith.constant 0 : index
      %c0_27 = arith.constant 0 : index
      %37 = vector.load %arg10[%c0_26, %c0_27] : memref<512x128xbf16, #tpu.memory_space<vmem>>, vector<512x128xbf16>
      %cst_28 = arith.constant dense<0.000000e+00> : vector<2x128xf32>
      %38 = tpu.matmul %36, %37, %cst_28 {dimension_numbers = #tpu.dot_dimension_numbers<[1], [0], [0], [1], [0, 0, 1, 1], [], []>} : vector<2x512xbf16>, vector<512x128xbf16>, vector<2x128xf32> -> vector<2x128xf32>
      %c0_29 = arith.constant 0 : index
      %c0_30 = arith.constant 0 : index
      %39 = vector.load %arg11[%c0_29, %c0_30] : memref<1x128xf32, #tpu.memory_space<vmem>>, vector<1x128xf32>
      %40 = vector.broadcast %39 : vector<1x128xf32> to vector<2x128xf32>
      %41 = arith.addf %38, %40 : vector<2x128xf32>
      %c0_31 = arith.constant 0 : index
      %c0_32 = arith.constant 0 : index
      %42 = vector.load %arg12[%c0_31, %c0_32] : memref<2x128xf32, #tpu.memory_space<vmem>>, vector<2x128xf32>
      tpu.vector_store %arg12[%c0_31, %c0_32], %41 {strides = array<i32>} : memref<2x128xf32, #tpu.memory_space<vmem>>, vector<2x128xf32>,
    } else {
    }
    return
  }
  func.func @transform_0(%arg0: i32) -> (i32, i32) {
    %c0_i32 = arith.constant 0 : i32
    %c0_i32_0 = arith.constant 0 : i32
    %c0_i32_1 = arith.constant 0 : i32
    return %c0_i32, %c0_i32_0 : i32, i32
  }
  func.func @transform_1(%arg0: i32) -> (i32, i32) {
    %c0_i32 = arith.constant 0 : i32
    %c0_i32_0 = arith.constant 0 : i32
    %c0_i32_1 = arith.constant 0 : i32
    return %c0_i32, %c0_i32_0 : i32, i32
  }
  func.func @transform_2(%arg0: i32) -> (i32, i32) {
    %c0_i32 = arith.constant 0 : i32
    %c0_i32_0 = arith.constant 0 : i32
    %c0_i32_1 = arith.constant 0 : i32
    return %c0_i32, %c0_i32_0 : i32, i32
  }
  func.func @transform_3(%arg0: i32) -> (i32, i32) {
    %c0_i32 = arith.constant 0 : i32
    %c0_i32_0 = arith.constant 0 : i32
    return %arg0, %c0_i32 : i32, i32
  }
  func.func @transform_4(%arg0: i32) -> (i32, i32) {
    %c0_i32 = arith.constant 0 : i32
    %c0_i32_0 = arith.constant 0 : i32
    %c0_i32_1 = arith.constant 0 : i32
    return %c0_i32, %c0_i32_0 : i32, i32
  }
  func.func @transform_5(%arg0: i32) -> (i32, i32) {
    %c0_i32 = arith.constant 0 : i32
    %c0_i32_0 = arith.constant 0 : i32
    %c0_i32_1 = arith.constant 0 : i32
    return %c0_i32, %c0_i32_0 : i32, i32
  }
  func.func @transform_6(%arg0: i32) -> (i32, i32) {
    %c0_i32 = arith.constant 0 : i32
    %c0_i32_0 = arith.constant 0 : i32
    %c0_i32_1 = arith.constant 0 : i32
    return %c0_i32, %c0_i32_0 : i32, i32
  }
  func.func @transform_7(%arg0: i32) -> (i32, i32) {
    %c0_i32 = arith.constant 0 : i32
    %c0_i32_0 = arith.constant 0 : i32
    %c0_i32_1 = arith.constant 0 : i32
    return %c0_i32, %c0_i32_0 : i32, i32
  }
  func.func @transform_8(%arg0: i32) -> (i32, i32) {
    %c0_i32 = arith.constant 0 : i32
    %c0_i32_0 = arith.constant 0 : i32
    %c0_i32_1 = arith.constant 0 : i32
    return %c0_i32, %c0_i32_0 : i32, i32
  }
  func.func @transform_9(%arg0: i32) -> (i32, i32) {
    %c0_i32 = arith.constant 0 : i32
    %c0_i32_0 = arith.constant 0 : i32
    %c0_i32_1 = arith.constant 0 : i32
    return %c0_i32, %c0_i32_0 : i32, i32
  }
  func.func @transform_10(%arg0: i32) -> (i32, i32) {
    %c0_i32 = arith.constant 0 : i32
    %c0_i32_0 = arith.constant 0 : i32
    %c0_i32_1 = arith.constant 0 : i32
    return %c0_i32, %c0_i32_0 : i32, i32
  }
  func.func @transform_11(%arg0: i32) -> (i32, i32) {
    %c0_i32 = arith.constant 0 : i32
    %c0_i32_0 = arith.constant 0 : i32
    %c0_i32_1 = arith.constant 0 : i32
    return %c0_i32, %c0_i32_0 : i32, i32
  }
}

</mosaic_0001>

<llo_original>
// kernel: net_forward.1
$region0: #{net_forward.1}
  #allocation0 [shape = 'u32[]', space=smem, size = 0x4, offset = 0x4, fixed_abs, tag = 'smem constant byte address 0x4 - core index']
  #allocation1 [shape = 'u32[72,128]{1,0:T(1,128)}', space=vmem, size = 0x9000, scoped, tag = 'internal scratch']
  #allocation2 [shape = 'bf16[4,2,512]{2,1,0:T(2,128)(2,1)}', space=vmem, size = 0x2000, scoped, tag = 'scratch operand']
  #allocation3 [shape = 'f32[2,512]{1,0:T(2,128)}', space=vmem, size = 0x1000, scoped, tag = 'scratch operand']
  %s0 = inlined_call_operand.vmem [shape: bf16[128,512], index: 0, kind: input, shape index: {}]
  %s1 = inlined_call_operand.vmem [shape: bf16[512,128], index: 1, kind: input, shape index: {}]
  %s2 = inlined_call_operand.vmem [shape: f32[1,128], index: 2, kind: input, shape index: {}]
  %s3 = inlined_call_operand.vmem [shape: bf16[2048,512], index: 3, kind: input, shape index: {}]
  %s4 = inlined_call_operand.vmem [shape: f32[1,512], index: 4, kind: input, shape index: {}]
  %s5 = inlined_call_operand.vmem [shape: bf16[512,512], index: 5, kind: input, shape index: {}]
  %s6 = inlined_call_operand.vmem [shape: f32[1,512], index: 6, kind: input, shape index: {}]
  %s7 = inlined_call_operand.vmem [shape: bf16[512,512], index: 7, kind: input, shape index: {}]
  %s8 = inlined_call_operand.vmem [shape: f32[1,512], index: 8, kind: input, shape index: {}]
  %s9 = inlined_call_operand.vmem [shape: bf16[512,128], index: 9, kind: input, shape index: {}]
  %s10 = inlined_call_operand.vmem [shape: f32[1,128], index: 10, kind: input, shape index: {}]
  %s11 = inlined_call_operand.hbm [shape: f32[2,128], index: 11, kind: output, shape index: {}]
  %s12 = sld [smem:[#allocation0]]
  $region85: #{net_forward.1} parent=0
    _
  %s14 = ssub.s32 1, %s12
  %s15 = scalar_select 0, %s14, %s12
  $region1: #{net_forward.1} parent=0
    #allocation4 [shape = 'u8[1024]{0}', space=vmem, size = 0x400, scoped, tag = 'output window, operand 0, single buffered']
    #allocation5 [shape = 's32[2]{0}', space=sflag, size = 0x8, scoped, tag = 'scoped memory for net_forward.1']
    %16 = vsyncpa [#allocation5], 0
    loop: start=0, step=1, limit=6
    $region2: #{net_forward.1} parent=1 // loop_pre_header
      _
    $region3: #{net_forward.1} parent=1 // loop_header
      %s18 = sphi 0, %s22
      %p19 = scmp.ge.s32.totalorder %s18, 6
      %s26 = sphi 0, %s26
      %s28 = sphi 0, %s26
      %s29 = sphi 0, %s28
      %s43 = sphi 0, %s29
      %s47 = sphi 0, %s47
      %s49 = sphi 0, %s47
      %s50 = sphi 0, %s49
      %s64 = sphi 0, %s50
      %s68 = sphi 0, %s68
      %s70 = sphi 0, %s68
      %s71 = sphi 0, %s70
      %s85 = sphi 0, %s71
      %s91 = sphi 0, %s93
      %s94 = sphi 0, %s91
      %s95 = sphi 0, %s94
      %s111 = sphi 0, %s95
      %s115 = sphi 0, %s115
      %s117 = sphi 0, %s115
      %s118 = sphi 0, %s117
      %s132 = sphi 0, %s118
      %s136 = sphi 0, %s136
      %s138 = sphi 0, %s136
      %s139 = sphi 0, %s138
      %s153 = sphi 0, %s139
      %s157 = sphi 0, %s157
      %s159 = sphi 0, %s157
      %s160 = sphi 0, %s159
      %s174 = sphi 0, %s160
      %s178 = sphi 0, %s178
      %s180 = sphi 0, %s178
      %s181 = sphi 0, %s180
      %s195 = sphi 0, %s181
      %s199 = sphi 0, %s199
      %s201 = sphi 0, %s199
      %s202 = sphi 0, %s201
      %s216 = sphi 0, %s202
      %s220 = sphi 0, %s220
      %s222 = sphi 0, %s220
      %s223 = sphi 0, %s222
      %s237 = sphi 0, %s223
      %s241 = sphi 0, %s241
      %s243 = sphi 0, %s241
      %s244 = sphi 0, %s243
      %s258 = sphi 0, %s244
      %s262 = sphi 0, %s262
      %s264 = sphi 0, %s262
      %s265 = sphi 0, %s264
      %s279 = sphi 0, %s265
    $region4: #{net_forward.1} parent=1 // loop_header_branch
      %21 = sbr.rel (%p19) target = $region8
    $region5: #{net_forward.1} parent=1 // loop_body
      %s23 = ssub.s32 %s18, 1
      %s24 = ssub.s32 %s18, 2
      %s25 = sadd.s32 %s18, 1
      %s27 = sadd.s32 %s26, 1
      %p30 = scmp.eq.s32.totalorder %s18, 3
      %p31 = scmp.ne.s32.totalorder %s26, %s28
      %p32 = scmp.eq.s32.totalorder %s18, 0
      %p33 = por %p31, %p32
      %p34 = scmp.ne.s32.totalorder %s26, %s28
      %p35 = scmp.eq.s32.totalorder %s23, 3
      %p36 = por %p34, %p35
      %p37 = scmp.ne.s32.totalorder %s28, %s29
      %p38 = scmp.eq.s32.totalorder %s23, 0
      %p39 = por %p37, %p38
      %p40 = scmp.ne.s32.totalorder %s28, %s29
      %p41 = scmp.eq.s32.totalorder %s24, 3
      %p42 = por %p40, %p41
      %p44 = scmp.ne.s32.totalorder %s29, %s43
      %p45 = scmp.eq.s32.totalorder %s24, 0
      %p46 = por %p44, %p45
      %s48 = sadd.s32 %s47, 1
      %p51 = scmp.eq.s32.totalorder %s18, 3
      %p52 = scmp.ne.s32.totalorder %s47, %s49
      %p53 = scmp.eq.s32.totalorder %s18, 0
      %p54 = por %p52, %p53
      %p55 = scmp.ne.s32.totalorder %s47, %s49
      %p56 = scmp.eq.s32.totalorder %s23, 3
      %p57 = por %p55, %p56
      %p58 = scmp.ne.s32.totalorder %s49, %s50
      %p59 = scmp.eq.s32.totalorder %s23, 0
      %p60 = por %p58, %p59
      %p61 = scmp.ne.s32.totalorder %s49, %s50
      %p62 = scmp.eq.s32.totalorder %s24, 3
      %p63 = por %p61, %p62
      %p65 = scmp.ne.s32.totalorder %s50, %s64
      %p66 = scmp.eq.s32.totalorder %s24, 0
      %p67 = por %p65, %p66
      %s69 = sadd.s32 %s68, 1
      %p72 = scmp.eq.s32.totalorder %s18, 3
      %p73 = scmp.ne.s32.totalorder %s68, %s70
      %p74 = scmp.eq.s32.totalorder %s18, 0
      %p75 = por %p73, %p74
      %p76 = scmp.ne.s32.totalorder %s68, %s70
      %p77 = scmp.eq.s32.totalorder %s23, 3
      %p78 = por %p76, %p77
      %p79 = scmp.ne.s32.totalorder %s70, %s71
      %p80 = scmp.eq.s32.totalorder %s23, 0
      %p81 = por %p79, %p80
      %p82 = scmp.ne.s32.totalorder %s70, %s71
      %p83 = scmp.eq.s32.totalorder %s24, 3
      %p84 = por %p82, %p83
      %p86 = scmp.ne.s32.totalorder %s71, %s85
      %p87 = scmp.eq.s32.totalorder %s24, 0
      %p88 = por %p86, %p87
      %s89 = ssub.s32 %s18, %s25
      %p90 = scmp.eq.s32.totalorder %s89, 0
      %s92 = sadd.s32 %s91, 1
      %s93 = scalar_select %p90, %s91, %s92
      %p96 = pneg %p90
      %p97 = scmp.eq.s32.totalorder %s18, 3
      %p98 = por %p96, %p97
      %p99 = scmp.ne.s32.totalorder %s91, %s94
      %p100 = scmp.eq.s32.totalorder %s18, 0
      %p101 = por %p99, %p100
      %p102 = scmp.ne.s32.totalorder %s91, %s94
      %p103 = scmp.eq.s32.totalorder %s23, 3
      %p104 = por %p102, %p103
      %p105 = scmp.ne.s32.totalorder %s94, %s95
      %p106 = scmp.eq.s32.totalorder %s23, 0
      %p107 = por %p105, %p106
      %p108 = scmp.ne.s32.totalorder %s94, %s95
      %p109 = scmp.eq.s32.totalorder %s24, 3
      %p110 = por %p108, %p109
      %p112 = scmp.ne.s32.totalorder %s95, %s111
      %p113 = scmp.eq.s32.totalorder %s24, 0
      %p114 = por %p112, %p113
      %s116 = sadd.s32 %s115, 1
      %p119 = scmp.eq.s32.totalorder %s18, 3
      %p120 = scmp.ne.s32.totalorder %s115, %s117
      %p121 = scmp.eq.s32.totalorder %s18, 0
      %p122 = por %p120, %p121
      %p123 = scmp.ne.s32.totalorder %s115, %s117
      %p124 = scmp.eq.s32.totalorder %s23, 3
      %p125 = por %p123, %p124
      %p126 = scmp.ne.s32.totalorder %s117, %s118
      %p127 = scmp.eq.s32.totalorder %s23, 0
      %p128 = por %p126, %p127
      %p129 = scmp.ne.s32.totalorder %s117, %s118
      %p130 = scmp.eq.s32.totalorder %s24, 3
      %p131 = por %p129, %p130
      %p133 = scmp.ne.s32.totalorder %s118, %s132
      %p134 = scmp.eq.s32.totalorder %s24, 0
      %p135 = por %p133, %p134
      %s137 = sadd.s32 %s136, 1
      %p140 = scmp.eq.s32.totalorder %s18, 3
      %p141 = scmp.ne.s32.totalorder %s136, %s138
      %p142 = scmp.eq.s32.totalorder %s18, 0
      %p143 = por %p141, %p142
      %p144 = scmp.ne.s32.totalorder %s136, %s138
      %p145 = scmp.eq.s32.totalorder %s23, 3
      %p146 = por %p144, %p145
      %p147 = scmp.ne.s32.totalorder %s138, %s139
      %p148 = scmp.eq.s32.totalorder %s23, 0
      %p149 = por %p147, %p148
      %p150 = scmp.ne.s32.totalorder %s138, %s139
      %p151 = scmp.eq.s32.totalorder %s24, 3
      %p152 = por %p150, %p151
      %p154 = scmp.ne.s32.totalorder %s139, %s153
      %p155 = scmp.eq.s32.totalorder %s24, 0
      %p156 = por %p154, %p155
      %s158 = sadd.s32 %s157, 1
      %p161 = scmp.eq.s32.totalorder %s18, 3
      %p162 = scmp.ne.s32.totalorder %s157, %s159
      %p163 = scmp.eq.s32.totalorder %s18, 0
      %p164 = por %p162, %p163
      %p165 = scmp.ne.s32.totalorder %s157, %s159
      %p166 = scmp.eq.s32.totalorder %s23, 3
      %p167 = por %p165, %p166
      %p168 = scmp.ne.s32.totalorder %s159, %s160
      %p169 = scmp.eq.s32.totalorder %s23, 0
      %p170 = por %p168, %p169
      %p171 = scmp.ne.s32.totalorder %s159, %s160
      %p172 = scmp.eq.s32.totalorder %s24, 3
      %p173 = por %p171, %p172
      %p175 = scmp.ne.s32.totalorder %s160, %s174
      %p176 = scmp.eq.s32.totalorder %s24, 0
      %p177 = por %p175, %p176
      %s179 = sadd.s32 %s178, 1
      %p182 = scmp.eq.s32.totalorder %s18, 3
      %p183 = scmp.ne.s32.totalorder %s178, %s180
      %p184 = scmp.eq.s32.totalorder %s18, 0
      %p185 = por %p183, %p184
      %p186 = scmp.ne.s32.totalorder %s178, %s180
      %p187 = scmp.eq.s32.totalorder %s23, 3
      %p188 = por %p186, %p187
      %p189 = scmp.ne.s32.totalorder %s180, %s181
      %p190 = scmp.eq.s32.totalorder %s23, 0
      %p191 = por %p189, %p190
      %p192 = scmp.ne.s32.totalorder %s180, %s181
      %p193 = scmp.eq.s32.totalorder %s24, 3
      %p194 = por %p192, %p193
      %p196 = scmp.ne.s32.totalorder %s181, %s195
      %p197 = scmp.eq.s32.totalorder %s24, 0
      %p198 = por %p196, %p197
      %s200 = sadd.s32 %s199, 1
      %p203 = scmp.eq.s32.totalorder %s18, 3
      %p204 = scmp.ne.s32.totalorder %s199, %s201
      %p205 = scmp.eq.s32.totalorder %s18, 0
      %p206 = por %p204, %p205
      %p207 = scmp.ne.s32.totalorder %s199, %s201
      %p208 = scmp.eq.s32.totalorder %s23, 3
      %p209 = por %p207, %p208
      %p210 = scmp.ne.s32.totalorder %s201, %s202
      %p211 = scmp.eq.s32.totalorder %s23, 0
      %p212 = por %p210, %p211
      %p213 = scmp.ne.s32.totalorder %s201, %s202
      %p214 = scmp.eq.s32.totalorder %s24, 3
      %p215 = por %p213, %p214
      %p217 = scmp.ne.s32.totalorder %s202, %s216
      %p218 = scmp.eq.s32.totalorder %s24, 0
      %p219 = por %p217, %p218
      %s221 = sadd.s32 %s220, 1
      %p224 = scmp.eq.s32.totalorder %s18, 3
      %p225 = scmp.ne.s32.totalorder %s220, %s222
      %p226 = scmp.eq.s32.totalorder %s18, 0
      %p227 = por %p225, %p226
      %p228 = scmp.ne.s32.totalorder %s220, %s222
      %p229 = scmp.eq.s32.totalorder %s23, 3
      %p230 = por %p228, %p229
      %p231 = scmp.ne.s32.totalorder %s222, %s223
      %p232 = scmp.eq.s32.totalorder %s23, 0
      %p233 = por %p231, %p232
      %p234 = scmp.ne.s32.totalorder %s222, %s223
      %p235 = scmp.eq.s32.totalorder %s24, 3
      %p236 = por %p234, %p235
      %p238 = scmp.ne.s32.totalorder %s223, %s237
      %p239 = scmp.eq.s32.totalorder %s24, 0
      %p240 = por %p238, %p239
      %s242 = sadd.s32 %s241, 1
      %p245 = scmp.eq.s32.totalorder %s18, 3
      %p246 = scmp.ne.s32.totalorder %s241, %s243
      %p247 = scmp.eq.s32.totalorder %s18, 0
      %p248 = por %p246, %p247
      %p249 = scmp.ne.s32.totalorder %s241, %s243
      %p250 = scmp.eq.s32.totalorder %s23, 3
      %p251 = por %p249, %p250
      %p252 = scmp.ne.s32.totalorder %s243, %s244
      %p253 = scmp.eq.s32.totalorder %s23, 0
      %p254 = por %p252, %p253
      %p255 = scmp.ne.s32.totalorder %s243, %s244
      %p256 = scmp.eq.s32.totalorder %s24, 3
      %p257 = por %p255, %p256
      %p259 = scmp.ne.s32.totalorder %s244, %s258
      %p260 = scmp.eq.s32.totalorder %s24, 0
      %p261 = por %p259, %p260
      %s263 = sadd.s32 %s262, 1
      %p266 = scmp.eq.s32.totalorder %s18, 3
      %p267 = scmp.ne.s32.totalorder %s262, %s264
      %p268 = scmp.eq.s32.totalorder %s18, 0
      %p269 = por %p267, %p268
      %p270 = scmp.ne.s32.totalorder %s262, %s264
      %p271 = scmp.eq.s32.totalorder %s23, 3
      %p272 = por %p270, %p271
      %p273 = scmp.ne.s32.totalorder %s264, %s265
      %p274 = scmp.eq.s32.totalorder %s23, 0
      %p275 = por %p273, %p274
      %p276 = scmp.ne.s32.totalorder %s264, %s265
      %p277 = scmp.eq.s32.totalorder %s24, 3
      %p278 = por %p276, %p277
      %p280 = scmp.ne.s32.totalorder %s265, %s279
      %p281 = scmp.eq.s32.totalorder %s24, 0
      %p282 = por %p280, %p281
      %p283 = scmp.le.s32.totalorder 1, %s18
      %p284 = scmp.lt.s32.totalorder %s18, 5
      %p285 = pnand %p283, %p284
      %p286 = pneg %p285
      // Predicated region
      $region9: #{net_forward.1} parent=5 // pred_check
        _
      $region10: #{net_forward.1} parent=5 // pred_check_branch
        %288 = sbr.rel (%p285) target = $region12
      $region11: #{net_forward.1} parent=5 // pred_region
        %s289 = ssub.s32 %s18, 1
        // Predicated region
        $region13: #{net_forward.1} parent=11 // pred_check
          %p290 = pneg %p39
        $region14: #{net_forward.1} parent=11 // pred_check_branch
          %292 = sbr.rel (%p290) target = $region16
        $region15: #{net_forward.1} parent=11 // pred_region
          _
        $region16: #{net_forward.1} parent=11 // pred_fallthru
          _
        // Predicated region
        $region17: #{net_forward.1} parent=11 // pred_check
          %p293 = pneg %p60
        $region18: #{net_forward.1} parent=11 // pred_check_branch
          %295 = sbr.rel (%p293) target = $region20
        $region19: #{net_forward.1} parent=11 // pred_region
          _
        $region20: #{net_forward.1} parent=11 // pred_fallthru
          _
        // Predicated region
        $region21: #{net_forward.1} parent=11 // pred_check
          %p296 = pneg %p81
        $region22: #{net_forward.1} parent=11 // pred_check_branch
          %298 = sbr.rel (%p296) target = $region24
        $region23: #{net_forward.1} parent=11 // pred_region
          _
        $region24: #{net_forward.1} parent=11 // pred_fallthru
          _
        // Predicated region
        $region25: #{net_forward.1} parent=11 // pred_check
          %p299 = pneg %p128
        $region26: #{net_forward.1} parent=11 // pred_check_branch
          %301 = sbr.rel (%p299) target = $region28
        $region27: #{net_forward.1} parent=11 // pred_region
          _
        $region28: #{net_forward.1} parent=11 // pred_fallthru
          _
        // Predicated region
        $region29: #{net_forward.1} parent=11 // pred_check
          %p302 = pneg %p149
        $region30: #{net_forward.1} parent=11 // pred_check_branch
          %304 = sbr.rel (%p302) target = $region32
        $region31: #{net_forward.1} parent=11 // pred_region
          _
        $region32: #{net_forward.1} parent=11 // pred_fallthru
          _
        // Predicated region
        $region33: #{net_forward.1} parent=11 // pred_check
          %p305 = pneg %p170
        $region34: #{net_forward.1} parent=11 // pred_check_branch
          %307 = sbr.rel (%p305) target = $region36
        $region35: #{net_forward.1} parent=11 // pred_region
          _
        $region36: #{net_forward.1} parent=11 // pred_fallthru
          _
        // Predicated region
        $region37: #{net_forward.1} parent=11 // pred_check
          %p308 = pneg %p191
        $region38: #{net_forward.1} parent=11 // pred_check_branch
          %310 = sbr.rel (%p308) target = $region40
        $region39: #{net_forward.1} parent=11 // pred_region
          _
        $region40: #{net_forward.1} parent=11 // pred_fallthru
          _
        // Predicated region
        $region41: #{net_forward.1} parent=11 // pred_check
          %p311 = pneg %p212
        $region42: #{net_forward.1} parent=11 // pred_check_branch
          %313 = sbr.rel (%p311) target = $region44
        $region43: #{net_forward.1} parent=11 // pred_region
          _
        $region44: #{net_forward.1} parent=11 // pred_fallthru
          _
        // Predicated region
        $region45: #{net_forward.1} parent=11 // pred_check
          %p314 = pneg %p233
        $region46: #{net_forward.1} parent=11 // pred_check_branch
          %316 = sbr.rel (%p314) target = $region48
        $region47: #{net_forward.1} parent=11 // pred_region
          _
        $region48: #{net_forward.1} parent=11 // pred_fallthru
          _
        // Predicated region
        $region49: #{net_forward.1} parent=11 // pred_check
          %p317 = pneg %p254
        $region50: #{net_forward.1} parent=11 // pred_check_branch
          %319 = sbr.rel (%p317) target = $region52
        $region51: #{net_forward.1} parent=11 // pred_region
          _
        $region52: #{net_forward.1} parent=11 // pred_fallthru
          _
      $region12: #{net_forward.1} parent=5 // pred_fallthru
        _
      %p320 = scmp.lt.s32.totalorder %s18, 4
      // Predicated region
      $region53: #{net_forward.1} parent=5 // pred_check
        %p321 = pneg %p320
      $region54: #{net_forward.1} parent=5 // pred_check_branch
        %323 = sbr.rel (%p321) target = $region56
      $region55: #{net_forward.1} parent=5 // pred_region
        // Predicated region
        $region57: #{net_forward.1} parent=55 // pred_check
          %p324 = pneg %p101
        $region58: #{net_forward.1} parent=55 // pred_check_branch
          %326 = sbr.rel (%p324) target = $region60
        $region59: #{net_forward.1} parent=55 // pred_region
          %s327 = smul.u32 64, %s18
          %p328 = scmp.lt.s32.totalorder %s327, 255
          %s329 = scalar_select %p328, %s327, 255
          %s330 = smul.addr %s329, 4
          %s331 = smul.addr %s330, 4
          %s332 = scalar_lea.vmem %s3, %s331
          %s333 = smul.u32 64, %s18
        $region60: #{net_forward.1} parent=55 // pred_fallthru
          _
      $region56: #{net_forward.1} parent=5 // pred_fallthru
        _
      %p334 = scmp.le.s32.totalorder 1, %s18
      %p335 = scmp.lt.s32.totalorder %s18, 5
      %p336 = pnand %p334, %p335
      %p337 = pneg %p336
      // Predicated region
      $region61: #{net_forward.1} parent=5 // pred_check
        _
      $region62: #{net_forward.1} parent=5 // pred_check_branch
        %339 = sbr.rel (%p336) target = $region64
      $region63: #{net_forward.1} parent=5 // pred_region
        %s340 = ssub.s32 %s18, 1
        %p341 = pneg %p39
        %p342 = pneg %p36
        %p343 = pneg %p60
        %p344 = pneg %p57
        %p345 = pneg %p81
        %p346 = pneg %p78
        %s347 = smul.u32 64, %s23
        %p348 = scmp.lt.s32.totalorder %s347, 255
        %s349 = scalar_select %p348, %s347, 255
        %s350 = smul.addr %s349, 4
        %s351 = smul.addr %s350, 4
        %s352 = scalar_lea.vmem %s3, %s351
        %p353 = pneg %p107
        %p354 = pneg %p104
        %p355 = pneg %p128
        %p356 = pneg %p125
        %p357 = pneg %p149
        %p358 = pneg %p146
        %p359 = pneg %p170
        %p360 = pneg %p167
        %p361 = pneg %p191
        %p362 = pneg %p188
        %p363 = pneg %p212
        %p364 = pneg %p209
        %p365 = pneg %p233
        %p366 = pneg %p230
        %p367 = pneg %p254
        %p368 = pneg %p251
        %p369 = pneg %p275
        %p370 = pneg %p272
        %s371 = smul.u32 64, %s23
        %p372 = scmp.lt.s32.totalorder %s371, 255
        %s373 = scalar_select %p372, %s371, 255
        %s374 = smul.addr %s373, 4
        %s375 = smul.addr %s374, 4
        %s376 = scalar_lea.vmem %s3, %s375
        %s377 = smul.u32 64, %s23
        %p378 = scmp.eq.s32.totalorder %s23, 0
        // Predicated region
        $region65: #{net_forward.1} parent=63 // pred_check
          %p379 = pneg %p378
        $region66: #{net_forward.1} parent=63 // pred_check_branch
          %381 = sbr.rel (%p379) target = $region68
        $region67: #{net_forward.1} parent=63 // pred_region
          %v382 = vld [vmem:[%s0] sm:$0xff]
          %v383 = vld [vmem:[%s0 + $0x8] sm:$0xff]
          %v384 = vld [vmem:[%s0 + $0x10] sm:$0xff]
          %v385 = vld [vmem:[%s0 + $0x18] sm:$0xff]
          %v386 = vld [vmem:[%s0 + $0x20] sm:$0xff]
          %v387 = vld [vmem:[%s0 + $0x28] sm:$0xff]
          %v388 = vld [vmem:[%s0 + $0x30] sm:$0xff]
          %v389 = vld [vmem:[%s0 + $0x38] sm:$0xff]
          %v390 = vld [vmem:[%s0 + $0x40] sm:$0xff]
          %v391 = vld [vmem:[%s0 + $0x48] sm:$0xff]
          %v392 = vld [vmem:[%s0 + $0x50] sm:$0xff]
          %v393 = vld [vmem:[%s0 + $0x58] sm:$0xff]
          %v394 = vld [vmem:[%s0 + $0x60] sm:$0xff]
          %v395 = vld [vmem:[%s0 + $0x68] sm:$0xff]
          %v396 = vld [vmem:[%s0 + $0x70] sm:$0xff]
          %v397 = vld [vmem:[%s0 + $0x78] sm:$0xff]
          %v398 = vld [vmem:[%s0 + $0x80] sm:$0xff]
          %v399 = vld [vmem:[%s0 + $0x88] sm:$0xff]
          %v400 = vld [vmem:[%s0 + $0x90] sm:$0xff]
          %v401 = vld [vmem:[%s0 + $0x98] sm:$0xff]
          %v402 = vld [vmem:[%s0 + $0xa0] sm:$0xff]
          %v403 = vld [vmem:[%s0 + $0xa8] sm:$0xff]
          %v404 = vld [vmem:[%s0 + $0xb0] sm:$0xff]
          %v405 = vld [vmem:[%s0 + $0xb8] sm:$0xff]
          %v406 = vld [vmem:[%s0 + $0xc0] sm:$0xff]
          %v407 = vld [vmem:[%s0 + $0xc8] sm:$0xff]
          %v408 = vld [vmem:[%s0 + $0xd0] sm:$0xff]
          %v409 = vld [vmem:[%s0 + $0xd8] sm:$0xff]
          %v410 = vld [vmem:[%s0 + $0xe0] sm:$0xff]
          %v411 = vld [vmem:[%s0 + $0xe8] sm:$0xff]
          %v412 = vld [vmem:[%s0 + $0xf0] sm:$0xff]
          %v413 = vld [vmem:[%s0 + $0xf8] sm:$0xff]
          %v414 = vld [vmem:[%s1] sm:$0xf]
          %v415 = vld [vmem:[%s1 + $0x4] sm:$0xf]
          %v416 = vld [vmem:[%s1 + $0x8] sm:$0xf]
          %v417 = vld [vmem:[%s1 + $0xc] sm:$0xf]
          %v418 = vld [vmem:[%s1 + $0x10] sm:$0xf]
          %v419 = vld [vmem:[%s1 + $0x14] sm:$0xf]
          %v420 = vld [vmem:[%s1 + $0x18] sm:$0xf]
          %v421 = vld [vmem:[%s1 + $0x1c] sm:$0xf]
          %v422 = vld [vmem:[%s1 + $0x20] sm:$0xf]
          %v423 = vld [vmem:[%s1 + $0x24] sm:$0xf]
          %v424 = vld [vmem:[%s1 + $0x28] sm:$0xf]
          %v425 = vld [vmem:[%s1 + $0x2c] sm:$0xf]
          %v426 = vld [vmem:[%s1 + $0x30] sm:$0xf]
          %v427 = vld [vmem:[%s1 + $0x34] sm:$0xf]
          %v428 = vld [vmem:[%s1 + $0x38] sm:$0xf]
          %v429 = vld [vmem:[%s1 + $0x3c] sm:$0xf]
          %v430 = vld [vmem:[%s1 + $0x40] sm:$0xf]
          %v431 = vld [vmem:[%s1 + $0x44] sm:$0xf]
          %v432 = vld [vmem:[%s1 + $0x48] sm:$0xf]
          %v433 = vld [vmem:[%s1 + $0x4c] sm:$0xf]
          %v434 = vld [vmem:[%s1 + $0x50] sm:$0xf]
          %v435 = vld [vmem:[%s1 + $0x54] sm:$0xf]
          %v436 = vld [vmem:[%s1 + $0x58] sm:$0xf]
          %v437 = vld [vmem:[%s1 + $0x5c] sm:$0xf]
          %v438 = vld [vmem:[%s1 + $0x60] sm:$0xf]
          %v439 = vld [vmem:[%s1 + $0x64] sm:$0xf]
          %v440 = vld [vmem:[%s1 + $0x68] sm:$0xf]
          %v441 = vld [vmem:[%s1 + $0x6c] sm:$0xf]
          %v442 = vld [vmem:[%s1 + $0x70] sm:$0xf]
          %v443 = vld [vmem:[%s1 + $0x74] sm:$0xf]
          %v444 = vld [vmem:[%s1 + $0x78] sm:$0xf]
          %v445 = vld [vmem:[%s1 + $0x7c] sm:$0xf]
          %v446 = vld [vmem:[%s1 + $0x80] sm:$0xf]
          %v447 = vld [vmem:[%s1 + $0x84] sm:$0xf]
          %v448 = vld [vmem:[%s1 + $0x88] sm:$0xf]
          %v449 = vld [vmem:[%s1 + $0x8c] sm:$0xf]
          %v450 = vld [vmem:[%s1 + $0x90] sm:$0xf]
          %v451 = vld [vmem:[%s1 + $0x94] sm:$0xf]
          %v452 = vld [vmem:[%s1 + $0x98] sm:$0xf]
          %v453 = vld [vmem:[%s1 + $0x9c] sm:$0xf]
          %v454 = vld [vmem:[%s1 + $0xa0] sm:$0xf]
          %v455 = vld [vmem:[%s1 + $0xa4] sm:$0xf]
          %v456 = vld [vmem:[%s1 + $0xa8] sm:$0xf]
          %v457 = vld [vmem:[%s1 + $0xac] sm:$0xf]
          %v458 = vld [vmem:[%s1 + $0xb0] sm:$0xf]
          %v459 = vld [vmem:[%s1 + $0xb4] sm:$0xf]
          %v460 = vld [vmem:[%s1 + $0xb8] sm:$0xf]
          %v461 = vld [vmem:[%s1 + $0xbc] sm:$0xf]
          %v462 = vld [vmem:[%s1 + $0xc0] sm:$0xf]
          %v463 = vld [vmem:[%s1 + $0xc4] sm:$0xf]
          %v464 = vld [vmem:[%s1 + $0xc8] sm:$0xf]
          %v465 = vld [vmem:[%s1 + $0xcc] sm:$0xf]
          %v466 = vld [vmem:[%s1 + $0xd0] sm:$0xf]
          %v467 = vld [vmem:[%s1 + $0xd4] sm:$0xf]
          %v468 = vld [vmem:[%s1 + $0xd8] sm:$0xf]
          %v469 = vld [vmem:[%s1 + $0xdc] sm:$0xf]
          %v470 = vld [vmem:[%s1 + $0xe0] sm:$0xf]
          %v471 = vld [vmem:[%s1 + $0xe4] sm:$0xf]
          %v472 = vld [vmem:[%s1 + $0xe8] sm:$0xf]
          %v473 = vld [vmem:[%s1 + $0xec] sm:$0xf]
          %v474 = vld [vmem:[%s1 + $0xf0] sm:$0xf]
          %v475 = vld [vmem:[%s1 + $0xf4] sm:$0xf]
          %v476 = vld [vmem:[%s1 + $0xf8] sm:$0xf]
          %v477 = vld [vmem:[%s1 + $0xfc] sm:$0xf]
          %v510 = vunpack.c.l.b16 %v382
          %v511 = vunpack.c.h.b16 %v382
          %v512 = vunpack.c.l.b16 %v383
          %v513 = vunpack.c.h.b16 %v383
          %v514 = vunpack.c.l.b16 %v384
          %v515 = vunpack.c.h.b16 %v384
          %v516 = vunpack.c.l.b16 %v385
          %v517 = vunpack.c.h.b16 %v385
          %v518 = vunpack.c.l.b16 %v386
          %v519 = vunpack.c.h.b16 %v386
          %v520 = vunpack.c.l.b16 %v387
          %v521 = vunpack.c.h.b16 %v387
          %v522 = vunpack.c.l.b16 %v388
          %v523 = vunpack.c.h.b16 %v388
          %v524 = vunpack.c.l.b16 %v389
          %v525 = vunpack.c.h.b16 %v389
          %v526 = vunpack.c.l.b16 %v390
          %v527 = vunpack.c.h.b16 %v390
          %v528 = vunpack.c.l.b16 %v391
          %v529 = vunpack.c.h.b16 %v391
          %v530 = vunpack.c.l.b16 %v392
          %v531 = vunpack.c.h.b16 %v392
          %v532 = vunpack.c.l.b16 %v393
          %v533 = vunpack.c.h.b16 %v393
          %v534 = vunpack.c.l.b16 %v394
          %v535 = vunpack.c.h.b16 %v394
          %v536 = vunpack.c.l.b16 %v395
          %v537 = vunpack.c.h.b16 %v395
          %v538 = vunpack.c.l.b16 %v396
          %v539 = vunpack.c.h.b16 %v396
          %v540 = vunpack.c.l.b16 %v397
          %v541 = vunpack.c.h.b16 %v397
          %v542 = vunpack.c.l.b16 %v398
          %v543 = vunpack.c.h.b16 %v398
          %v544 = vunpack.c.l.b16 %v399
          %v545 = vunpack.c.h.b16 %v399
          %v546 = vunpack.c.l.b16 %v400
          %v547 = vunpack.c.h.b16 %v400
          %v548 = vunpack.c.l.b16 %v401
          %v549 = vunpack.c.h.b16 %v401
          %v550 = vunpack.c.l.b16 %v402
          %v551 = vunpack.c.h.b16 %v402
          %v552 = vunpack.c.l.b16 %v403
          %v553 = vunpack.c.h.b16 %v403
          %v554 = vunpack.c.l.b16 %v404
          %v555 = vunpack.c.h.b16 %v404
          %v556 = vunpack.c.l.b16 %v405
          %v557 = vunpack.c.h.b16 %v405
          %v558 = vunpack.c.l.b16 %v406
          %v559 = vunpack.c.h.b16 %v406
          %v560 = vunpack.c.l.b16 %v407
          %v561 = vunpack.c.h.b16 %v407
          %v562 = vunpack.c.l.b16 %v408
          %v563 = vunpack.c.h.b16 %v408
          %v564 = vunpack.c.l.b16 %v409
          %v565 = vunpack.c.h.b16 %v409
          %v566 = vunpack.c.l.b16 %v410
          %v567 = vunpack.c.h.b16 %v410
          %v568 = vunpack.c.l.b16 %v411
          %v569 = vunpack.c.h.b16 %v411
          %v570 = vunpack.c.l.b16 %v412
          %v571 = vunpack.c.h.b16 %v412
          %v572 = vunpack.c.l.b16 %v413
          %v573 = vunpack.c.h.b16 %v413
          %v574 = vpack.c.b16 %v514, %v510
          %v575 = vpack.c.b16 %v515, %v511
          %v576 = vpack.c.b16 %v516, %v512
          %v577 = vpack.c.b16 %v517, %v513
          %v578 = vpack.c.b16 %v522, %v518
          %v579 = vpack.c.b16 %v523, %v519
          %v580 = vpack.c.b16 %v524, %v520
          %v581 = vpack.c.b16 %v525, %v521
          %v582 = vpack.c.b16 %v530, %v526
          %v583 = vpack.c.b16 %v531, %v527
          %v584 = vpack.c.b16 %v532, %v528
          %v585 = vpack.c.b16 %v533, %v529
          %v586 = vpack.c.b16 %v538, %v534
          %v587 = vpack.c.b16 %v539, %v535
          %v588 = vpack.c.b16 %v540, %v536
          %v589 = vpack.c.b16 %v541, %v537
          %v590 = vpack.c.b16 %v546, %v542
          %v591 = vpack.c.b16 %v547, %v543
          %v592 = vpack.c.b16 %v548, %v544
          %v593 = vpack.c.b16 %v549, %v545
          %v594 = vpack.c.b16 %v554, %v550
          %v595 = vpack.c.b16 %v555, %v551
          %v596 = vpack.c.b16 %v556, %v552
          %v597 = vpack.c.b16 %v557, %v553
          %v598 = vpack.c.b16 %v562, %v558
          %v599 = vpack.c.b16 %v563, %v559
          %v600 = vpack.c.b16 %v564, %v560
          %v601 = vpack.c.b16 %v565, %v561
          %v602 = vpack.c.b16 %v570, %v566
          %v603 = vpack.c.b16 %v571, %v567
          %v604 = vpack.c.b16 %v572, %v568
          %v605 = vpack.c.b16 %v573, %v569
          %v702 = vunpack.c.l.b16 %v414
          %v703 = vunpack.c.l.b16 %v415
          %v704 = vunpack.c.l.b16 %v416
          %v705 = vunpack.c.l.b16 %v417
          %v706 = vunpack.c.l.b16 %v418
          %v707 = vunpack.c.l.b16 %v419
          %v708 = vunpack.c.l.b16 %v420
          %v709 = vunpack.c.l.b16 %v421
          %v710 = vunpack.c.l.b16 %v422
          %v711 = vunpack.c.l.b16 %v423
          %v712 = vunpack.c.l.b16 %v424
          %v713 = vunpack.c.l.b16 %v425
          %v714 = vunpack.c.l.b16 %v426
          %v715 = vunpack.c.l.b16 %v427
          %v716 = vunpack.c.l.b16 %v428
          %v717 = vunpack.c.l.b16 %v429
          %v718 = vunpack.c.l.b16 %v430
          %v719 = vunpack.c.l.b16 %v431
          %v720 = vunpack.c.l.b16 %v432
          %v721 = vunpack.c.l.b16 %v433
          %v722 = vunpack.c.l.b16 %v434
          %v723 = vunpack.c.l.b16 %v435
          %v724 = vunpack.c.l.b16 %v436
          %v725 = vunpack.c.l.b16 %v437
          %v726 = vunpack.c.l.b16 %v438
          %v727 = vunpack.c.l.b16 %v439
          %v728 = vunpack.c.l.b16 %v440
          %v729 = vunpack.c.l.b16 %v441
          %v730 = vunpack.c.l.b16 %v442
          %v731 = vunpack.c.l.b16 %v443
          %v732 = vunpack.c.l.b16 %v444
          %v733 = vunpack.c.l.b16 %v445
          %v734 = vunpack.c.l.b16 %v446
          %v735 = vunpack.c.l.b16 %v447
          %v736 = vunpack.c.l.b16 %v448
          %v737 = vunpack.c.l.b16 %v449
          %v738 = vunpack.c.l.b16 %v450
          %v739 = vunpack.c.l.b16 %v451
          %v740 = vunpack.c.l.b16 %v452
          %v741 = vunpack.c.l.b16 %v453
          %v742 = vunpack.c.l.b16 %v454
          %v743 = vunpack.c.l.b16 %v455
          %v744 = vunpack.c.l.b16 %v456
          %v745 = vunpack.c.l.b16 %v457
          %v746 = vunpack.c.l.b16 %v458
          %v747 = vunpack.c.l.b16 %v459
          %v748 = vunpack.c.l.b16 %v460
          %v749 = vunpack.c.l.b16 %v461
          %v750 = vunpack.c.l.b16 %v462
          %v751 = vunpack.c.l.b16 %v463
          %v752 = vunpack.c.l.b16 %v464
          %v753 = vunpack.c.l.b16 %v465
          %v754 = vunpack.c.l.b16 %v466
          %v755 = vunpack.c.l.b16 %v467
          %v756 = vunpack.c.l.b16 %v468
          %v757 = vunpack.c.l.b16 %v469
          %v758 = vunpack.c.l.b16 %v470
          %v759 = vunpack.c.l.b16 %v471
          %v760 = vunpack.c.l.b16 %v472
          %v761 = vunpack.c.l.b16 %v473
          %v762 = vunpack.c.l.b16 %v474
          %v763 = vunpack.c.l.b16 %v475
          %v764 = vunpack.c.l.b16 %v476
          %v765 = vunpack.c.l.b16 %v477
          %v766 = vpack.c.b16 %v703, %v702
          %v767 = vpack.c.b16 %v705, %v704
          %v768 = vpack.c.b16 %v707, %v706
          %v769 = vpack.c.b16 %v709, %v708
          %v770 = vpack.c.b16 %v711, %v710
          %v771 = vpack.c.b16 %v713, %v712
          %v772 = vpack.c.b16 %v715, %v714
          %v773 = vpack.c.b16 %v717, %v716
          %v774 = vpack.c.b16 %v719, %v718
          %v775 = vpack.c.b16 %v721, %v720
          %v776 = vpack.c.b16 %v723, %v722
          %v777 = vpack.c.b16 %v725, %v724
          %v778 = vpack.c.b16 %v727, %v726
          %v779 = vpack.c.b16 %v729, %v728
          %v780 = vpack.c.b16 %v731, %v730
          %v781 = vpack.c.b16 %v733, %v732
          %v782 = vpack.c.b16 %v735, %v734
          %v783 = vpack.c.b16 %v737, %v736
          %v784 = vpack.c.b16 %v739, %v738
          %v785 = vpack.c.b16 %v741, %v740
          %v786 = vpack.c.b16 %v743, %v742
          %v787 = vpack.c.b16 %v745, %v744
          %v788 = vpack.c.b16 %v747, %v746
          %v789 = vpack.c.b16 %v749, %v748
          %v790 = vpack.c.b16 %v751, %v750
          %v791 = vpack.c.b16 %v753, %v752
          %v792 = vpack.c.b16 %v755, %v754
          %v793 = vpack.c.b16 %v757, %v756
          %v794 = vpack.c.b16 %v759, %v758
          %v795 = vpack.c.b16 %v761, %v760
          %v796 = vpack.c.b16 %v763, %v762
          %v797 = vpack.c.b16 %v765, %v764
          %830 = vmatpush.bf16.msra.mxu0 %v773
          %831 = vmatpush.bf16.msra.mxu0 %v772
          %832 = vmatpush.bf16.msra.mxu0 %v771
          %833 = vmatpush.bf16.msra.mxu0 %v770
          %834 = vmatpush.bf16.msra.mxu0 %v769
          %835 = vmatpush.bf16.msra.mxu0 %v768
          %836 = vmatpush.bf16.msra.mxu0 %v767
          %837 = vmatpush.bf16.msra.mxu0 %v766
          %838 = vmatmul.bf16.gmra.mxu0 %v574
          %v839 = vpop.f32.mrf.mxu0
          %v840 = vadd.f32 0.0, %v839
          %v841 = vpop.f32.mrf.mxu0
          %v842 = vadd.f32 0.0, %v841
          %843 = vmatmul.bf16.gmra.mxu0 %v578
          %v844 = vpop.f32.mrf.mxu0
          %v845 = vadd.f32 0.0, %v844
          %v846 = vpop.f32.mrf.mxu0
          %v847 = vadd.f32 0.0, %v846
          %848 = vmatmul.bf16.gmra.mxu0 %v582
          %v849 = vpop.f32.mrf.mxu0
          %v850 = vadd.f32 0.0, %v849
          %v851 = vpop.f32.mrf.mxu0
          %v852 = vadd.f32 0.0, %v851
          %853 = vmatmul.bf16.gmra.mxu0 %v586
          %v854 = vpop.f32.mrf.mxu0
          %v855 = vadd.f32 0.0, %v854
          %v856 = vpop.f32.mrf.mxu0
          %v857 = vadd.f32 0.0, %v856
          %858 = vmatmul.bf16.gmra.mxu0 %v590
          %v859 = vpop.f32.mrf.mxu0
          %v860 = vadd.f32 0.0, %v859
          %v861 = vpop.f32.mrf.mxu0
          %v862 = vadd.f32 0.0, %v861
          %863 = vmatmul.bf16.gmra.mxu0 %v594
          %v864 = vpop.f32.mrf.mxu0
          %v865 = vadd.f32 0.0, %v864
          %v866 = vpop.f32.mrf.mxu0
          %v867 = vadd.f32 0.0, %v866
          %868 = vmatmul.bf16.gmra.mxu0 %v598
          %v869 = vpop.f32.mrf.mxu0
          %v870 = vadd.f32 0.0, %v869
          %v871 = vpop.f32.mrf.mxu0
          %v872 = vadd.f32 0.0, %v871
          %873 = vmatmul.bf16.gmra.mxu0 %v602
          %v874 = vpop.f32.mrf.mxu0
          %v875 = vadd.f32 0.0, %v874
          %v876 = vpop.f32.mrf.mxu0
          %v877 = vadd.f32 0.0, %v876
          %878 = vdwg.mxu0
          %879 = vmatpush.bf16.msra.mxu0 %v781
          %880 = vmatpush.bf16.msra.mxu0 %v780
          %881 = vmatpush.bf16.msra.mxu0 %v779
          %882 = vmatpush.bf16.msra.mxu0 %v778
          %883 = vmatpush.bf16.msra.mxu0 %v777
          %884 = vmatpush.bf16.msra.mxu0 %v776
          %885 = vmatpush.bf16.msra.mxu0 %v775
          %886 = vmatpush.bf16.msra.mxu0 %v774
          %887 = vmatmul.bf16.gmra.mxu0 %v575
          %v888 = vpop.f32.mrf.mxu0
          %v889 = vadd.f32 %v840, %v888
          %v890 = vpop.f32.mrf.mxu0
          %v891 = vadd.f32 %v842, %v890
          %892 = vmatmul.bf16.gmra.mxu0 %v579
          %v893 = vpop.f32.mrf.mxu0
          %v894 = vadd.f32 %v845, %v893
          %v895 = vpop.f32.mrf.mxu0
          %v896 = vadd.f32 %v847, %v895
          %897 = vmatmul.bf16.gmra.mxu0 %v583
          %v898 = vpop.f32.mrf.mxu0
          %v899 = vadd.f32 %v850, %v898
          %v900 = vpop.f32.mrf.mxu0
          %v901 = vadd.f32 %v852, %v900
          %902 = vmatmul.bf16.gmra.mxu0 %v587
          %v903 = vpop.f32.mrf.mxu0
          %v904 = vadd.f32 %v855, %v903
          %v905 = vpop.f32.mrf.mxu0
          %v906 = vadd.f32 %v857, %v905
          %907 = vmatmul.bf16.gmra.mxu0 %v591
          %v908 = vpop.f32.mrf.mxu0
          %v909 = vadd.f32 %v860, %v908
          %v910 = vpop.f32.mrf.mxu0
          %v911 = vadd.f32 %v862, %v910
          %912 = vmatmul.bf16.gmra.mxu0 %v595
          %v913 = vpop.f32.mrf.mxu0
          %v914 = vadd.f32 %v865, %v913
          %v915 = vpop.f32.mrf.mxu0
          %v916 = vadd.f32 %v867, %v915
          %917 = vmatmul.bf16.gmra.mxu0 %v599
          %v918 = vpop.f32.mrf.mxu0
          %v919 = vadd.f32 %v870, %v918
          %v920 = vpop.f32.mrf.mxu0
          %v921 = vadd.f32 %v872, %v920
          %922 = vmatmul.bf16.gmra.mxu0 %v603
          %v923 = vpop.f32.mrf.mxu0
          %v924 = vadd.f32 %v875, %v923
          %v925 = vpop.f32.mrf.mxu0
          %v926 = vadd.f32 %v877, %v925
          %927 = vdwg.mxu0
          %928 = vmatpush.bf16.msra.mxu0 %v789
          %929 = vmatpush.bf16.msra.mxu0 %v788
          %930 = vmatpush.bf16.msra.mxu0 %v787
          %931 = vmatpush.bf16.msra.mxu0 %v786
          %932 = vmatpush.bf16.msra.mxu0 %v785
          %933 = vmatpush.bf16.msra.mxu0 %v784
          %934 = vmatpush.bf16.msra.mxu0 %v783
          %935 = vmatpush.bf16.msra.mxu0 %v782
          %936 = vmatmul.bf16.gmra.mxu0 %v576
          %v937 = vpop.f32.mrf.mxu0
          %v938 = vadd.f32 %v889, %v937
          %v939 = vpop.f32.mrf.mxu0
          %v940 = vadd.f32 %v891, %v939
          %941 = vmatmul.bf16.gmra.mxu0 %v580
          %v942 = vpop.f32.mrf.mxu0
          %v943 = vadd.f32 %v894, %v942
          %v944 = vpop.f32.mrf.mxu0
          %v945 = vadd.f32 %v896, %v944
          %946 = vmatmul.bf16.gmra.mxu0 %v584
          %v947 = vpop.f32.mrf.mxu0
          %v948 = vadd.f32 %v899, %v947
          %v949 = vpop.f32.mrf.mxu0
          %v950 = vadd.f32 %v901, %v949
          %951 = vmatmul.bf16.gmra.mxu0 %v588
          %v952 = vpop.f32.mrf.mxu0
          %v953 = vadd.f32 %v904, %v952
          %v954 = vpop.f32.mrf.mxu0
          %v955 = vadd.f32 %v906, %v954
          %956 = vmatmul.bf16.gmra.mxu0 %v592
          %v957 = vpop.f32.mrf.mxu0
          %v958 = vadd.f32 %v909, %v957
          %v959 = vpop.f32.mrf.mxu0
          %v960 = vadd.f32 %v911, %v959
          %961 = vmatmul.bf16.gmra.mxu0 %v596
          %v962 = vpop.f32.mrf.mxu0
          %v963 = vadd.f32 %v914, %v962
          %v964 = vpop.f32.mrf.mxu0
          %v965 = vadd.f32 %v916, %v964
          %966 = vmatmul.bf16.gmra.mxu0 %v600
          %v967 = vpop.f32.mrf.mxu0
          %v968 = vadd.f32 %v919, %v967
          %v969 = vpop.f32.mrf.mxu0
          %v970 = vadd.f32 %v921, %v969
          %971 = vmatmul.bf16.gmra.mxu0 %v604
          %v972 = vpop.f32.mrf.mxu0
          %v973 = vadd.f32 %v924, %v972
          %v974 = vpop.f32.mrf.mxu0
          %v975 = vadd.f32 %v926, %v974
          %976 = vdwg.mxu0
          %977 = vmatpush.bf16.msra.mxu0 %v797
          %978 = vmatpush.bf16.msra.mxu0 %v796
          %979 = vmatpush.bf16.msra.mxu0 %v795
          %980 = vmatpush.bf16.msra.mxu0 %v794
          %981 = vmatpush.bf16.msra.mxu0 %v793
          %982 = vmatpush.bf16.msra.mxu0 %v792
          %983 = vmatpush.bf16.msra.mxu0 %v791
          %984 = vmatpush.bf16.msra.mxu0 %v790
          %985 = vmatmul.bf16.gmra.mxu0 %v577
          %v986 = vpop.f32.mrf.mxu0
          %v987 = vadd.f32 %v938, %v986
          %v988 = vpop.f32.mrf.mxu0
          %v989 = vadd.f32 %v940, %v988
          %990 = vmatmul.bf16.gmra.mxu0 %v581
          %v991 = vpop.f32.mrf.mxu0
          %v992 = vadd.f32 %v943, %v991
          %v993 = vpop.f32.mrf.mxu0
          %v994 = vadd.f32 %v945, %v993
          %995 = vmatmul.bf16.gmra.mxu0 %v585
          %v996 = vpop.f32.mrf.mxu0
          %v997 = vadd.f32 %v948, %v996
          %v998 = vpop.f32.mrf.mxu0
          %v999 = vadd.f32 %v950, %v998
          %1000 = vmatmul.bf16.gmra.mxu0 %v589
          %v1001 = vpop.f32.mrf.mxu0
          %v1002 = vadd.f32 %v953, %v1001
          %v1003 = vpop.f32.mrf.mxu0
          %v1004 = vadd.f32 %v955, %v1003
          %1005 = vmatmul.bf16.gmra.mxu0 %v593
          %v1006 = vpop.f32.mrf.mxu0
          %v1007 = vadd.f32 %v958, %v1006
          %v1008 = vpop.f32.mrf.mxu0
          %v1009 = vadd.f32 %v960, %v1008
          %1010 = vmatmul.bf16.gmra.mxu0 %v597
          %v1011 = vpop.f32.mrf.mxu0
          %v1012 = vadd.f32 %v963, %v1011
          %v1013 = vpop.f32.mrf.mxu0
          %v1014 = vadd.f32 %v965, %v1013
          %1015 = vmatmul.bf16.gmra.mxu0 %v601
          %v1016 = vpop.f32.mrf.mxu0
          %v1017 = vadd.f32 %v968, %v1016
          %v1018 = vpop.f32.mrf.mxu0
          %v1019 = vadd.f32 %v970, %v1018
          %1020 = vmatmul.bf16.gmra.mxu0 %v605
          %v1021 = vpop.f32.mrf.mxu0
          %v1022 = vadd.f32 %v973, %v1021
          %v1023 = vpop.f32.mrf.mxu0
          %v1024 = vadd.f32 %v975, %v1023
          %1025 = vdwg.mxu0
          %v1026 = vmax.f32 %v987, %v992
          %v1027 = vmax.f32 %v989, %v994
          %v1028 = vmax.f32 %v997, %v1002
          %v1029 = vmax.f32 %v999, %v1004
          %v1030 = vmax.f32 %v1026, %v1028
          %v1031 = vmax.f32 %v1027, %v1029
          %v1032 = vld [vmem:[%s2] sm:$0x1]
          %v1034 = vperm.slane %v1032, 0
          %v1036 = vadd.f32 %v1030, %v1034
          %v1037 = vadd.f32 %v1031, %v1034
          %v1038 = vmax.f32 %v1036, 0.0
          %v1039 = vmax.f32 %v1037, 0.0
          %v1040 = vpack.c.bf16 %v1038, %v1038
          %v1041 = vpack.c.bf16 %v1039, %v1039
          %vm1042 = vcmask 1040384
          %vm1043 = vsmask.f32 256
          %vm1044 = vmand %vm1042, %vm1043
          %v1045 = vld [vmem:[#allocation2] sm:$0x1]
          %v1046 = vsel %vm1044, %v1040, %v1045
          %1047 = vst [vmem:[#allocation2] sm:$0x1] %v1046
          %v1049 = vrot.slane %v1040, 3
          %vm1050 = vcmask 1040384
          %v1053 = vsel %vm1050, %v1040, %v1049
          %v1054 = vshrl.u32 %v1053, 16
          %v1056 = vrot.slane %v1054, 7
          %v1057 = vrot.slane %v1056, 1
          %v1059 = vld [vmem:[#allocation2 + $0x1] sm:$0x1]
          %v1060 = vsel %vm1044, %v1057, %v1059
          %1061 = vst [vmem:[#allocation2 + $0x1] sm:$0x1] %v1060
          %1062 = vst [vmem:[#allocation1] sm:$0xff] %v1040
          %s1063 = scalar_lea.vmem [#allocation1], 1
          %v1064 = vld [vmem:[%s1063] ss:$4 sm:$0xff]
          %v1066 = vld [vmem:[#allocation2 + $0x2] sm:$0x1]
          %v1067 = vsel %vm1044, %v1064, %v1066
          %1068 = vst [vmem:[#allocation2 + $0x2] sm:$0x1] %v1067
          %1069 = vst [vmem:[#allocation1] sm:$0xff] %v1040
          %s1070 = scalar_lea.vmem [#allocation1], 1
          %v1071 = vld [vmem:[%s1070] ss:$4 sm:$0xff]
          %v1072 = vshrl.u32 %v1071, 16
          %v1074 = vrot.slane %v1072, 7
          %v1075 = vrot.slane %v1074, 1
          %v1077 = vld [vmem:[#allocation2 + $0x3] sm:$0x1]
          %v1078 = vsel %vm1044, %v1075, %v1077
          %1079 = vst [vmem:[#allocation2 + $0x3] sm:$0x1] %v1078
          %1080 = vst [vmem:[#allocation1] sm:$0xff] %v1040
          %s1081 = scalar_lea.vmem [#allocation1], 2
          %v1082 = vld [vmem:[%s1081] ss:$4 sm:$0xff]
          %s1084 = scalar_lea.vmem [#allocation2], 4
          %v1085 = vld [vmem:[%s1084] sm:$0x1]
          %v1086 = vsel %vm1044, %v1082, %v1085
          %1087 = vst [vmem:[%s1084] sm:$0x1] %v1086
          %1088 = vst [vmem:[#allocation1] sm:$0xff] %v1040
          %s1089 = scalar_lea.vmem [#allocation1], 2
          %v1090 = vld [vmem:[%s1089] ss:$4 sm:$0xff]
          %v1091 = vshrl.u32 %v1090, 16
          %v1093 = vrot.slane %v1091, 7
          %v1094 = vrot.slane %v1093, 1
          %v1096 = vld [vmem:[%s1084 + $0x1] sm:$0x1]
          %v1097 = vsel %vm1044, %v1094, %v1096
          %1098 = vst [vmem:[%s1084 + $0x1] sm:$0x1] %v1097
          %1099 = vst [vmem:[#allocation1] sm:$0xff] %v1040
          %s1100 = scalar_lea.vmem [#allocation1], 3
          %v1101 = vld [vmem:[%s1100] ss:$4 sm:$0xff]
          %v1103 = vld [vmem:[%s1084 + $0x2] sm:$0x1]
          %v1104 = vsel %vm1044, %v1101, %v1103
          %1105 = vst [vmem:[%s1084 + $0x2] sm:$0x1] %v1104
          %1106 = vst [vmem:[#allocation1] sm:$0xff] %v1040
          %s1107 = scalar_lea.vmem [#allocation1], 3
          %v1108 = vld [vmem:[%s1107] ss:$4 sm:$0xff]
          %v1109 = vshrl.u32 %v1108, 16
          %v1111 = vrot.slane %v1109, 7
          %v1112 = vrot.slane %v1111, 1
          %v1114 = vld [vmem:[%s1084 + $0x3] sm:$0x1]
          %v1115 = vsel %vm1044, %v1112, %v1114
          %1116 = vst [vmem:[%s1084 + $0x3] sm:$0x1] %v1115
          %s1117 = scalar_lea.vmem [#allocation2], 8
          %v1118 = vld [vmem:[%s1117] sm:$0x1]
          %v1119 = vsel %vm1044, %v1041, %v1118
          %1120 = vst [vmem:[%s1117] sm:$0x1] %v1119
          %v1122 = vrot.slane %v1041, 3
          %v1125 = vsel %vm1050, %v1041, %v1122
          %v1126 = vshrl.u32 %v1125, 16
          %v1128 = vrot.slane %v1126, 7
          %v1129 = vrot.slane %v1128, 1
          %v1131 = vld [vmem:[%s1117 + $0x1] sm:$0x1]
          %v1132 = vsel %vm1044, %v1129, %v1131
          %1133 = vst [vmem:[%s1117 + $0x1] sm:$0x1] %v1132
          %1134 = vst [vmem:[#allocation1] sm:$0xff] %v1041
          %s1135 = scalar_lea.vmem [#allocation1], 1
          %v1136 = vld [vmem:[%s1135] ss:$4 sm:$0xff]
          %v1138 = vld [vmem:[%s1117 + $0x2] sm:$0x1]
          %v1139 = vsel %vm1044, %v1136, %v1138
          %1140 = vst [vmem:[%s1117 + $0x2] sm:$0x1] %v1139
          %1141 = vst [vmem:[#allocation1] sm:$0xff] %v1041
          %s1142 = scalar_lea.vmem [#allocation1], 1
          %v1143 = vld [vmem:[%s1142] ss:$4 sm:$0xff]
          %v1144 = vshrl.u32 %v1143, 16
          %v1146 = vrot.slane %v1144, 7
          %v1147 = vrot.slane %v1146, 1
          %v1149 = vld [vmem:[%s1117 + $0x3] sm:$0x1]
          %v1150 = vsel %vm1044, %v1147, %v1149
          %1151 = vst [vmem:[%s1117 + $0x3] sm:$0x1] %v1150
          %1152 = vst [vmem:[#allocation1] sm:$0xff] %v1041
          %s1153 = scalar_lea.vmem [#allocation1], 2
          %v1154 = vld [vmem:[%s1153] ss:$4 sm:$0xff]
          %s1156 = scalar_lea.vmem [#allocation2], 12
          %v1157 = vld [vmem:[%s1156] sm:$0x1]
          %v1158 = vsel %vm1044, %v1154, %v1157
          %1159 = vst [vmem:[%s1156] sm:$0x1] %v1158
          %1160 = vst [vmem:[#allocation1] sm:$0xff] %v1041
          %s1161 = scalar_lea.vmem [#allocation1], 2
          %v1162 = vld [vmem:[%s1161] ss:$4 sm:$0xff]
          %v1163 = vshrl.u32 %v1162, 16
          %v1165 = vrot.slane %v1163, 7
          %v1166 = vrot.slane %v1165, 1
          %v1168 = vld [vmem:[%s1156 + $0x1] sm:$0x1]
          %v1169 = vsel %vm1044, %v1166, %v1168
          %1170 = vst [vmem:[%s1156 + $0x1] sm:$0x1] %v1169
          %1171 = vst [vmem:[#allocation1] sm:$0xff] %v1041
          %s1172 = scalar_lea.vmem [#allocation1], 3
          %v1173 = vld [vmem:[%s1172] ss:$4 sm:$0xff]
          %v1175 = vld [vmem:[%s1156 + $0x2] sm:$0x1]
          %v1176 = vsel %vm1044, %v1173, %v1175
          %1177 = vst [vmem:[%s1156 + $0x2] sm:$0x1] %v1176
          %1178 = vst [vmem:[#allocation1] sm:$0xff] %v1041
          %s1179 = scalar_lea.vmem [#allocation1], 3
          %v1180 = vld [vmem:[%s1179] ss:$4 sm:$0xff]
          %v1181 = vshrl.u32 %v1180, 16
          %v1183 = vrot.slane %v1181, 7
          %v1184 = vrot.slane %v1183, 1
          %v1186 = vld [vmem:[%s1156 + $0x3] sm:$0x1]
          %v1187 = vsel %vm1044, %v1184, %v1186
          %1188 = vst [vmem:[%s1156 + $0x3] sm:$0x1] %v1187
          %v1189 = vmax.f32 %v1007, %v1012
          %v1190 = vmax.f32 %v1009, %v1014
          %v1191 = vmax.f32 %v1017, %v1022
          %v1192 = vmax.f32 %v1019, %v1024
          %v1193 = vmax.f32 %v1189, %v1191
          %v1194 = vmax.f32 %v1190, %v1192
          %v1195 = vld [vmem:[%s2] sm:$0x1]
          %v1197 = vperm.slane %v1195, 0
          %v1199 = vadd.f32 %v1193, %v1197
          %v1200 = vadd.f32 %v1194, %v1197
          %v1201 = vmax.f32 %v1199, 0.0
          %v1202 = vmax.f32 %v1200, 0.0
          %v1203 = vpack.c.bf16 %v1201, %v1201
          %v1204 = vpack.c.bf16 %v1202, %v1202
          %v1206 = vrot.slane %v1203, 3
          %v1209 = vsel %vm1050, %v1203, %v1206
          %v1210 = vshll.u32 %v1209, 16
          %vm1213 = vsmask.f32 7938
          %vm1214 = vmand %vm1042, %vm1213
          %v1215 = vld [vmem:[#allocation2] sm:$0x1]
          %v1216 = vsel %vm1214, %v1210, %v1215
          %1217 = vst [vmem:[#allocation2] sm:$0x1] %v1216
          %v1218 = vld [vmem:[#allocation2 + $0x1] sm:$0x1]
          %v1219 = vsel %vm1214, %v1203, %v1218
          %1220 = vst [vmem:[#allocation2 + $0x1] sm:$0x1] %v1219
          %1221 = vst [vmem:[#allocation1] sm:$0xff] %v1203
          %s1222 = scalar_lea.vmem [#allocation1], 1
          %v1223 = vld [vmem:[%s1222] ss:$4 sm:$0xff]
          %v1224 = vshll.u32 %v1223, 16
          %v1227 = vld [vmem:[#allocation2 + $0x2] sm:$0x1]
          %v1228 = vsel %vm1214, %v1224, %v1227
          %1229 = vst [vmem:[#allocation2 + $0x2] sm:$0x1] %v1228
          %1230 = vst [vmem:[#allocation1] sm:$0xff] %v1203
          %s1231 = scalar_lea.vmem [#allocation1], 1
          %v1232 = vld [vmem:[%s1231] ss:$4 sm:$0xff]
          %v1234 = vld [vmem:[#allocation2 + $0x3] sm:$0x1]
          %v1235 = vsel %vm1214, %v1232, %v1234
          %1236 = vst [vmem:[#allocation2 + $0x3] sm:$0x1] %v1235
          %1237 = vst [vmem:[#allocation1] sm:$0xff] %v1203
          %s1238 = scalar_lea.vmem [#allocation1], 2
          %v1239 = vld [vmem:[%s1238] ss:$4 sm:$0xff]
          %v1240 = vshll.u32 %v1239, 16
          %v1243 = vld [vmem:[%s1084] sm:$0x1]
          %v1244 = vsel %vm1214, %v1240, %v1243
          %1245 = vst [vmem:[%s1084] sm:$0x1] %v1244
          %1246 = vst [vmem:[#allocation1] sm:$0xff] %v1203
          %s1247 = scalar_lea.vmem [#allocation1], 2
          %v1248 = vld [vmem:[%s1247] ss:$4 sm:$0xff]
          %v1250 = vld [vmem:[%s1084 + $0x1] sm:$0x1]
          %v1251 = vsel %vm1214, %v1248, %v1250
          %1252 = vst [vmem:[%s1084 + $0x1] sm:$0x1] %v1251
          %1253 = vst [vmem:[#allocation1] sm:$0xff] %v1203
          %s1254 = scalar_lea.vmem [#allocation1], 3
          %v1255 = vld [vmem:[%s1254] ss:$4 sm:$0xff]
          %v1256 = vshll.u32 %v1255, 16
          %v1259 = vld [vmem:[%s1084 + $0x2] sm:$0x1]
          %v1260 = vsel %vm1214, %v1256, %v1259
          %1261 = vst [vmem:[%s1084 + $0x2] sm:$0x1] %v1260
          %1262 = vst [vmem:[#allocation1] sm:$0xff] %v1203
          %s1263 = scalar_lea.vmem [#allocation1], 3
          %v1264 = vld [vmem:[%s1263] ss:$4 sm:$0xff]
          %v1266 = vld [vmem:[%s1084 + $0x3] sm:$0x1]
          %v1267 = vsel %vm1214, %v1264, %v1266
          %1268 = vst [vmem:[%s1084 + $0x3] sm:$0x1] %v1267
          %v1270 = vrot.slane %v1204, 3
          %v1273 = vsel %vm1050, %v1204, %v1270
          %v1274 = vshll.u32 %v1273, 16
          %v1277 = vld [vmem:[%s1117] sm:$0x1]
          %v1278 = vsel %vm1214, %v1274, %v1277
          %1279 = vst [vmem:[%s1117] sm:$0x1] %v1278
          %v1280 = vld [vmem:[%s1117 + $0x1] sm:$0x1]
          %v1281 = vsel %vm1214, %v1204, %v1280
          %1282 = vst [vmem:[%s1117 + $0x1] sm:$0x1] %v1281
          %1283 = vst [vmem:[#allocation1] sm:$0xff] %v1204
          %s1284 = scalar_lea.vmem [#allocation1], 1
          %v1285 = vld [vmem:[%s1284] ss:$4 sm:$0xff]
          %v1286 = vshll.u32 %v1285, 16
          %v1289 = vld [vmem:[%s1117 + $0x2] sm:$0x1]
          %v1290 = vsel %vm1214, %v1286, %v1289
          %1291 = vst [vmem:[%s1117 + $0x2] sm:$0x1] %v1290
          %1292 = vst [vmem:[#allocation1] sm:$0xff] %v1204
          %s1293 = scalar_lea.vmem [#allocation1], 1
          %v1294 = vld [vmem:[%s1293] ss:$4 sm:$0xff]
          %v1296 = vld [vmem:[%s1117 + $0x3] sm:$0x1]
          %v1297 = vsel %vm1214, %v1294, %v1296
          %1298 = vst [vmem:[%s1117 + $0x3] sm:$0x1] %v1297
          %1299 = vst [vmem:[#allocation1] sm:$0xff] %v1204
          %s1300 = scalar_lea.vmem [#allocation1], 2
          %v1301 = vld [vmem:[%s1300] ss:$4 sm:$0xff]
          %v1302 = vshll.u32 %v1301, 16
          %v1305 = vld [vmem:[%s1156] sm:$0x1]
          %v1306 = vsel %vm1214, %v1302, %v1305
          %1307 = vst [vmem:[%s1156] sm:$0x1] %v1306
          %1308 = vst [vmem:[#allocation1] sm:$0xff] %v1204
          %s1309 = scalar_lea.vmem [#allocation1], 2
          %v1310 = vld [vmem:[%s1309] ss:$4 sm:$0xff]
          %v1312 = vld [vmem:[%s1156 + $0x1] sm:$0x1]
          %v1313 = vsel %vm1214, %v1310, %v1312
          %1314 = vst [vmem:[%s1156 + $0x1] sm:$0x1] %v1313
          %1315 = vst [vmem:[#allocation1] sm:$0xff] %v1204
          %s1316 = scalar_lea.vmem [#allocation1], 3
          %v1317 = vld [vmem:[%s1316] ss:$4 sm:$0xff]
          %v1318 = vshll.u32 %v1317, 16
          %v1321 = vld [vmem:[%s1156 + $0x2] sm:$0x1]
          %v1322 = vsel %vm1214, %v1318, %v1321
          %1323 = vst [vmem:[%s1156 + $0x2] sm:$0x1] %v1322
          %1324 = vst [vmem:[#allocation1] sm:$0xff] %v1204
          %s1325 = scalar_lea.vmem [#allocation1], 3
          %v1326 = vld [vmem:[%s1325] ss:$4 sm:$0xff]
          %v1328 = vld [vmem:[%s1156 + $0x3] sm:$0x1]
          %v1329 = vsel %vm1214, %v1326, %v1328
          %1330 = vst [vmem:[%s1156 + $0x3] sm:$0x1] %v1329
          %1331 = vst [vmem:[#allocation3] sm:$0xff] 0.0
        $region68: #{net_forward.1} parent=63 // pred_fallthru
          _
        %v1332 = vld [vmem:[#allocation3] sm:$0xff]
        %s1333 = smul.u32 %s23, 4
        %s1334 = scalar_lea.vmem [#allocation2], %s1333
        %v1335 = vld [vmem:[%s1334] sm:$0xf]
        %v1336 = vld [vmem:[%s376] sm:$0xff]
        %v1337 = vld [vmem:[%s376 + $0x8] sm:$0xff]
        %v1338 = vld [vmem:[%s376 + $0x10] sm:$0xff]
        %v1339 = vld [vmem:[%s376 + $0x18] sm:$0xff]
        %v1340 = vld [vmem:[%s376 + $0x20] sm:$0xff]
        %v1341 = vld [vmem:[%s376 + $0x28] sm:$0xff]
        %v1342 = vld [vmem:[%s376 + $0x30] sm:$0xff]
        %v1343 = vld [vmem:[%s376 + $0x38] sm:$0xff]
        %v1344 = vld [vmem:[%s376 + $0x40] sm:$0xff]
        %v1345 = vld [vmem:[%s376 + $0x48] sm:$0xff]
        %v1346 = vld [vmem:[%s376 + $0x50] sm:$0xff]
        %v1347 = vld [vmem:[%s376 + $0x58] sm:$0xff]
        %v1348 = vld [vmem:[%s376 + $0x60] sm:$0xff]
        %v1349 = vld [vmem:[%s376 + $0x68] sm:$0xff]
        %v1350 = vld [vmem:[%s376 + $0x70] sm:$0xff]
        %v1351 = vld [vmem:[%s376 + $0x78] sm:$0xff]
        %v1352 = vld [vmem:[%s376 + $0x80] sm:$0xff]
        %v1353 = vld [vmem:[%s376 + $0x88] sm:$0xff]
        %v1354 = vld [vmem:[%s376 + $0x90] sm:$0xff]
        %v1355 = vld [vmem:[%s376 + $0x98] sm:$0xff]
        %v1356 = vld [vmem:[%s376 + $0xa0] sm:$0xff]
        %v1357 = vld [vmem:[%s376 + $0xa8] sm:$0xff]
        %v1358 = vld [vmem:[%s376 + $0xb0] sm:$0xff]
        %v1359 = vld [vmem:[%s376 + $0xb8] sm:$0xff]
        %v1360 = vld [vmem:[%s376 + $0xc0] sm:$0xff]
        %v1361 = vld [vmem:[%s376 + $0xc8] sm:$0xff]
        %v1362 = vld [vmem:[%s376 + $0xd0] sm:$0xff]
        %v1363 = vld [vmem:[%s376 + $0xd8] sm:$0xff]
        %v1364 = vld [vmem:[%s376 + $0xe0] sm:$0xff]
        %v1365 = vld [vmem:[%s376 + $0xe8] sm:$0xff]
        %v1366 = vld [vmem:[%s376 + $0xf0] sm:$0xff]
        %v1367 = vld [vmem:[%s376 + $0xf8] sm:$0xff]
        %v1368 = vld [vmem:[%s376 + $0x100] sm:$0xff]
        %v1369 = vld [vmem:[%s376 + $0x108] sm:$0xff]
        %v1370 = vld [vmem:[%s376 + $0x110] sm:$0xff]
        %v1371 = vld [vmem:[%s376 + $0x118] sm:$0xff]
        %v1372 = vld [vmem:[%s376 + $0x120] sm:$0xff]
        %v1373 = vld [vmem:[%s376 + $0x128] sm:$0xff]
        %v1374 = vld [vmem:[%s376 + $0x130] sm:$0xff]
        %v1375 = vld [vmem:[%s376 + $0x138] sm:$0xff]
        %v1376 = vld [vmem:[%s376 + $0x140] sm:$0xff]
        %v1377 = vld [vmem:[%s376 + $0x148] sm:$0xff]
        %v1378 = vld [vmem:[%s376 + $0x150] sm:$0xff]
        %v1379 = vld [vmem:[%s376 + $0x158] sm:$0xff]
        %v1380 = vld [vmem:[%s376 + $0x160] sm:$0xff]
        %v1381 = vld [vmem:[%s376 + $0x168] sm:$0xff]
        %v1382 = vld [vmem:[%s376 + $0x170] sm:$0xff]
        %v1383 = vld [vmem:[%s376 + $0x178] sm:$0xff]
        %v1384 = vld [vmem:[%s376 + $0x180] sm:$0xff]
        %v1385 = vld [vmem:[%s376 + $0x188] sm:$0xff]
        %v1386 = vld [vmem:[%s376 + $0x190] sm:$0xff]
        %v1387 = vld [vmem:[%s376 + $0x198] sm:$0xff]
        %v1388 = vld [vmem:[%s376 + $0x1a0] sm:$0xff]
        %v1389 = vld [vmem:[%s376 + $0x1a8] sm:$0xff]
        %v1390 = vld [vmem:[%s376 + $0x1b0] sm:$0xff]
        %v1391 = vld [vmem:[%s376 + $0x1b8] sm:$0xff]
        %v1392 = vld [vmem:[%s376 + $0x1c0] sm:$0xff]
        %v1393 = vld [vmem:[%s376 + $0x1c8] sm:$0xff]
        %v1394 = vld [vmem:[%s376 + $0x1d0] sm:$0xff]
        %v1395 = vld [vmem:[%s376 + $0x1d8] sm:$0xff]
        %v1396 = vld [vmem:[%s376 + $0x1e0] sm:$0xff]
        %v1397 = vld [vmem:[%s376 + $0x1e8] sm:$0xff]
        %v1398 = vld [vmem:[%s376 + $0x1f0] sm:$0xff]
        %v1399 = vld [vmem:[%s376 + $0x1f8] sm:$0xff]
        %v1400 = vld [vmem:[%s376 + $0x200] sm:$0xff]
        %v1401 = vld [vmem:[%s376 + $0x208] sm:$0xff]
        %v1402 = vld [vmem:[%s376 + $0x210] sm:$0xff]
        %v1403 = vld [vmem:[%s376 + $0x218] sm:$0xff]
        %v1404 = vld [vmem:[%s376 + $0x220] sm:$0xff]
        %v1405 = vld [vmem:[%s376 + $0x228] sm:$0xff]
        %v1406 = vld [vmem:[%s376 + $0x230] sm:$0xff]
        %v1407 = vld [vmem:[%s376 + $0x238] sm:$0xff]
        %v1408 = vld [vmem:[%s376 + $0x240] sm:$0xff]
        %v1409 = vld [vmem:[%s376 + $0x248] sm:$0xff]
        %v1410 = vld [vmem:[%s376 + $0x250] sm:$0xff]
        %v1411 = vld [vmem:[%s376 + $0x258] sm:$0xff]
        %v1412 = vld [vmem:[%s376 + $0x260] sm:$0xff]
        %v1413 = vld [vmem:[%s376 + $0x268] sm:$0xff]
        %v1414 = vld [vmem:[%s376 + $0x270] sm:$0xff]
        %v1415 = vld [vmem:[%s376 + $0x278] sm:$0xff]
        %v1416 = vld [vmem:[%s376 + $0x280] sm:$0xff]
        %v1417 = vld [vmem:[%s376 + $0x288] sm:$0xff]
        %v1418 = vld [vmem:[%s376 + $0x290] sm:$0xff]
        %v1419 = vld [vmem:[%s376 + $0x298] sm:$0xff]
        %v1420 = vld [vmem:[%s376 + $0x2a0] sm:$0xff]
        %v1421 = vld [vmem:[%s376 + $0x2a8] sm:$0xff]
        %v1422 = vld [vmem:[%s376 + $0x2b0] sm:$0xff]
        %v1423 = vld [vmem:[%s376 + $0x2b8] sm:$0xff]
        %v1424 = vld [vmem:[%s376 + $0x2c0] sm:$0xff]
        %v1425 = vld [vmem:[%s376 + $0x2c8] sm:$0xff]
        %v1426 = vld [vmem:[%s376 + $0x2d0] sm:$0xff]
        %v1427 = vld [vmem:[%s376 + $0x2d8] sm:$0xff]
        %v1428 = vld [vmem:[%s376 + $0x2e0] sm:$0xff]
        %v1429 = vld [vmem:[%s376 + $0x2e8] sm:$0xff]
        %v1430 = vld [vmem:[%s376 + $0x2f0] sm:$0xff]
        %v1431 = vld [vmem:[%s376 + $0x2f8] sm:$0xff]
        %v1432 = vld [vmem:[%s376 + $0x300] sm:$0xff]
        %v1433 = vld [vmem:[%s376 + $0x308] sm:$0xff]
        %v1434 = vld [vmem:[%s376 + $0x310] sm:$0xff]
        %v1435 = vld [vmem:[%s376 + $0x318] sm:$0xff]
        %v1436 = vld [vmem:[%s376 + $0x320] sm:$0xff]
        %v1437 = vld [vmem:[%s376 + $0x328] sm:$0xff]
        %v1438 = vld [vmem:[%s376 + $0x330] sm:$0xff]
        %v1439 = vld [vmem:[%s376 + $0x338] sm:$0xff]
        %v1440 = vld [vmem:[%s376 + $0x340] sm:$0xff]
        %v1441 = vld [vmem:[%s376 + $0x348] sm:$0xff]
        %v1442 = vld [vmem:[%s376 + $0x350] sm:$0xff]
        %v1443 = vld [vmem:[%s376 + $0x358] sm:$0xff]
        %v1444 = vld [vmem:[%s376 + $0x360] sm:$0xff]
        %v1445 = vld [vmem:[%s376 + $0x368] sm:$0xff]
        %v1446 = vld [vmem:[%s376 + $0x370] sm:$0xff]
        %v1447 = vld [vmem:[%s376 + $0x378] sm:$0xff]
        %v1448 = vld [vmem:[%s376 + $0x380] sm:$0xff]
        %v1449 = vld [vmem:[%s376 + $0x388] sm:$0xff]
        %v1450 = vld [vmem:[%s376 + $0x390] sm:$0xff]
        %v1451 = vld [vmem:[%s376 + $0x398] sm:$0xff]
        %v1452 = vld [vmem:[%s376 + $0x3a0] sm:$0xff]
        %v1453 = vld [vmem:[%s376 + $0x3a8] sm:$0xff]
        %v1454 = vld [vmem:[%s376 + $0x3b0] sm:$0xff]
        %v1455 = vld [vmem:[%s376 + $0x3b8] sm:$0xff]
        %v1456 = vld [vmem:[%s376 + $0x3c0] sm:$0xff]
        %v1457 = vld [vmem:[%s376 + $0x3c8] sm:$0xff]
        %v1458 = vld [vmem:[%s376 + $0x3d0] sm:$0xff]
        %v1459 = vld [vmem:[%s376 + $0x3d8] sm:$0xff]
        %v1460 = vld [vmem:[%s376 + $0x3e0] sm:$0xff]
        %v1461 = vld [vmem:[%s376 + $0x3e8] sm:$0xff]
        %v1462 = vld [vmem:[%s376 + $0x3f0] sm:$0xff]
        %v1463 = vld [vmem:[%s376 + $0x3f8] sm:$0xff]
        %1465 = vst [vmem:[#allocation1] ss:$9 sm:$0xff] %v1335
        %v1466 = vld [vmem:[#allocation1] sm:$0xff]
        %v1467 = vld [vmem:[#allocation1 + $0x9] sm:$0xff]
        %v1468 = vld [vmem:[#allocation1 + $0x12] sm:$0xff]
        %v1469 = vld [vmem:[#allocation1 + $0x1b] sm:$0xff]
        %v1602 = vunpack.c.l.b16 %v1336
        %v1603 = vunpack.c.h.b16 %v1336
        %v1604 = vunpack.c.l.b16 %v1337
        %v1605 = vunpack.c.h.b16 %v1337
        %v1606 = vunpack.c.l.b16 %v1338
        %v1607 = vunpack.c.h.b16 %v1338
        %v1608 = vunpack.c.l.b16 %v1339
        %v1609 = vunpack.c.h.b16 %v1339
        %v1610 = vunpack.c.l.b16 %v1340
        %v1611 = vunpack.c.h.b16 %v1340
        %v1612 = vunpack.c.l.b16 %v1341
        %v1613 = vunpack.c.h.b16 %v1341
        %v1614 = vunpack.c.l.b16 %v1342
        %v1615 = vunpack.c.h.b16 %v1342
        %v1616 = vunpack.c.l.b16 %v1343
        %v1617 = vunpack.c.h.b16 %v1343
        %v1618 = vunpack.c.l.b16 %v1344
        %v1619 = vunpack.c.h.b16 %v1344
        %v1620 = vunpack.c.l.b16 %v1345
        %v1621 = vunpack.c.h.b16 %v1345
        %v1622 = vunpack.c.l.b16 %v1346
        %v1623 = vunpack.c.h.b16 %v1346
        %v1624 = vunpack.c.l.b16 %v1347
        %v1625 = vunpack.c.h.b16 %v1347
        %v1626 = vunpack.c.l.b16 %v1348
        %v1627 = vunpack.c.h.b16 %v1348
        %v1628 = vunpack.c.l.b16 %v1349
        %v1629 = vunpack.c.h.b16 %v1349
        %v1630 = vunpack.c.l.b16 %v1350
        %v1631 = vunpack.c.h.b16 %v1350
        %v1632 = vunpack.c.l.b16 %v1351
        %v1633 = vunpack.c.h.b16 %v1351
        %v1634 = vunpack.c.l.b16 %v1352
        %v1635 = vunpack.c.h.b16 %v1352
        %v1636 = vunpack.c.l.b16 %v1353
        %v1637 = vunpack.c.h.b16 %v1353
        %v1638 = vunpack.c.l.b16 %v1354
        %v1639 = vunpack.c.h.b16 %v1354
        %v1640 = vunpack.c.l.b16 %v1355
        %v1641 = vunpack.c.h.b16 %v1355
        %v1642 = vunpack.c.l.b16 %v1356
        %v1643 = vunpack.c.h.b16 %v1356
        %v1644 = vunpack.c.l.b16 %v1357
        %v1645 = vunpack.c.h.b16 %v1357
        %v1646 = vunpack.c.l.b16 %v1358
        %v1647 = vunpack.c.h.b16 %v1358
        %v1648 = vunpack.c.l.b16 %v1359
        %v1649 = vunpack.c.h.b16 %v1359
        %v1650 = vunpack.c.l.b16 %v1360
        %v1651 = vunpack.c.h.b16 %v1360
        %v1652 = vunpack.c.l.b16 %v1361
        %v1653 = vunpack.c.h.b16 %v1361
        %v1654 = vunpack.c.l.b16 %v1362
        %v1655 = vunpack.c.h.b16 %v1362
        %v1656 = vunpack.c.l.b16 %v1363
        %v1657 = vunpack.c.h.b16 %v1363
        %v1658 = vunpack.c.l.b16 %v1364
        %v1659 = vunpack.c.h.b16 %v1364
        %v1660 = vunpack.c.l.b16 %v1365
        %v1661 = vunpack.c.h.b16 %v1365
        %v1662 = vunpack.c.l.b16 %v1366
        %v1663 = vunpack.c.h.b16 %v1366
        %v1664 = vunpack.c.l.b16 %v1367
        %v1665 = vunpack.c.h.b16 %v1367
        %v1666 = vunpack.c.l.b16 %v1368
        %v1667 = vunpack.c.h.b16 %v1368
        %v1668 = vunpack.c.l.b16 %v1369
        %v1669 = vunpack.c.h.b16 %v1369
        %v1670 = vunpack.c.l.b16 %v1370
        %v1671 = vunpack.c.h.b16 %v1370
        %v1672 = vunpack.c.l.b16 %v1371
        %v1673 = vunpack.c.h.b16 %v1371
        %v1674 = vunpack.c.l.b16 %v1372
        %v1675 = vunpack.c.h.b16 %v1372
        %v1676 = vunpack.c.l.b16 %v1373
        %v1677 = vunpack.c.h.b16 %v1373
        %v1678 = vunpack.c.l.b16 %v1374
        %v1679 = vunpack.c.h.b16 %v1374
        %v1680 = vunpack.c.l.b16 %v1375
        %v1681 = vunpack.c.h.b16 %v1375
        %v1682 = vunpack.c.l.b16 %v1376
        %v1683 = vunpack.c.h.b16 %v1376
        %v1684 = vunpack.c.l.b16 %v1377
        %v1685 = vunpack.c.h.b16 %v1377
        %v1686 = vunpack.c.l.b16 %v1378
        %v1687 = vunpack.c.h.b16 %v1378
        %v1688 = vunpack.c.l.b16 %v1379
        %v1689 = vunpack.c.h.b16 %v1379
        %v1690 = vunpack.c.l.b16 %v1380
        %v1691 = vunpack.c.h.b16 %v1380
        %v1692 = vunpack.c.l.b16 %v1381
        %v1693 = vunpack.c.h.b16 %v1381
        %v1694 = vunpack.c.l.b16 %v1382
        %v1695 = vunpack.c.h.b16 %v1382
        %v1696 = vunpack.c.l.b16 %v1383
        %v1697 = vunpack.c.h.b16 %v1383
        %v1698 = vunpack.c.l.b16 %v1384
        %v1699 = vunpack.c.h.b16 %v1384
        %v1700 = vunpack.c.l.b16 %v1385
        %v1701 = vunpack.c.h.b16 %v1385
        %v1702 = vunpack.c.l.b16 %v1386
        %v1703 = vunpack.c.h.b16 %v1386
        %v1704 = vunpack.c.l.b16 %v1387
        %v1705 = vunpack.c.h.b16 %v1387
        %v1706 = vunpack.c.l.b16 %v1388
        %v1707 = vunpack.c.h.b16 %v1388
        %v1708 = vunpack.c.l.b16 %v1389
        %v1709 = vunpack.c.h.b16 %v1389
        %v1710 = vunpack.c.l.b16 %v1390
        %v1711 = vunpack.c.h.b16 %v1390
        %v1712 = vunpack.c.l.b16 %v1391
        %v1713 = vunpack.c.h.b16 %v1391
        %v1714 = vunpack.c.l.b16 %v1392
        %v1715 = vunpack.c.h.b16 %v1392
        %v1716 = vunpack.c.l.b16 %v1393
        %v1717 = vunpack.c.h.b16 %v1393
        %v1718 = vunpack.c.l.b16 %v1394
        %v1719 = vunpack.c.h.b16 %v1394
        %v1720 = vunpack.c.l.b16 %v1395
        %v1721 = vunpack.c.h.b16 %v1395
        %v1722 = vunpack.c.l.b16 %v1396
        %v1723 = vunpack.c.h.b16 %v1396
        %v1724 = vunpack.c.l.b16 %v1397
        %v1725 = vunpack.c.h.b16 %v1397
        %v1726 = vunpack.c.l.b16 %v1398
        %v1727 = vunpack.c.h.b16 %v1398
        %v1728 = vunpack.c.l.b16 %v1399
        %v1729 = vunpack.c.h.b16 %v1399
        %v1730 = vunpack.c.l.b16 %v1400
        %v1731 = vunpack.c.h.b16 %v1400
        %v1732 = vunpack.c.l.b16 %v1401
        %v1733 = vunpack.c.h.b16 %v1401
        %v1734 = vunpack.c.l.b16 %v1402
        %v1735 = vunpack.c.h.b16 %v1402
        %v1736 = vunpack.c.l.b16 %v1403
        %v1737 = vunpack.c.h.b16 %v1403
        %v1738 = vunpack.c.l.b16 %v1404
        %v1739 = vunpack.c.h.b16 %v1404
        %v1740 = vunpack.c.l.b16 %v1405
        %v1741 = vunpack.c.h.b16 %v1405
        %v1742 = vunpack.c.l.b16 %v1406
        %v1743 = vunpack.c.h.b16 %v1406
        %v1744 = vunpack.c.l.b16 %v1407
        %v1745 = vunpack.c.h.b16 %v1407
        %v1746 = vunpack.c.l.b16 %v1408
        %v1747 = vunpack.c.h.b16 %v1408
        %v1748 = vunpack.c.l.b16 %v1409
        %v1749 = vunpack.c.h.b16 %v1409
        %v1750 = vunpack.c.l.b16 %v1410
        %v1751 = vunpack.c.h.b16 %v1410
        %v1752 = vunpack.c.l.b16 %v1411
        %v1753 = vunpack.c.h.b16 %v1411
        %v1754 = vunpack.c.l.b16 %v1412
        %v1755 = vunpack.c.h.b16 %v1412
        %v1756 = vunpack.c.l.b16 %v1413
        %v1757 = vunpack.c.h.b16 %v1413
        %v1758 = vunpack.c.l.b16 %v1414
        %v1759 = vunpack.c.h.b16 %v1414
        %v1760 = vunpack.c.l.b16 %v1415
        %v1761 = vunpack.c.h.b16 %v1415
        %v1762 = vunpack.c.l.b16 %v1416
        %v1763 = vunpack.c.h.b16 %v1416
        %v1764 = vunpack.c.l.b16 %v1417
        %v1765 = vunpack.c.h.b16 %v1417
        %v1766 = vunpack.c.l.b16 %v1418
        %v1767 = vunpack.c.h.b16 %v1418
        %v1768 = vunpack.c.l.b16 %v1419
        %v1769 = vunpack.c.h.b16 %v1419
        %v1770 = vunpack.c.l.b16 %v1420
        %v1771 = vunpack.c.h.b16 %v1420
        %v1772 = vunpack.c.l.b16 %v1421
        %v1773 = vunpack.c.h.b16 %v1421
        %v1774 = vunpack.c.l.b16 %v1422
        %v1775 = vunpack.c.h.b16 %v1422
        %v1776 = vunpack.c.l.b16 %v1423
        %v1777 = vunpack.c.h.b16 %v1423
        %v1778 = vunpack.c.l.b16 %v1424
        %v1779 = vunpack.c.h.b16 %v1424
        %v1780 = vunpack.c.l.b16 %v1425
        %v1781 = vunpack.c.h.b16 %v1425
        %v1782 = vunpack.c.l.b16 %v1426
        %v1783 = vunpack.c.h.b16 %v1426
        %v1784 = vunpack.c.l.b16 %v1427
        %v1785 = vunpack.c.h.b16 %v1427
        %v1786 = vunpack.c.l.b16 %v1428
        %v1787 = vunpack.c.h.b16 %v1428
        %v1788 = vunpack.c.l.b16 %v1429
        %v1789 = vunpack.c.h.b16 %v1429
        %v1790 = vunpack.c.l.b16 %v1430
        %v1791 = vunpack.c.h.b16 %v1430
        %v1792 = vunpack.c.l.b16 %v1431
        %v1793 = vunpack.c.h.b16 %v1431
        %v1794 = vunpack.c.l.b16 %v1432
        %v1795 = vunpack.c.h.b16 %v1432
        %v1796 = vunpack.c.l.b16 %v1433
        %v1797 = vunpack.c.h.b16 %v1433
        %v1798 = vunpack.c.l.b16 %v1434
        %v1799 = vunpack.c.h.b16 %v1434
        %v1800 = vunpack.c.l.b16 %v1435
        %v1801 = vunpack.c.h.b16 %v1435
        %v1802 = vunpack.c.l.b16 %v1436
        %v1803 = vunpack.c.h.b16 %v1436
        %v1804 = vunpack.c.l.b16 %v1437
        %v1805 = vunpack.c.h.b16 %v1437
        %v1806 = vunpack.c.l.b16 %v1438
        %v1807 = vunpack.c.h.b16 %v1438
        %v1808 = vunpack.c.l.b16 %v1439
        %v1809 = vunpack.c.h.b16 %v1439
        %v1810 = vunpack.c.l.b16 %v1440
        %v1811 = vunpack.c.h.b16 %v1440
        %v1812 = vunpack.c.l.b16 %v1441
        %v1813 = vunpack.c.h.b16 %v1441
        %v1814 = vunpack.c.l.b16 %v1442
        %v1815 = vunpack.c.h.b16 %v1442
        %v1816 = vunpack.c.l.b16 %v1443
        %v1817 = vunpack.c.h.b16 %v1443
        %v1818 = vunpack.c.l.b16 %v1444
        %v1819 = vunpack.c.h.b16 %v1444
        %v1820 = vunpack.c.l.b16 %v1445
        %v1821 = vunpack.c.h.b16 %v1445
        %v1822 = vunpack.c.l.b16 %v1446
        %v1823 = vunpack.c.h.b16 %v1446
        %v1824 = vunpack.c.l.b16 %v1447
        %v1825 = vunpack.c.h.b16 %v1447
        %v1826 = vunpack.c.l.b16 %v1448
        %v1827 = vunpack.c.h.b16 %v1448
        %v1828 = vunpack.c.l.b16 %v1449
        %v1829 = vunpack.c.h.b16 %v1449
        %v1830 = vunpack.c.l.b16 %v1450
        %v1831 = vunpack.c.h.b16 %v1450
        %v1832 = vunpack.c.l.b16 %v1451
        %v1833 = vunpack.c.h.b16 %v1451
        %v1834 = vunpack.c.l.b16 %v1452
        %v1835 = vunpack.c.h.b16 %v1452
        %v1836 = vunpack.c.l.b16 %v1453
        %v1837 = vunpack.c.h.b16 %v1453
        %v1838 = vunpack.c.l.b16 %v1454
        %v1839 = vunpack.c.h.b16 %v1454
        %v1840 = vunpack.c.l.b16 %v1455
        %v1841 = vunpack.c.h.b16 %v1455
        %v1842 = vunpack.c.l.b16 %v1456
        %v1843 = vunpack.c.h.b16 %v1456
        %v1844 = vunpack.c.l.b16 %v1457
        %v1845 = vunpack.c.h.b16 %v1457
        %v1846 = vunpack.c.l.b16 %v1458
        %v1847 = vunpack.c.h.b16 %v1458
        %v1848 = vunpack.c.l.b16 %v1459
        %v1849 = vunpack.c.h.b16 %v1459
        %v1850 = vunpack.c.l.b16 %v1460
        %v1851 = vunpack.c.h.b16 %v1460
        %v1852 = vunpack.c.l.b16 %v1461
        %v1853 = vunpack.c.h.b16 %v1461
        %v1854 = vunpack.c.l.b16 %v1462
        %v1855 = vunpack.c.h.b16 %v1462
        %v1856 = vunpack.c.l.b16 %v1463
        %v1857 = vunpack.c.h.b16 %v1463
        %v1858 = vpack.c.b16 %v1606, %v1602
        %v1859 = vpack.c.b16 %v1607, %v1603
        %v1860 = vpack.c.b16 %v1608, %v1604
        %v1861 = vpack.c.b16 %v1609, %v1605
        %v1862 = vpack.c.b16 %v1614, %v1610
        %v1863 = vpack.c.b16 %v1615, %v1611
        %v1864 = vpack.c.b16 %v1616, %v1612
        %v1865 = vpack.c.b16 %v1617, %v1613
        %v1866 = vpack.c.b16 %v1622, %v1618
        %v1867 = vpack.c.b16 %v1623, %v1619
        %v1868 = vpack.c.b16 %v1624, %v1620
        %v1869 = vpack.c.b16 %v1625, %v1621
        %v1870 = vpack.c.b16 %v1630, %v1626
        %v1871 = vpack.c.b16 %v1631, %v1627
        %v1872 = vpack.c.b16 %v1632, %v1628
        %v1873 = vpack.c.b16 %v1633, %v1629
        %v1874 = vpack.c.b16 %v1638, %v1634
        %v1875 = vpack.c.b16 %v1639, %v1635
        %v1876 = vpack.c.b16 %v1640, %v1636
        %v1877 = vpack.c.b16 %v1641, %v1637
        %v1878 = vpack.c.b16 %v1646, %v1642
        %v1879 = vpack.c.b16 %v1647, %v1643
        %v1880 = vpack.c.b16 %v1648, %v1644
        %v1881 = vpack.c.b16 %v1649, %v1645
        %v1882 = vpack.c.b16 %v1654, %v1650
        %v1883 = vpack.c.b16 %v1655, %v1651
        %v1884 = vpack.c.b16 %v1656, %v1652
        %v1885 = vpack.c.b16 %v1657, %v1653
        %v1886 = vpack.c.b16 %v1662, %v1658
        %v1887 = vpack.c.b16 %v1663, %v1659
        %v1888 = vpack.c.b16 %v1664, %v1660
        %v1889 = vpack.c.b16 %v1665, %v1661
        %v1890 = vpack.c.b16 %v1670, %v1666
        %v1891 = vpack.c.b16 %v1671, %v1667
        %v1892 = vpack.c.b16 %v1672, %v1668
        %v1893 = vpack.c.b16 %v1673, %v1669
        %v1894 = vpack.c.b16 %v1678, %v1674
        %v1895 = vpack.c.b16 %v1679, %v1675
        %v1896 = vpack.c.b16 %v1680, %v1676
        %v1897 = vpack.c.b16 %v1681, %v1677
        %v1898 = vpack.c.b16 %v1686, %v1682
        %v1899 = vpack.c.b16 %v1687, %v1683
        %v1900 = vpack.c.b16 %v1688, %v1684
        %v1901 = vpack.c.b16 %v1689, %v1685
        %v1902 = vpack.c.b16 %v1694, %v1690
        %v1903 = vpack.c.b16 %v1695, %v1691
        %v1904 = vpack.c.b16 %v1696, %v1692
        %v1905 = vpack.c.b16 %v1697, %v1693
        %v1906 = vpack.c.b16 %v1702, %v1698
        %v1907 = vpack.c.b16 %v1703, %v1699
        %v1908 = vpack.c.b16 %v1704, %v1700
        %v1909 = vpack.c.b16 %v1705, %v1701
        %v1910 = vpack.c.b16 %v1710, %v1706
        %v1911 = vpack.c.b16 %v1711, %v1707
        %v1912 = vpack.c.b16 %v1712, %v1708
        %v1913 = vpack.c.b16 %v1713, %v1709
        %v1914 = vpack.c.b16 %v1718, %v1714
        %v1915 = vpack.c.b16 %v1719, %v1715
        %v1916 = vpack.c.b16 %v1720, %v1716
        %v1917 = vpack.c.b16 %v1721, %v1717
        %v1918 = vpack.c.b16 %v1726, %v1722
        %v1919 = vpack.c.b16 %v1727, %v1723
        %v1920 = vpack.c.b16 %v1728, %v1724
        %v1921 = vpack.c.b16 %v1729, %v1725
        %v1922 = vpack.c.b16 %v1734, %v1730
        %v1923 = vpack.c.b16 %v1735, %v1731
        %v1924 = vpack.c.b16 %v1736, %v1732
        %v1925 = vpack.c.b16 %v1737, %v1733
        %v1926 = vpack.c.b16 %v1742, %v1738
        %v1927 = vpack.c.b16 %v1743, %v1739
        %v1928 = vpack.c.b16 %v1744, %v1740
        %v1929 = vpack.c.b16 %v1745, %v1741
        %v1930 = vpack.c.b16 %v1750, %v1746
        %v1931 = vpack.c.b16 %v1751, %v1747
        %v1932 = vpack.c.b16 %v1752, %v1748
        %v1933 = vpack.c.b16 %v1753, %v1749
        %v1934 = vpack.c.b16 %v1758, %v1754
        %v1935 = vpack.c.b16 %v1759, %v1755
        %v1936 = vpack.c.b16 %v1760, %v1756
        %v1937 = vpack.c.b16 %v1761, %v1757
        %v1938 = vpack.c.b16 %v1766, %v1762
        %v1939 = vpack.c.b16 %v1767, %v1763
        %v1940 = vpack.c.b16 %v1768, %v1764
        %v1941 = vpack.c.b16 %v1769, %v1765
        %v1942 = vpack.c.b16 %v1774, %v1770
        %v1943 = vpack.c.b16 %v1775, %v1771
        %v1944 = vpack.c.b16 %v1776, %v1772
        %v1945 = vpack.c.b16 %v1777, %v1773
        %v1946 = vpack.c.b16 %v1782, %v1778
        %v1947 = vpack.c.b16 %v1783, %v1779
        %v1948 = vpack.c.b16 %v1784, %v1780
        %v1949 = vpack.c.b16 %v1785, %v1781
        %v1950 = vpack.c.b16 %v1790, %v1786
        %v1951 = vpack.c.b16 %v1791, %v1787
        %v1952 = vpack.c.b16 %v1792, %v1788
        %v1953 = vpack.c.b16 %v1793, %v1789
        %v1954 = vpack.c.b16 %v1798, %v1794
        %v1955 = vpack.c.b16 %v1799, %v1795
        %v1956 = vpack.c.b16 %v1800, %v1796
        %v1957 = vpack.c.b16 %v1801, %v1797
        %v1958 = vpack.c.b16 %v1806, %v1802
        %v1959 = vpack.c.b16 %v1807, %v1803
        %v1960 = vpack.c.b16 %v1808, %v1804
        %v1961 = vpack.c.b16 %v1809, %v1805
        %v1962 = vpack.c.b16 %v1814, %v1810
        %v1963 = vpack.c.b16 %v1815, %v1811
        %v1964 = vpack.c.b16 %v1816, %v1812
        %v1965 = vpack.c.b16 %v1817, %v1813
        %v1966 = vpack.c.b16 %v1822, %v1818
        %v1967 = vpack.c.b16 %v1823, %v1819
        %v1968 = vpack.c.b16 %v1824, %v1820
        %v1969 = vpack.c.b16 %v1825, %v1821
        %v1970 = vpack.c.b16 %v1830, %v1826
        %v1971 = vpack.c.b16 %v1831, %v1827
        %v1972 = vpack.c.b16 %v1832, %v1828
        %v1973 = vpack.c.b16 %v1833, %v1829
        %v1974 = vpack.c.b16 %v1838, %v1834
        %v1975 = vpack.c.b16 %v1839, %v1835
        %v1976 = vpack.c.b16 %v1840, %v1836
        %v1977 = vpack.c.b16 %v1841, %v1837
        %v1978 = vpack.c.b16 %v1846, %v1842
        %v1979 = vpack.c.b16 %v1847, %v1843
        %v1980 = vpack.c.b16 %v1848, %v1844
        %v1981 = vpack.c.b16 %v1849, %v1845
        %v1982 = vpack.c.b16 %v1854, %v1850
        %v1983 = vpack.c.b16 %v1855, %v1851
        %v1984 = vpack.c.b16 %v1856, %v1852
        %v1985 = vpack.c.b16 %v1857, %v1853
        %2114 = vmatpush.bf16.msra.mxu0 %v1886
        %2115 = vmatpush.bf16.msra.mxu0 %v1882
        %2116 = vmatpush.bf16.msra.mxu0 %v1878
        %2117 = vmatpush.bf16.msra.mxu0 %v1874
        %2118 = vmatpush.bf16.msra.mxu0 %v1870
        %2119 = vmatpush.bf16.msra.mxu0 %v1866
        %2120 = vmatpush.bf16.msra.mxu0 %v1862
        %2121 = vmatpush.bf16.msra.mxu0 %v1858
        %2122 = vmatmul.bf16.gmra.mxu0 %v1466
        %v2123 = vpop.f32.mrf.mxu0
        %v2124 = vadd.f32 0.0, %v2123
        %v2125 = vpop.f32.mrf.mxu0
        %2126 = vdwg.mxu0
        %2127 = vmatpush.bf16.msra.mxu0 %v1918
        %2128 = vmatpush.bf16.msra.mxu0 %v1914
        %2129 = vmatpush.bf16.msra.mxu0 %v1910
        %2130 = vmatpush.bf16.msra.mxu0 %v1906
        %2131 = vmatpush.bf16.msra.mxu0 %v1902
        %2132 = vmatpush.bf16.msra.mxu0 %v1898
        %2133 = vmatpush.bf16.msra.mxu0 %v1894
        %2134 = vmatpush.bf16.msra.mxu0 %v1890
        %2135 = vmatmul.bf16.gmra.mxu0 %v1467
        %v2136 = vpop.f32.mrf.mxu0
        %v2137 = vadd.f32 %v2124, %v2136
        %v2138 = vpop.f32.mrf.mxu0
        %2139 = vdwg.mxu0
        %2140 = vmatpush.bf16.msra.mxu0 %v1950
        %2141 = vmatpush.bf16.msra.mxu0 %v1946
        %2142 = vmatpush.bf16.msra.mxu0 %v1942
        %2143 = vmatpush.bf16.msra.mxu0 %v1938
        %2144 = vmatpush.bf16.msra.mxu0 %v1934
        %2145 = vmatpush.bf16.msra.mxu0 %v1930
        %2146 = vmatpush.bf16.msra.mxu0 %v1926
        %2147 = vmatpush.bf16.msra.mxu0 %v1922
        %2148 = vmatmul.bf16.gmra.mxu0 %v1468
        %v2149 = vpop.f32.mrf.mxu0
        %v2150 = vadd.f32 %v2137, %v2149
        %v2151 = vpop.f32.mrf.mxu0
        %2152 = vdwg.mxu0
        %2153 = vmatpush.bf16.msra.mxu0 %v1982
        %2154 = vmatpush.bf16.msra.mxu0 %v1978
        %2155 = vmatpush.bf16.msra.mxu0 %v1974
        %2156 = vmatpush.bf16.msra.mxu0 %v1970
        %2157 = vmatpush.bf16.msra.mxu0 %v1966
        %2158 = vmatpush.bf16.msra.mxu0 %v1962
        %2159 = vmatpush.bf16.msra.mxu0 %v1958
        %2160 = vmatpush.bf16.msra.mxu0 %v1954
        %2161 = vmatmul.bf16.gmra.mxu0 %v1469
        %v2162 = vpop.f32.mrf.mxu0
        %v2163 = vadd.f32 %v2150, %v2162
        %v2164 = vpop.f32.mrf.mxu0
        %2165 = vdwg.mxu0
        %2166 = vmatpush.bf16.msra.mxu0 %v1887
        %2167 = vmatpush.bf16.msra.mxu0 %v1883
        %2168 = vmatpush.bf16.msra.mxu0 %v1879
        %2169 = vmatpush.bf16.msra.mxu0 %v1875
        %2170 = vmatpush.bf16.msra.mxu0 %v1871
        %2171 = vmatpush.bf16.msra.mxu0 %v1867
        %2172 = vmatpush.bf16.msra.mxu0 %v1863
        %2173 = vmatpush.bf16.msra.mxu0 %v1859
        %2174 = vmatmul.bf16.gmra.mxu0 %v1466
        %v2175 = vpop.f32.mrf.mxu0
        %v2176 = vadd.f32 0.0, %v2175
        %v2177 = vpop.f32.mrf.mxu0
        %2178 = vdwg.mxu0
        %2179 = vmatpush.bf16.msra.mxu0 %v1919
        %2180 = vmatpush.bf16.msra.mxu0 %v1915
        %2181 = vmatpush.bf16.msra.mxu0 %v1911
        %2182 = vmatpush.bf16.msra.mxu0 %v1907
        %2183 = vmatpush.bf16.msra.mxu0 %v1903
        %2184 = vmatpush.bf16.msra.mxu0 %v1899
        %2185 = vmatpush.bf16.msra.mxu0 %v1895
        %2186 = vmatpush.bf16.msra.mxu0 %v1891
        %2187 = vmatmul.bf16.gmra.mxu0 %v1467
        %v2188 = vpop.f32.mrf.mxu0
        %v2189 = vadd.f32 %v2176, %v2188
        %v2190 = vpop.f32.mrf.mxu0
        %2191 = vdwg.mxu0
        %2192 = vmatpush.bf16.msra.mxu0 %v1951
        %2193 = vmatpush.bf16.msra.mxu0 %v1947
        %2194 = vmatpush.bf16.msra.mxu0 %v1943
        %2195 = vmatpush.bf16.msra.mxu0 %v1939
        %2196 = vmatpush.bf16.msra.mxu0 %v1935
        %2197 = vmatpush.bf16.msra.mxu0 %v1931
        %2198 = vmatpush.bf16.msra.mxu0 %v1927
        %2199 = vmatpush.bf16.msra.mxu0 %v1923
        %2200 = vmatmul.bf16.gmra.mxu0 %v1468
        %v2201 = vpop.f32.mrf.mxu0
        %v2202 = vadd.f32 %v2189, %v2201
        %v2203 = vpop.f32.mrf.mxu0
        %2204 = vdwg.mxu0
        %2205 = vmatpush.bf16.msra.mxu0 %v1983
        %2206 = vmatpush.bf16.msra.mxu0 %v1979
        %2207 = vmatpush.bf16.msra.mxu0 %v1975
        %2208 = vmatpush.bf16.msra.mxu0 %v1971
        %2209 = vmatpush.bf16.msra.mxu0 %v1967
        %2210 = vmatpush.bf16.msra.mxu0 %v1963
        %2211 = vmatpush.bf16.msra.mxu0 %v1959
        %2212 = vmatpush.bf16.msra.mxu0 %v1955
        %2213 = vmatmul.bf16.gmra.mxu0 %v1469
        %v2214 = vpop.f32.mrf.mxu0
        %v2215 = vadd.f32 %v2202, %v2214
        %v2216 = vpop.f32.mrf.mxu0
        %2217 = vdwg.mxu0
        %2218 = vmatpush.bf16.msra.mxu0 %v1888
        %2219 = vmatpush.bf16.msra.mxu0 %v1884
        %2220 = vmatpush.bf16.msra.mxu0 %v1880
        %2221 = vmatpush.bf16.msra.mxu0 %v1876
        %2222 = vmatpush.bf16.msra.mxu0 %v1872
        %2223 = vmatpush.bf16.msra.mxu0 %v1868
        %2224 = vmatpush.bf16.msra.mxu0 %v1864
        %2225 = vmatpush.bf16.msra.mxu0 %v1860
        %2226 = vmatmul.bf16.gmra.mxu0 %v1466
        %v2227 = vpop.f32.mrf.mxu0
        %v2228 = vadd.f32 0.0, %v2227
        %v2229 = vpop.f32.mrf.mxu0
        %2230 = vdwg.mxu0
        %2231 = vmatpush.bf16.msra.mxu0 %v1920
        %2232 = vmatpush.bf16.msra.mxu0 %v1916
        %2233 = vmatpush.bf16.msra.mxu0 %v1912
        %2234 = vmatpush.bf16.msra.mxu0 %v1908
        %2235 = vmatpush.bf16.msra.mxu0 %v1904
        %2236 = vmatpush.bf16.msra.mxu0 %v1900
        %2237 = vmatpush.bf16.msra.mxu0 %v1896
        %2238 = vmatpush.bf16.msra.mxu0 %v1892
        %2239 = vmatmul.bf16.gmra.mxu0 %v1467
        %v2240 = vpop.f32.mrf.mxu0
        %v2241 = vadd.f32 %v2228, %v2240
        %v2242 = vpop.f32.mrf.mxu0
        %2243 = vdwg.mxu0
        %2244 = vmatpush.bf16.msra.mxu0 %v1952
        %2245 = vmatpush.bf16.msra.mxu0 %v1948
        %2246 = vmatpush.bf16.msra.mxu0 %v1944
        %2247 = vmatpush.bf16.msra.mxu0 %v1940
        %2248 = vmatpush.bf16.msra.mxu0 %v1936
        %2249 = vmatpush.bf16.msra.mxu0 %v1932
        %2250 = vmatpush.bf16.msra.mxu0 %v1928
        %2251 = vmatpush.bf16.msra.mxu0 %v1924
        %2252 = vmatmul.bf16.gmra.mxu0 %v1468
        %v2253 = vpop.f32.mrf.mxu0
        %v2254 = vadd.f32 %v2241, %v2253
        %v2255 = vpop.f32.mrf.mxu0
        %2256 = vdwg.mxu0
        %2257 = vmatpush.bf16.msra.mxu0 %v1984
        %2258 = vmatpush.bf16.msra.mxu0 %v1980
        %2259 = vmatpush.bf16.msra.mxu0 %v1976
        %2260 = vmatpush.bf16.msra.mxu0 %v1972
        %2261 = vmatpush.bf16.msra.mxu0 %v1968
        %2262 = vmatpush.bf16.msra.mxu0 %v1964
        %2263 = vmatpush.bf16.msra.mxu0 %v1960
        %2264 = vmatpush.bf16.msra.mxu0 %v1956
        %2265 = vmatmul.bf16.gmra.mxu0 %v1469
        %v2266 = vpop.f32.mrf.mxu0
        %v2267 = vadd.f32 %v2254, %v2266
        %v2268 = vpop.f32.mrf.mxu0
        %2269 = vdwg.mxu0
        %2270 = vmatpush.bf16.msra.mxu0 %v1889
        %2271 = vmatpush.bf16.msra.mxu0 %v1885
        %2272 = vmatpush.bf16.msra.mxu0 %v1881
        %2273 = vmatpush.bf16.msra.mxu0 %v1877
        %2274 = vmatpush.bf16.msra.mxu0 %v1873
        %2275 = vmatpush.bf16.msra.mxu0 %v1869
        %2276 = vmatpush.bf16.msra.mxu0 %v1865
        %2277 = vmatpush.bf16.msra.mxu0 %v1861
        %2278 = vmatmul.bf16.gmra.mxu0 %v1466
        %v2279 = vpop.f32.mrf.mxu0
        %v2280 = vadd.f32 0.0, %v2279
        %v2281 = vpop.f32.mrf.mxu0
        %2282 = vdwg.mxu0
        %2283 = vmatpush.bf16.msra.mxu0 %v1921
        %2284 = vmatpush.bf16.msra.mxu0 %v1917
        %2285 = vmatpush.bf16.msra.mxu0 %v1913
        %2286 = vmatpush.bf16.msra.mxu0 %v1909
        %2287 = vmatpush.bf16.msra.mxu0 %v1905
        %2288 = vmatpush.bf16.msra.mxu0 %v1901
        %2289 = vmatpush.bf16.msra.mxu0 %v1897
        %2290 = vmatpush.bf16.msra.mxu0 %v1893
        %2291 = vmatmul.bf16.gmra.mxu0 %v1467
        %v2292 = vpop.f32.mrf.mxu0
        %v2293 = vadd.f32 %v2280, %v2292
        %v2294 = vpop.f32.mrf.mxu0
        %2295 = vdwg.mxu0
        %2296 = vmatpush.bf16.msra.mxu0 %v1953
        %2297 = vmatpush.bf16.msra.mxu0 %v1949
        %2298 = vmatpush.bf16.msra.mxu0 %v1945
        %2299 = vmatpush.bf16.msra.mxu0 %v1941
        %2300 = vmatpush.bf16.msra.mxu0 %v1937
        %2301 = vmatpush.bf16.msra.mxu0 %v1933
        %2302 = vmatpush.bf16.msra.mxu0 %v1929
        %2303 = vmatpush.bf16.msra.mxu0 %v1925
        %2304 = vmatmul.bf16.gmra.mxu0 %v1468
        %v2305 = vpop.f32.mrf.mxu0
        %v2306 = vadd.f32 %v2293, %v2305
        %v2307 = vpop.f32.mrf.mxu0
        %2308 = vdwg.mxu0
        %2309 = vmatpush.bf16.msra.mxu0 %v1985
        %2310 = vmatpush.bf16.msra.mxu0 %v1981
        %2311 = vmatpush.bf16.msra.mxu0 %v1977
        %2312 = vmatpush.bf16.msra.mxu0 %v1973
        %2313 = vmatpush.bf16.msra.mxu0 %v1969
        %2314 = vmatpush.bf16.msra.mxu0 %v1965
        %2315 = vmatpush.bf16.msra.mxu0 %v1961
        %2316 = vmatpush.bf16.msra.mxu0 %v1957
        %2317 = vmatmul.bf16.gmra.mxu0 %v1469
        %v2318 = vpop.f32.mrf.mxu0
        %v2319 = vadd.f32 %v2306, %v2318
        %v2320 = vpop.f32.mrf.mxu0
        %2321 = vdwg.mxu0
        %v2326 = vrot.slane %v2215, 6
        %v2327 = vrot.slane %v2267, 4
        %v2328 = vrot.slane %v2319, 2
        %vm2329 = vcmask 1041408
        %v2330 = vsel %vm2329, %v2163, %v2326
        %vm2331 = vcmask 1045508
        %v2332 = vsel %vm2331, %v2327, %v2328
        %vm2333 = vcmask 1043456
        %v2334 = vsel %vm2333, %v2330, %v2332
        %v2336 = vadd.f32 %v1332, %v2334
        %2337 = vst [vmem:[#allocation3] sm:$0xff] %v2336
        %p2338 = scmp.eq.s32.totalorder %s23, 3
        // Predicated region
        $region69: #{net_forward.1} parent=63 // pred_check
          %p2339 = pneg %p2338
        $region70: #{net_forward.1} parent=63 // pred_check_branch
          %2341 = sbr.rel (%p2339) target = $region72
        $region71: #{net_forward.1} parent=63 // pred_region
          %v2342 = vld [vmem:[#allocation3] sm:$0xff]
          %v2343 = vld [vmem:[%s4] sm:$0xf]
          %v2345 = vperm.slane %v2343, 0
          %v2346 = vperm.slane %v2343, 1
          %v2347 = vperm.slane %v2343, 2
          %v2348 = vperm.slane %v2343, 3
          %v2349 = vrot.slane %v2346, 6
          %v2350 = vrot.slane %v2347, 4
          %v2351 = vrot.slane %v2348, 2
          %v2352 = vsel %vm2329, %v2345, %v2349
          %v2353 = vsel %vm2331, %v2350, %v2351
          %v2354 = vsel %vm2333, %v2352, %v2353
          %v2356 = vadd.f32 %v2342, %v2354
          %v2357 = vmax.f32 %v2356, 0.0
          %2359 = vst [vmem:[#allocation1] ss:$4 sm:$0xff] %v2357
          %v2360 = vld.sshfl [vmem:[#allocation1] sm:$0xff pattern:$0x73625140]
          %v2361 = vld.sshfl [vmem:[#allocation1 + $0x8] sm:$0xff pattern:$0x73625140]
          %v2362 = vld.sshfl [vmem:[#allocation1 + $0x10] sm:$0xff pattern:$0x73625140]
          %v2363 = vld.sshfl [vmem:[#allocation1 + $0x18] sm:$0xff pattern:$0x73625140]
          %v2368 = vpack.c.bf16 %v2360, %v2360
          %v2369 = vpack.c.bf16 %v2361, %v2361
          %v2370 = vpack.c.bf16 %v2362, %v2362
          %v2371 = vpack.c.bf16 %v2363, %v2363
          %v2372 = vld [vmem:[%s5] sm:$0xff]
          %v2373 = vld [vmem:[%s5 + $0x8] sm:$0xff]
          %v2374 = vld [vmem:[%s5 + $0x10] sm:$0xff]
          %v2375 = vld [vmem:[%s5 + $0x18] sm:$0xff]
          %v2376 = vld [vmem:[%s5 + $0x20] sm:$0xff]
          %v2377 = vld [vmem:[%s5 + $0x28] sm:$0xff]
          %v2378 = vld [vmem:[%s5 + $0x30] sm:$0xff]
          %v2379 = vld [vmem:[%s5 + $0x38] sm:$0xff]
          %v2380 = vld [vmem:[%s5 + $0x40] sm:$0xff]
          %v2381 = vld [vmem:[%s5 + $0x48] sm:$0xff]
          %v2382 = vld [vmem:[%s5 + $0x50] sm:$0xff]
          %v2383 = vld [vmem:[%s5 + $0x58] sm:$0xff]
          %v2384 = vld [vmem:[%s5 + $0x60] sm:$0xff]
          %v2385 = vld [vmem:[%s5 + $0x68] sm:$0xff]
          %v2386 = vld [vmem:[%s5 + $0x70] sm:$0xff]
          %v2387 = vld [vmem:[%s5 + $0x78] sm:$0xff]
          %v2388 = vld [vmem:[%s5 + $0x80] sm:$0xff]
          %v2389 = vld [vmem:[%s5 + $0x88] sm:$0xff]
          %v2390 = vld [vmem:[%s5 + $0x90] sm:$0xff]
          %v2391 = vld [vmem:[%s5 + $0x98] sm:$0xff]
          %v2392 = vld [vmem:[%s5 + $0xa0] sm:$0xff]
          %v2393 = vld [vmem:[%s5 + $0xa8] sm:$0xff]
          %v2394 = vld [vmem:[%s5 + $0xb0] sm:$0xff]
          %v2395 = vld [vmem:[%s5 + $0xb8] sm:$0xff]
          %v2396 = vld [vmem:[%s5 + $0xc0] sm:$0xff]
          %v2397 = vld [vmem:[%s5 + $0xc8] sm:$0xff]
          %v2398 = vld [vmem:[%s5 + $0xd0] sm:$0xff]
          %v2399 = vld [vmem:[%s5 + $0xd8] sm:$0xff]
          %v2400 = vld [vmem:[%s5 + $0xe0] sm:$0xff]
          %v2401 = vld [vmem:[%s5 + $0xe8] sm:$0xff]
          %v2402 = vld [vmem:[%s5 + $0xf0] sm:$0xff]
          %v2403 = vld [vmem:[%s5 + $0xf8] sm:$0xff]
          %v2404 = vld [vmem:[%s5 + $0x100] sm:$0xff]
          %v2405 = vld [vmem:[%s5 + $0x108] sm:$0xff]
          %v2406 = vld [vmem:[%s5 + $0x110] sm:$0xff]
          %v2407 = vld [vmem:[%s5 + $0x118] sm:$0xff]
          %v2408 = vld [vmem:[%s5 + $0x120] sm:$0xff]
          %v2409 = vld [vmem:[%s5 + $0x128] sm:$0xff]
          %v2410 = vld [vmem:[%s5 + $0x130] sm:$0xff]
          %v2411 = vld [vmem:[%s5 + $0x138] sm:$0xff]
          %v2412 = vld [vmem:[%s5 + $0x140] sm:$0xff]
          %v2413 = vld [vmem:[%s5 + $0x148] sm:$0xff]
          %v2414 = vld [vmem:[%s5 + $0x150] sm:$0xff]
          %v2415 = vld [vmem:[%s5 + $0x158] sm:$0xff]
          %v2416 = vld [vmem:[%s5 + $0x160] sm:$0xff]
          %v2417 = vld [vmem:[%s5 + $0x168] sm:$0xff]
          %v2418 = vld [vmem:[%s5 + $0x170] sm:$0xff]
          %v2419 = vld [vmem:[%s5 + $0x178] sm:$0xff]
          %v2420 = vld [vmem:[%s5 + $0x180] sm:$0xff]
          %v2421 = vld [vmem:[%s5 + $0x188] sm:$0xff]
          %v2422 = vld [vmem:[%s5 + $0x190] sm:$0xff]
          %v2423 = vld [vmem:[%s5 + $0x198] sm:$0xff]
          %v2424 = vld [vmem:[%s5 + $0x1a0] sm:$0xff]
          %v2425 = vld [vmem:[%s5 + $0x1a8] sm:$0xff]
          %v2426 = vld [vmem:[%s5 + $0x1b0] sm:$0xff]
          %v2427 = vld [vmem:[%s5 + $0x1b8] sm:$0xff]
          %v2428 = vld [vmem:[%s5 + $0x1c0] sm:$0xff]
          %v2429 = vld [vmem:[%s5 + $0x1c8] sm:$0xff]
          %v2430 = vld [vmem:[%s5 + $0x1d0] sm:$0xff]
          %v2431 = vld [vmem:[%s5 + $0x1d8] sm:$0xff]
          %v2432 = vld [vmem:[%s5 + $0x1e0] sm:$0xff]
          %v2433 = vld [vmem:[%s5 + $0x1e8] sm:$0xff]
          %v2434 = vld [vmem:[%s5 + $0x1f0] sm:$0xff]
          %v2435 = vld [vmem:[%s5 + $0x1f8] sm:$0xff]
          %v2436 = vld [vmem:[%s5 + $0x200] sm:$0xff]
          %v2437 = vld [vmem:[%s5 + $0x208] sm:$0xff]
          %v2438 = vld [vmem:[%s5 + $0x210] sm:$0xff]
          %v2439 = vld [vmem:[%s5 + $0x218] sm:$0xff]
          %v2440 = vld [vmem:[%s5 + $0x220] sm:$0xff]
          %v2441 = vld [vmem:[%s5 + $0x228] sm:$0xff]
          %v2442 = vld [vmem:[%s5 + $0x230] sm:$0xff]
          %v2443 = vld [vmem:[%s5 + $0x238] sm:$0xff]
          %v2444 = vld [vmem:[%s5 + $0x240] sm:$0xff]
          %v2445 = vld [vmem:[%s5 + $0x248] sm:$0xff]
          %v2446 = vld [vmem:[%s5 + $0x250] sm:$0xff]
          %v2447 = vld [vmem:[%s5 + $0x258] sm:$0xff]
          %v2448 = vld [vmem:[%s5 + $0x260] sm:$0xff]
          %v2449 = vld [vmem:[%s5 + $0x268] sm:$0xff]
          %v2450 = vld [vmem:[%s5 + $0x270] sm:$0xff]
          %v2451 = vld [vmem:[%s5 + $0x278] sm:$0xff]
          %v2452 = vld [vmem:[%s5 + $0x280] sm:$0xff]
          %v2453 = vld [vmem:[%s5 + $0x288] sm:$0xff]
          %v2454 = vld [vmem:[%s5 + $0x290] sm:$0xff]
          %v2455 = vld [vmem:[%s5 + $0x298] sm:$0xff]
          %v2456 = vld [vmem:[%s5 + $0x2a0] sm:$0xff]
          %v2457 = vld [vmem:[%s5 + $0x2a8] sm:$0xff]
          %v2458 = vld [vmem:[%s5 + $0x2b0] sm:$0xff]
          %v2459 = vld [vmem:[%s5 + $0x2b8] sm:$0xff]
          %v2460 = vld [vmem:[%s5 + $0x2c0] sm:$0xff]
          %v2461 = vld [vmem:[%s5 + $0x2c8] sm:$0xff]
          %v2462 = vld [vmem:[%s5 + $0x2d0] sm:$0xff]
          %v2463 = vld [vmem:[%s5 + $0x2d8] sm:$0xff]
          %v2464 = vld [vmem:[%s5 + $0x2e0] sm:$0xff]
          %v2465 = vld [vmem:[%s5 + $0x2e8] sm:$0xff]
          %v2466 = vld [vmem:[%s5 + $0x2f0] sm:$0xff]
          %v2467 = vld [vmem:[%s5 + $0x2f8] sm:$0xff]
          %v2468 = vld [vmem:[%s5 + $0x300] sm:$0xff]
          %v2469 = vld [vmem:[%s5 + $0x308] sm:$0xff]
          %v2470 = vld [vmem:[%s5 + $0x310] sm:$0xff]
          %v2471 = vld [vmem:[%s5 + $0x318] sm:$0xff]
          %v2472 = vld [vmem:[%s5 + $0x320] sm:$0xff]
          %v2473 = vld [vmem:[%s5 + $0x328] sm:$0xff]
          %v2474 = vld [vmem:[%s5 + $0x330] sm:$0xff]
          %v2475 = vld [vmem:[%s5 + $0x338] sm:$0xff]
          %v2476 = vld [vmem:[%s5 + $0x340] sm:$0xff]
          %v2477 = vld [vmem:[%s5 + $0x348] sm:$0xff]
          %v2478 = vld [vmem:[%s5 + $0x350] sm:$0xff]
          %v2479 = vld [vmem:[%s5 + $0x358] sm:$0xff]
          %v2480 = vld [vmem:[%s5 + $0x360] sm:$0xff]
          %v2481 = vld [vmem:[%s5 + $0x368] sm:$0xff]
          %v2482 = vld [vmem:[%s5 + $0x370] sm:$0xff]
          %v2483 = vld [vmem:[%s5 + $0x378] sm:$0xff]
          %v2484 = vld [vmem:[%s5 + $0x380] sm:$0xff]
          %v2485 = vld [vmem:[%s5 + $0x388] sm:$0xff]
          %v2486 = vld [vmem:[%s5 + $0x390] sm:$0xff]
          %v2487 = vld [vmem:[%s5 + $0x398] sm:$0xff]
          %v2488 = vld [vmem:[%s5 + $0x3a0] sm:$0xff]
          %v2489 = vld [vmem:[%s5 + $0x3a8] sm:$0xff]
          %v2490 = vld [vmem:[%s5 + $0x3b0] sm:$0xff]
          %v2491 = vld [vmem:[%s5 + $0x3b8] sm:$0xff]
          %v2492 = vld [vmem:[%s5 + $0x3c0] sm:$0xff]
          %v2493 = vld [vmem:[%s5 + $0x3c8] sm:$0xff]
          %v2494 = vld [vmem:[%s5 + $0x3d0] sm:$0xff]
          %v2495 = vld [vmem:[%s5 + $0x3d8] sm:$0xff]
          %v2496 = vld [vmem:[%s5 + $0x3e0] sm:$0xff]
          %v2497 = vld [vmem:[%s5 + $0x3e8] sm:$0xff]
          %v2498 = vld [vmem:[%s5 + $0x3f0] sm:$0xff]
          %v2499 = vld [vmem:[%s5 + $0x3f8] sm:$0xff]
          %v2500 = vld [vmem:[%s6] sm:$0xf]
          %v2502 = vperm.slane %v2500, 0
          %v2503 = vperm.slane %v2500, 1
          %v2504 = vperm.slane %v2500, 2
          %v2505 = vperm.slane %v2500, 3
          %v2638 = vunpack.c.l.b16 %v2372
          %v2639 = vunpack.c.h.b16 %v2372
          %v2640 = vunpack.c.l.b16 %v2373
          %v2641 = vunpack.c.h.b16 %v2373
          %v2642 = vunpack.c.l.b16 %v2374
          %v2643 = vunpack.c.h.b16 %v2374
          %v2644 = vunpack.c.l.b16 %v2375
          %v2645 = vunpack.c.h.b16 %v2375
          %v2646 = vunpack.c.l.b16 %v2376
          %v2647 = vunpack.c.h.b16 %v2376
          %v2648 = vunpack.c.l.b16 %v2377
          %v2649 = vunpack.c.h.b16 %v2377
          %v2650 = vunpack.c.l.b16 %v2378
          %v2651 = vunpack.c.h.b16 %v2378
          %v2652 = vunpack.c.l.b16 %v2379
          %v2653 = vunpack.c.h.b16 %v2379
          %v2654 = vunpack.c.l.b16 %v2380
          %v2655 = vunpack.c.h.b16 %v2380
          %v2656 = vunpack.c.l.b16 %v2381
          %v2657 = vunpack.c.h.b16 %v2381
          %v2658 = vunpack.c.l.b16 %v2382
          %v2659 = vunpack.c.h.b16 %v2382
          %v2660 = vunpack.c.l.b16 %v2383
          %v2661 = vunpack.c.h.b16 %v2383
          %v2662 = vunpack.c.l.b16 %v2384
          %v2663 = vunpack.c.h.b16 %v2384
          %v2664 = vunpack.c.l.b16 %v2385
          %v2665 = vunpack.c.h.b16 %v2385
          %v2666 = vunpack.c.l.b16 %v2386
          %v2667 = vunpack.c.h.b16 %v2386
          %v2668 = vunpack.c.l.b16 %v2387
          %v2669 = vunpack.c.h.b16 %v2387
          %v2670 = vunpack.c.l.b16 %v2388
          %v2671 = vunpack.c.h.b16 %v2388
          %v2672 = vunpack.c.l.b16 %v2389
          %v2673 = vunpack.c.h.b16 %v2389
          %v2674 = vunpack.c.l.b16 %v2390
          %v2675 = vunpack.c.h.b16 %v2390
          %v2676 = vunpack.c.l.b16 %v2391
          %v2677 = vunpack.c.h.b16 %v2391
          %v2678 = vunpack.c.l.b16 %v2392
          %v2679 = vunpack.c.h.b16 %v2392
          %v2680 = vunpack.c.l.b16 %v2393
          %v2681 = vunpack.c.h.b16 %v2393
          %v2682 = vunpack.c.l.b16 %v2394
          %v2683 = vunpack.c.h.b16 %v2394
          %v2684 = vunpack.c.l.b16 %v2395
          %v2685 = vunpack.c.h.b16 %v2395
          %v2686 = vunpack.c.l.b16 %v2396
          %v2687 = vunpack.c.h.b16 %v2396
          %v2688 = vunpack.c.l.b16 %v2397
          %v2689 = vunpack.c.h.b16 %v2397
          %v2690 = vunpack.c.l.b16 %v2398
          %v2691 = vunpack.c.h.b16 %v2398
          %v2692 = vunpack.c.l.b16 %v2399
          %v2693 = vunpack.c.h.b16 %v2399
          %v2694 = vunpack.c.l.b16 %v2400
          %v2695 = vunpack.c.h.b16 %v2400
          %v2696 = vunpack.c.l.b16 %v2401
          %v2697 = vunpack.c.h.b16 %v2401
          %v2698 = vunpack.c.l.b16 %v2402
          %v2699 = vunpack.c.h.b16 %v2402
          %v2700 = vunpack.c.l.b16 %v2403
          %v2701 = vunpack.c.h.b16 %v2403
          %v2702 = vunpack.c.l.b16 %v2404
          %v2703 = vunpack.c.h.b16 %v2404
          %v2704 = vunpack.c.l.b16 %v2405
          %v2705 = vunpack.c.h.b16 %v2405
          %v2706 = vunpack.c.l.b16 %v2406
          %v2707 = vunpack.c.h.b16 %v2406
          %v2708 = vunpack.c.l.b16 %v2407
          %v2709 = vunpack.c.h.b16 %v2407
          %v2710 = vunpack.c.l.b16 %v2408
          %v2711 = vunpack.c.h.b16 %v2408
          %v2712 = vunpack.c.l.b16 %v2409
          %v2713 = vunpack.c.h.b16 %v2409
          %v2714 = vunpack.c.l.b16 %v2410
          %v2715 = vunpack.c.h.b16 %v2410
          %v2716 = vunpack.c.l.b16 %v2411
          %v2717 = vunpack.c.h.b16 %v2411
          %v2718 = vunpack.c.l.b16 %v2412
          %v2719 = vunpack.c.h.b16 %v2412
          %v2720 = vunpack.c.l.b16 %v2413
          %v2721 = vunpack.c.h.b16 %v2413
          %v2722 = vunpack.c.l.b16 %v2414
          %v2723 = vunpack.c.h.b16 %v2414
          %v2724 = vunpack.c.l.b16 %v2415
          %v2725 = vunpack.c.h.b16 %v2415
          %v2726 = vunpack.c.l.b16 %v2416
          %v2727 = vunpack.c.h.b16 %v2416
          %v2728 = vunpack.c.l.b16 %v2417
          %v2729 = vunpack.c.h.b16 %v2417
          %v2730 = vunpack.c.l.b16 %v2418
          %v2731 = vunpack.c.h.b16 %v2418
          %v2732 = vunpack.c.l.b16 %v2419
          %v2733 = vunpack.c.h.b16 %v2419
          %v2734 = vunpack.c.l.b16 %v2420
          %v2735 = vunpack.c.h.b16 %v2420
          %v2736 = vunpack.c.l.b16 %v2421
          %v2737 = vunpack.c.h.b16 %v2421
          %v2738 = vunpack.c.l.b16 %v2422
          %v2739 = vunpack.c.h.b16 %v2422
          %v2740 = vunpack.c.l.b16 %v2423
          %v2741 = vunpack.c.h.b16 %v2423
          %v2742 = vunpack.c.l.b16 %v2424
          %v2743 = vunpack.c.h.b16 %v2424
          %v2744 = vunpack.c.l.b16 %v2425
          %v2745 = vunpack.c.h.b16 %v2425
          %v2746 = vunpack.c.l.b16 %v2426
          %v2747 = vunpack.c.h.b16 %v2426
          %v2748 = vunpack.c.l.b16 %v2427
          %v2749 = vunpack.c.h.b16 %v2427
          %v2750 = vunpack.c.l.b16 %v2428
          %v2751 = vunpack.c.h.b16 %v2428
          %v2752 = vunpack.c.l.b16 %v2429
          %v2753 = vunpack.c.h.b16 %v2429
          %v2754 = vunpack.c.l.b16 %v2430
          %v2755 = vunpack.c.h.b16 %v2430
          %v2756 = vunpack.c.l.b16 %v2431
          %v2757 = vunpack.c.h.b16 %v2431
          %v2758 = vunpack.c.l.b16 %v2432
          %v2759 = vunpack.c.h.b16 %v2432
          %v2760 = vunpack.c.l.b16 %v2433
          %v2761 = vunpack.c.h.b16 %v2433
          %v2762 = vunpack.c.l.b16 %v2434
          %v2763 = vunpack.c.h.b16 %v2434
          %v2764 = vunpack.c.l.b16 %v2435
          %v2765 = vunpack.c.h.b16 %v2435
          %v2766 = vunpack.c.l.b16 %v2436
          %v2767 = vunpack.c.h.b16 %v2436
          %v2768 = vunpack.c.l.b16 %v2437
          %v2769 = vunpack.c.h.b16 %v2437
          %v2770 = vunpack.c.l.b16 %v2438
          %v2771 = vunpack.c.h.b16 %v2438
          %v2772 = vunpack.c.l.b16 %v2439
          %v2773 = vunpack.c.h.b16 %v2439
          %v2774 = vunpack.c.l.b16 %v2440
          %v2775 = vunpack.c.h.b16 %v2440
          %v2776 = vunpack.c.l.b16 %v2441
          %v2777 = vunpack.c.h.b16 %v2441
          %v2778 = vunpack.c.l.b16 %v2442
          %v2779 = vunpack.c.h.b16 %v2442
          %v2780 = vunpack.c.l.b16 %v2443
          %v2781 = vunpack.c.h.b16 %v2443
          %v2782 = vunpack.c.l.b16 %v2444
          %v2783 = vunpack.c.h.b16 %v2444
          %v2784 = vunpack.c.l.b16 %v2445
          %v2785 = vunpack.c.h.b16 %v2445
          %v2786 = vunpack.c.l.b16 %v2446
          %v2787 = vunpack.c.h.b16 %v2446
          %v2788 = vunpack.c.l.b16 %v2447
          %v2789 = vunpack.c.h.b16 %v2447
          %v2790 = vunpack.c.l.b16 %v2448
          %v2791 = vunpack.c.h.b16 %v2448
          %v2792 = vunpack.c.l.b16 %v2449
          %v2793 = vunpack.c.h.b16 %v2449
          %v2794 = vunpack.c.l.b16 %v2450
          %v2795 = vunpack.c.h.b16 %v2450
          %v2796 = vunpack.c.l.b16 %v2451
          %v2797 = vunpack.c.h.b16 %v2451
          %v2798 = vunpack.c.l.b16 %v2452
          %v2799 = vunpack.c.h.b16 %v2452
          %v2800 = vunpack.c.l.b16 %v2453
          %v2801 = vunpack.c.h.b16 %v2453
          %v2802 = vunpack.c.l.b16 %v2454
          %v2803 = vunpack.c.h.b16 %v2454
          %v2804 = vunpack.c.l.b16 %v2455
          %v2805 = vunpack.c.h.b16 %v2455
          %v2806 = vunpack.c.l.b16 %v2456
          %v2807 = vunpack.c.h.b16 %v2456
          %v2808 = vunpack.c.l.b16 %v2457
          %v2809 = vunpack.c.h.b16 %v2457
          %v2810 = vunpack.c.l.b16 %v2458
          %v2811 = vunpack.c.h.b16 %v2458
          %v2812 = vunpack.c.l.b16 %v2459
          %v2813 = vunpack.c.h.b16 %v2459
          %v2814 = vunpack.c.l.b16 %v2460
          %v2815 = vunpack.c.h.b16 %v2460
          %v2816 = vunpack.c.l.b16 %v2461
          %v2817 = vunpack.c.h.b16 %v2461
          %v2818 = vunpack.c.l.b16 %v2462
          %v2819 = vunpack.c.h.b16 %v2462
          %v2820 = vunpack.c.l.b16 %v2463
          %v2821 = vunpack.c.h.b16 %v2463
          %v2822 = vunpack.c.l.b16 %v2464
          %v2823 = vunpack.c.h.b16 %v2464
          %v2824 = vunpack.c.l.b16 %v2465
          %v2825 = vunpack.c.h.b16 %v2465
          %v2826 = vunpack.c.l.b16 %v2466
          %v2827 = vunpack.c.h.b16 %v2466
          %v2828 = vunpack.c.l.b16 %v2467
          %v2829 = vunpack.c.h.b16 %v2467
          %v2830 = vunpack.c.l.b16 %v2468
          %v2831 = vunpack.c.h.b16 %v2468
          %v2832 = vunpack.c.l.b16 %v2469
          %v2833 = vunpack.c.h.b16 %v2469
          %v2834 = vunpack.c.l.b16 %v2470
          %v2835 = vunpack.c.h.b16 %v2470
          %v2836 = vunpack.c.l.b16 %v2471
          %v2837 = vunpack.c.h.b16 %v2471
          %v2838 = vunpack.c.l.b16 %v2472
          %v2839 = vunpack.c.h.b16 %v2472
          %v2840 = vunpack.c.l.b16 %v2473
          %v2841 = vunpack.c.h.b16 %v2473
          %v2842 = vunpack.c.l.b16 %v2474
          %v2843 = vunpack.c.h.b16 %v2474
          %v2844 = vunpack.c.l.b16 %v2475
          %v2845 = vunpack.c.h.b16 %v2475
          %v2846 = vunpack.c.l.b16 %v2476
          %v2847 = vunpack.c.h.b16 %v2476
          %v2848 = vunpack.c.l.b16 %v2477
          %v2849 = vunpack.c.h.b16 %v2477
          %v2850 = vunpack.c.l.b16 %v2478
          %v2851 = vunpack.c.h.b16 %v2478
          %v2852 = vunpack.c.l.b16 %v2479
          %v2853 = vunpack.c.h.b16 %v2479
          %v2854 = vunpack.c.l.b16 %v2480
          %v2855 = vunpack.c.h.b16 %v2480
          %v2856 = vunpack.c.l.b16 %v2481
          %v2857 = vunpack.c.h.b16 %v2481
          %v2858 = vunpack.c.l.b16 %v2482
          %v2859 = vunpack.c.h.b16 %v2482
          %v2860 = vunpack.c.l.b16 %v2483
          %v2861 = vunpack.c.h.b16 %v2483
          %v2862 = vunpack.c.l.b16 %v2484
          %v2863 = vunpack.c.h.b16 %v2484
          %v2864 = vunpack.c.l.b16 %v2485
          %v2865 = vunpack.c.h.b16 %v2485
          %v2866 = vunpack.c.l.b16 %v2486
          %v2867 = vunpack.c.h.b16 %v2486
          %v2868 = vunpack.c.l.b16 %v2487
          %v2869 = vunpack.c.h.b16 %v2487
          %v2870 = vunpack.c.l.b16 %v2488
          %v2871 = vunpack.c.h.b16 %v2488
          %v2872 = vunpack.c.l.b16 %v2489
          %v2873 = vunpack.c.h.b16 %v2489
          %v2874 = vunpack.c.l.b16 %v2490
          %v2875 = vunpack.c.h.b16 %v2490
          %v2876 = vunpack.c.l.b16 %v2491
          %v2877 = vunpack.c.h.b16 %v2491
          %v2878 = vunpack.c.l.b16 %v2492
          %v2879 = vunpack.c.h.b16 %v2492
          %v2880 = vunpack.c.l.b16 %v2493
          %v2881 = vunpack.c.h.b16 %v2493
          %v2882 = vunpack.c.l.b16 %v2494
          %v2883 = vunpack.c.h.b16 %v2494
          %v2884 = vunpack.c.l.b16 %v2495
          %v2885 = vunpack.c.h.b16 %v2495
          %v2886 = vunpack.c.l.b16 %v2496
          %v2887 = vunpack.c.h.b16 %v2496
          %v2888 = vunpack.c.l.b16 %v2497
          %v2889 = vunpack.c.h.b16 %v2497
          %v2890 = vunpack.c.l.b16 %v2498
          %v2891 = vunpack.c.h.b16 %v2498
          %v2892 = vunpack.c.l.b16 %v2499
          %v2893 = vunpack.c.h.b16 %v2499
          %v2894 = vpack.c.b16 %v2642, %v2638
          %v2895 = vpack.c.b16 %v2643, %v2639
          %v2896 = vpack.c.b16 %v2644, %v2640
          %v2897 = vpack.c.b16 %v2645, %v2641
          %v2898 = vpack.c.b16 %v2650, %v2646
          %v2899 = vpack.c.b16 %v2651, %v2647
          %v2900 = vpack.c.b16 %v2652, %v2648
          %v2901 = vpack.c.b16 %v2653, %v2649
          %v2902 = vpack.c.b16 %v2658, %v2654
          %v2903 = vpack.c.b16 %v2659, %v2655
          %v2904 = vpack.c.b16 %v2660, %v2656
          %v2905 = vpack.c.b16 %v2661, %v2657
          %v2906 = vpack.c.b16 %v2666, %v2662
          %v2907 = vpack.c.b16 %v2667, %v2663
          %v2908 = vpack.c.b16 %v2668, %v2664
          %v2909 = vpack.c.b16 %v2669, %v2665
          %v2910 = vpack.c.b16 %v2674, %v2670
          %v2911 = vpack.c.b16 %v2675, %v2671
          %v2912 = vpack.c.b16 %v2676, %v2672
          %v2913 = vpack.c.b16 %v2677, %v2673
          %v2914 = vpack.c.b16 %v2682, %v2678
          %v2915 = vpack.c.b16 %v2683, %v2679
          %v2916 = vpack.c.b16 %v2684, %v2680
          %v2917 = vpack.c.b16 %v2685, %v2681
          %v2918 = vpack.c.b16 %v2690, %v2686
          %v2919 = vpack.c.b16 %v2691, %v2687
          %v2920 = vpack.c.b16 %v2692, %v2688
          %v2921 = vpack.c.b16 %v2693, %v2689
          %v2922 = vpack.c.b16 %v2698, %v2694
          %v2923 = vpack.c.b16 %v2699, %v2695
          %v2924 = vpack.c.b16 %v2700, %v2696
          %v2925 = vpack.c.b16 %v2701, %v2697
          %v2926 = vpack.c.b16 %v2706, %v2702
          %v2927 = vpack.c.b16 %v2707, %v2703
          %v2928 = vpack.c.b16 %v2708, %v2704
          %v2929 = vpack.c.b16 %v2709, %v2705
          %v2930 = vpack.c.b16 %v2714, %v2710
          %v2931 = vpack.c.b16 %v2715, %v2711
          %v2932 = vpack.c.b16 %v2716, %v2712
          %v2933 = vpack.c.b16 %v2717, %v2713
          %v2934 = vpack.c.b16 %v2722, %v2718
          %v2935 = vpack.c.b16 %v2723, %v2719
          %v2936 = vpack.c.b16 %v2724, %v2720
          %v2937 = vpack.c.b16 %v2725, %v2721
          %v2938 = vpack.c.b16 %v2730, %v2726
          %v2939 = vpack.c.b16 %v2731, %v2727
          %v2940 = vpack.c.b16 %v2732, %v2728
          %v2941 = vpack.c.b16 %v2733, %v2729
          %v2942 = vpack.c.b16 %v2738, %v2734
          %v2943 = vpack.c.b16 %v2739, %v2735
          %v2944 = vpack.c.b16 %v2740, %v2736
          %v2945 = vpack.c.b16 %v2741, %v2737
          %v2946 = vpack.c.b16 %v2746, %v2742
          %v2947 = vpack.c.b16 %v2747, %v2743
          %v2948 = vpack.c.b16 %v2748, %v2744
          %v2949 = vpack.c.b16 %v2749, %v2745
          %v2950 = vpack.c.b16 %v2754, %v2750
          %v2951 = vpack.c.b16 %v2755, %v2751
          %v2952 = vpack.c.b16 %v2756, %v2752
          %v2953 = vpack.c.b16 %v2757, %v2753
          %v2954 = vpack.c.b16 %v2762, %v2758
          %v2955 = vpack.c.b16 %v2763, %v2759
          %v2956 = vpack.c.b16 %v2764, %v2760
          %v2957 = vpack.c.b16 %v2765, %v2761
          %v2958 = vpack.c.b16 %v2770, %v2766
          %v2959 = vpack.c.b16 %v2771, %v2767
          %v2960 = vpack.c.b16 %v2772, %v2768
          %v2961 = vpack.c.b16 %v2773, %v2769
          %v2962 = vpack.c.b16 %v2778, %v2774
          %v2963 = vpack.c.b16 %v2779, %v2775
          %v2964 = vpack.c.b16 %v2780, %v2776
          %v2965 = vpack.c.b16 %v2781, %v2777
          %v2966 = vpack.c.b16 %v2786, %v2782
          %v2967 = vpack.c.b16 %v2787, %v2783
          %v2968 = vpack.c.b16 %v2788, %v2784
          %v2969 = vpack.c.b16 %v2789, %v2785
          %v2970 = vpack.c.b16 %v2794, %v2790
          %v2971 = vpack.c.b16 %v2795, %v2791
          %v2972 = vpack.c.b16 %v2796, %v2792
          %v2973 = vpack.c.b16 %v2797, %v2793
          %v2974 = vpack.c.b16 %v2802, %v2798
          %v2975 = vpack.c.b16 %v2803, %v2799
          %v2976 = vpack.c.b16 %v2804, %v2800
          %v2977 = vpack.c.b16 %v2805, %v2801
          %v2978 = vpack.c.b16 %v2810, %v2806
          %v2979 = vpack.c.b16 %v2811, %v2807
          %v2980 = vpack.c.b16 %v2812, %v2808
          %v2981 = vpack.c.b16 %v2813, %v2809
          %v2982 = vpack.c.b16 %v2818, %v2814
          %v2983 = vpack.c.b16 %v2819, %v2815
          %v2984 = vpack.c.b16 %v2820, %v2816
          %v2985 = vpack.c.b16 %v2821, %v2817
          %v2986 = vpack.c.b16 %v2826, %v2822
          %v2987 = vpack.c.b16 %v2827, %v2823
          %v2988 = vpack.c.b16 %v2828, %v2824
          %v2989 = vpack.c.b16 %v2829, %v2825
          %v2990 = vpack.c.b16 %v2834, %v2830
          %v2991 = vpack.c.b16 %v2835, %v2831
          %v2992 = vpack.c.b16 %v2836, %v2832
          %v2993 = vpack.c.b16 %v2837, %v2833
          %v2994 = vpack.c.b16 %v2842, %v2838
          %v2995 = vpack.c.b16 %v2843, %v2839
          %v2996 = vpack.c.b16 %v2844, %v2840
          %v2997 = vpack.c.b16 %v2845, %v2841
          %v2998 = vpack.c.b16 %v2850, %v2846
          %v2999 = vpack.c.b16 %v2851, %v2847
          %v3000 = vpack.c.b16 %v2852, %v2848
          %v3001 = vpack.c.b16 %v2853, %v2849
          %v3002 = vpack.c.b16 %v2858, %v2854
          %v3003 = vpack.c.b16 %v2859, %v2855
          %v3004 = vpack.c.b16 %v2860, %v2856
          %v3005 = vpack.c.b16 %v2861, %v2857
          %v3006 = vpack.c.b16 %v2866, %v2862
          %v3007 = vpack.c.b16 %v2867, %v2863
          %v3008 = vpack.c.b16 %v2868, %v2864
          %v3009 = vpack.c.b16 %v2869, %v2865
          %v3010 = vpack.c.b16 %v2874, %v2870
          %v3011 = vpack.c.b16 %v2875, %v2871
          %v3012 = vpack.c.b16 %v2876, %v2872
          %v3013 = vpack.c.b16 %v2877, %v2873
          %v3014 = vpack.c.b16 %v2882, %v2878
          %v3015 = vpack.c.b16 %v2883, %v2879
          %v3016 = vpack.c.b16 %v2884, %v2880
          %v3017 = vpack.c.b16 %v2885, %v2881
          %v3018 = vpack.c.b16 %v2890, %v2886
          %v3019 = vpack.c.b16 %v2891, %v2887
          %v3020 = vpack.c.b16 %v2892, %v2888
          %v3021 = vpack.c.b16 %v2893, %v2889
          %3150 = vmatpush.bf16.msra.mxu0 %v2922
          %3151 = vmatpush.bf16.msra.mxu0 %v2918
          %3152 = vmatpush.bf16.msra.mxu0 %v2914
          %3153 = vmatpush.bf16.msra.mxu0 %v2910
          %3154 = vmatpush.bf16.msra.mxu0 %v2906
          %3155 = vmatpush.bf16.msra.mxu0 %v2902
          %3156 = vmatpush.bf16.msra.mxu0 %v2898
          %3157 = vmatpush.bf16.msra.mxu0 %v2894
          %3158 = vmatmul.bf16.gmra.mxu0 %v2368
          %v3159 = vpop.f32.mrf.mxu0
          %v3160 = vadd.f32 %v2502, %v3159
          %v3161 = vpop.f32.mrf.mxu0
          %3162 = vdwg.mxu0
          %3163 = vmatpush.bf16.msra.mxu0 %v2954
          %3164 = vmatpush.bf16.msra.mxu0 %v2950
          %3165 = vmatpush.bf16.msra.mxu0 %v2946
          %3166 = vmatpush.bf16.msra.mxu0 %v2942
          %3167 = vmatpush.bf16.msra.mxu0 %v2938
          %3168 = vmatpush.bf16.msra.mxu0 %v2934
          %3169 = vmatpush.bf16.msra.mxu0 %v2930
          %3170 = vmatpush.bf16.msra.mxu0 %v2926
          %3171 = vmatmul.bf16.gmra.mxu0 %v2369
          %v3172 = vpop.f32.mrf.mxu0
          %v3173 = vadd.f32 %v3160, %v3172
          %v3174 = vpop.f32.mrf.mxu0
          %3175 = vdwg.mxu0
          %3176 = vmatpush.bf16.msra.mxu0 %v2986
          %3177 = vmatpush.bf16.msra.mxu0 %v2982
          %3178 = vmatpush.bf16.msra.mxu0 %v2978
          %3179 = vmatpush.bf16.msra.mxu0 %v2974
          %3180 = vmatpush.bf16.msra.mxu0 %v2970
          %3181 = vmatpush.bf16.msra.mxu0 %v2966
          %3182 = vmatpush.bf16.msra.mxu0 %v2962
          %3183 = vmatpush.bf16.msra.mxu0 %v2958
          %3184 = vmatmul.bf16.gmra.mxu0 %v2370
          %v3185 = vpop.f32.mrf.mxu0
          %v3186 = vadd.f32 %v3173, %v3185
          %v3187 = vpop.f32.mrf.mxu0
          %3188 = vdwg.mxu0
          %3189 = vmatpush.bf16.msra.mxu0 %v3018
          %3190 = vmatpush.bf16.msra.mxu0 %v3014
          %3191 = vmatpush.bf16.msra.mxu0 %v3010
          %3192 = vmatpush.bf16.msra.mxu0 %v3006
          %3193 = vmatpush.bf16.msra.mxu0 %v3002
          %3194 = vmatpush.bf16.msra.mxu0 %v2998
          %3195 = vmatpush.bf16.msra.mxu0 %v2994
          %3196 = vmatpush.bf16.msra.mxu0 %v2990
          %3197 = vmatmul.bf16.gmra.mxu0 %v2371
          %v3198 = vpop.f32.mrf.mxu0
          %v3199 = vadd.f32 %v3186, %v3198
          %v3200 = vpop.f32.mrf.mxu0
          %3201 = vdwg.mxu0
          %3202 = vmatpush.bf16.msra.mxu0 %v2923
          %3203 = vmatpush.bf16.msra.mxu0 %v2919
          %3204 = vmatpush.bf16.msra.mxu0 %v2915
          %3205 = vmatpush.bf16.msra.mxu0 %v2911
          %3206 = vmatpush.bf16.msra.mxu0 %v2907
          %3207 = vmatpush.bf16.msra.mxu0 %v2903
          %3208 = vmatpush.bf16.msra.mxu0 %v2899
          %3209 = vmatpush.bf16.msra.mxu0 %v2895
          %3210 = vmatmul.bf16.gmra.mxu0 %v2368
          %v3211 = vpop.f32.mrf.mxu0
          %v3212 = vadd.f32 %v2503, %v3211
          %v3213 = vpop.f32.mrf.mxu0
          %3214 = vdwg.mxu0
          %3215 = vmatpush.bf16.msra.mxu0 %v2955
          %3216 = vmatpush.bf16.msra.mxu0 %v2951
          %3217 = vmatpush.bf16.msra.mxu0 %v2947
          %3218 = vmatpush.bf16.msra.mxu0 %v2943
          %3219 = vmatpush.bf16.msra.mxu0 %v2939
          %3220 = vmatpush.bf16.msra.mxu0 %v2935
          %3221 = vmatpush.bf16.msra.mxu0 %v2931
          %3222 = vmatpush.bf16.msra.mxu0 %v2927
          %3223 = vmatmul.bf16.gmra.mxu0 %v2369
          %v3224 = vpop.f32.mrf.mxu0
          %v3225 = vadd.f32 %v3212, %v3224
          %v3226 = vpop.f32.mrf.mxu0
          %3227 = vdwg.mxu0
          %3228 = vmatpush.bf16.msra.mxu0 %v2987
          %3229 = vmatpush.bf16.msra.mxu0 %v2983
          %3230 = vmatpush.bf16.msra.mxu0 %v2979
          %3231 = vmatpush.bf16.msra.mxu0 %v2975
          %3232 = vmatpush.bf16.msra.mxu0 %v2971
          %3233 = vmatpush.bf16.msra.mxu0 %v2967
          %3234 = vmatpush.bf16.msra.mxu0 %v2963
          %3235 = vmatpush.bf16.msra.mxu0 %v2959
          %3236 = vmatmul.bf16.gmra.mxu0 %v2370
          %v3237 = vpop.f32.mrf.mxu0
          %v3238 = vadd.f32 %v3225, %v3237
          %v3239 = vpop.f32.mrf.mxu0
          %3240 = vdwg.mxu0
          %3241 = vmatpush.bf16.msra.mxu0 %v3019
          %3242 = vmatpush.bf16.msra.mxu0 %v3015
          %3243 = vmatpush.bf16.msra.mxu0 %v3011
          %3244 = vmatpush.bf16.msra.mxu0 %v3007
          %3245 = vmatpush.bf16.msra.mxu0 %v3003
          %3246 = vmatpush.bf16.msra.mxu0 %v2999
          %3247 = vmatpush.bf16.msra.mxu0 %v2995
          %3248 = vmatpush.bf16.msra.mxu0 %v2991
          %3249 = vmatmul.bf16.gmra.mxu0 %v2371
          %v3250 = vpop.f32.mrf.mxu0
          %v3251 = vadd.f32 %v3238, %v3250
          %v3252 = vpop.f32.mrf.mxu0
          %3253 = vdwg.mxu0
          %3254 = vmatpush.bf16.msra.mxu0 %v2924
          %3255 = vmatpush.bf16.msra.mxu0 %v2920
          %3256 = vmatpush.bf16.msra.mxu0 %v2916
          %3257 = vmatpush.bf16.msra.mxu0 %v2912
          %3258 = vmatpush.bf16.msra.mxu0 %v2908
          %3259 = vmatpush.bf16.msra.mxu0 %v2904
          %3260 = vmatpush.bf16.msra.mxu0 %v2900
          %3261 = vmatpush.bf16.msra.mxu0 %v2896
          %3262 = vmatmul.bf16.gmra.mxu0 %v2368
          %v3263 = vpop.f32.mrf.mxu0
          %v3264 = vadd.f32 %v2504, %v3263
          %v3265 = vpop.f32.mrf.mxu0
          %3266 = vdwg.mxu0
          %3267 = vmatpush.bf16.msra.mxu0 %v2956
          %3268 = vmatpush.bf16.msra.mxu0 %v2952
          %3269 = vmatpush.bf16.msra.mxu0 %v2948
          %3270 = vmatpush.bf16.msra.mxu0 %v2944
          %3271 = vmatpush.bf16.msra.mxu0 %v2940
          %3272 = vmatpush.bf16.msra.mxu0 %v2936
          %3273 = vmatpush.bf16.msra.mxu0 %v2932
          %3274 = vmatpush.bf16.msra.mxu0 %v2928
          %3275 = vmatmul.bf16.gmra.mxu0 %v2369
          %v3276 = vpop.f32.mrf.mxu0
          %v3277 = vadd.f32 %v3264, %v3276
          %v3278 = vpop.f32.mrf.mxu0
          %3279 = vdwg.mxu0
          %3280 = vmatpush.bf16.msra.mxu0 %v2988
          %3281 = vmatpush.bf16.msra.mxu0 %v2984
          %3282 = vmatpush.bf16.msra.mxu0 %v2980
          %3283 = vmatpush.bf16.msra.mxu0 %v2976
          %3284 = vmatpush.bf16.msra.mxu0 %v2972
          %3285 = vmatpush.bf16.msra.mxu0 %v2968
          %3286 = vmatpush.bf16.msra.mxu0 %v2964
          %3287 = vmatpush.bf16.msra.mxu0 %v2960
          %3288 = vmatmul.bf16.gmra.mxu0 %v2370
          %v3289 = vpop.f32.mrf.mxu0
          %v3290 = vadd.f32 %v3277, %v3289
          %v3291 = vpop.f32.mrf.mxu0
          %3292 = vdwg.mxu0
          %3293 = vmatpush.bf16.msra.mxu0 %v3020
          %3294 = vmatpush.bf16.msra.mxu0 %v3016
          %3295 = vmatpush.bf16.msra.mxu0 %v3012
          %3296 = vmatpush.bf16.msra.mxu0 %v3008
          %3297 = vmatpush.bf16.msra.mxu0 %v3004
          %3298 = vmatpush.bf16.msra.mxu0 %v3000
          %3299 = vmatpush.bf16.msra.mxu0 %v2996
          %3300 = vmatpush.bf16.msra.mxu0 %v2992
          %3301 = vmatmul.bf16.gmra.mxu0 %v2371
          %v3302 = vpop.f32.mrf.mxu0
          %v3303 = vadd.f32 %v3290, %v3302
          %v3304 = vpop.f32.mrf.mxu0
          %3305 = vdwg.mxu0
          %3306 = vmatpush.bf16.msra.mxu0 %v2925
          %3307 = vmatpush.bf16.msra.mxu0 %v2921
          %3308 = vmatpush.bf16.msra.mxu0 %v2917
          %3309 = vmatpush.bf16.msra.mxu0 %v2913
          %3310 = vmatpush.bf16.msra.mxu0 %v2909
          %3311 = vmatpush.bf16.msra.mxu0 %v2905
          %3312 = vmatpush.bf16.msra.mxu0 %v2901
          %3313 = vmatpush.bf16.msra.mxu0 %v2897
          %3314 = vmatmul.bf16.gmra.mxu0 %v2368
          %v3315 = vpop.f32.mrf.mxu0
          %v3316 = vadd.f32 %v2505, %v3315
          %v3317 = vpop.f32.mrf.mxu0
          %3318 = vdwg.mxu0
          %3319 = vmatpush.bf16.msra.mxu0 %v2957
          %3320 = vmatpush.bf16.msra.mxu0 %v2953
          %3321 = vmatpush.bf16.msra.mxu0 %v2949
          %3322 = vmatpush.bf16.msra.mxu0 %v2945
          %3323 = vmatpush.bf16.msra.mxu0 %v2941
          %3324 = vmatpush.bf16.msra.mxu0 %v2937
          %3325 = vmatpush.bf16.msra.mxu0 %v2933
          %3326 = vmatpush.bf16.msra.mxu0 %v2929
          %3327 = vmatmul.bf16.gmra.mxu0 %v2369
          %v3328 = vpop.f32.mrf.mxu0
          %v3329 = vadd.f32 %v3316, %v3328
          %v3330 = vpop.f32.mrf.mxu0
          %3331 = vdwg.mxu0
          %3332 = vmatpush.bf16.msra.mxu0 %v2989
          %3333 = vmatpush.bf16.msra.mxu0 %v2985
          %3334 = vmatpush.bf16.msra.mxu0 %v2981
          %3335 = vmatpush.bf16.msra.mxu0 %v2977
          %3336 = vmatpush.bf16.msra.mxu0 %v2973
          %3337 = vmatpush.bf16.msra.mxu0 %v2969
          %3338 = vmatpush.bf16.msra.mxu0 %v2965
          %3339 = vmatpush.bf16.msra.mxu0 %v2961
          %3340 = vmatmul.bf16.gmra.mxu0 %v2370
          %v3341 = vpop.f32.mrf.mxu0
          %v3342 = vadd.f32 %v3329, %v3341
          %v3343 = vpop.f32.mrf.mxu0
          %3344 = vdwg.mxu0
          %3345 = vmatpush.bf16.msra.mxu0 %v3021
          %3346 = vmatpush.bf16.msra.mxu0 %v3017
          %3347 = vmatpush.bf16.msra.mxu0 %v3013
          %3348 = vmatpush.bf16.msra.mxu0 %v3009
          %3349 = vmatpush.bf16.msra.mxu0 %v3005
          %3350 = vmatpush.bf16.msra.mxu0 %v3001
          %3351 = vmatpush.bf16.msra.mxu0 %v2997
          %3352 = vmatpush.bf16.msra.mxu0 %v2993
          %3353 = vmatmul.bf16.gmra.mxu0 %v2371
          %v3354 = vpop.f32.mrf.mxu0
          %v3355 = vadd.f32 %v3342, %v3354
          %v3356 = vpop.f32.mrf.mxu0
          %3357 = vdwg.mxu0
          %v3358 = vmax.f32 %v3199, 0.0
          %v3359 = vmax.f32 %v3251, 0.0
          %v3360 = vmax.f32 %v3303, 0.0
          %v3361 = vmax.f32 %v3355, 0.0
          %v3362 = vpack.c.bf16 %v3358, %v3358
          %v3363 = vpack.c.bf16 %v3359, %v3359
          %v3364 = vpack.c.bf16 %v3360, %v3360
          %v3365 = vpack.c.bf16 %v3361, %v3361
          %v3366 = vld [vmem:[%s7] sm:$0xff]
          %v3367 = vld [vmem:[%s7 + $0x8] sm:$0xff]
          %v3368 = vld [vmem:[%s7 + $0x10] sm:$0xff]
          %v3369 = vld [vmem:[%s7 + $0x18] sm:$0xff]
          %v3370 = vld [vmem:[%s7 + $0x20] sm:$0xff]
          %v3371 = vld [vmem:[%s7 + $0x28] sm:$0xff]
          %v3372 = vld [vmem:[%s7 + $0x30] sm:$0xff]
          %v3373 = vld [vmem:[%s7 + $0x38] sm:$0xff]
          %v3374 = vld [vmem:[%s7 + $0x40] sm:$0xff]
          %v3375 = vld [vmem:[%s7 + $0x48] sm:$0xff]
          %v3376 = vld [vmem:[%s7 + $0x50] sm:$0xff]
          %v3377 = vld [vmem:[%s7 + $0x58] sm:$0xff]
          %v3378 = vld [vmem:[%s7 + $0x60] sm:$0xff]
          %v3379 = vld [vmem:[%s7 + $0x68] sm:$0xff]
          %v3380 = vld [vmem:[%s7 + $0x70] sm:$0xff]
          %v3381 = vld [vmem:[%s7 + $0x78] sm:$0xff]
          %v3382 = vld [vmem:[%s7 + $0x80] sm:$0xff]
          %v3383 = vld [vmem:[%s7 + $0x88] sm:$0xff]
          %v3384 = vld [vmem:[%s7 + $0x90] sm:$0xff]
          %v3385 = vld [vmem:[%s7 + $0x98] sm:$0xff]
          %v3386 = vld [vmem:[%s7 + $0xa0] sm:$0xff]
          %v3387 = vld [vmem:[%s7 + $0xa8] sm:$0xff]
          %v3388 = vld [vmem:[%s7 + $0xb0] sm:$0xff]
          %v3389 = vld [vmem:[%s7 + $0xb8] sm:$0xff]
          %v3390 = vld [vmem:[%s7 + $0xc0] sm:$0xff]
          %v3391 = vld [vmem:[%s7 + $0xc8] sm:$0xff]
          %v3392 = vld [vmem:[%s7 + $0xd0] sm:$0xff]
          %v3393 = vld [vmem:[%s7 + $0xd8] sm:$0xff]
          %v3394 = vld [vmem:[%s7 + $0xe0] sm:$0xff]
          %v3395 = vld [vmem:[%s7 + $0xe8] sm:$0xff]
          %v3396 = vld [vmem:[%s7 + $0xf0] sm:$0xff]
          %v3397 = vld [vmem:[%s7 + $0xf8] sm:$0xff]
          %v3398 = vld [vmem:[%s7 + $0x100] sm:$0xff]
          %v3399 = vld [vmem:[%s7 + $0x108] sm:$0xff]
          %v3400 = vld [vmem:[%s7 + $0x110] sm:$0xff]
          %v3401 = vld [vmem:[%s7 + $0x118] sm:$0xff]
          %v3402 = vld [vmem:[%s7 + $0x120] sm:$0xff]
          %v3403 = vld [vmem:[%s7 + $0x128] sm:$0xff]
          %v3404 = vld [vmem:[%s7 + $0x130] sm:$0xff]
          %v3405 = vld [vmem:[%s7 + $0x138] sm:$0xff]
          %v3406 = vld [vmem:[%s7 + $0x140] sm:$0xff]
          %v3407 = vld [vmem:[%s7 + $0x148] sm:$0xff]
          %v3408 = vld [vmem:[%s7 + $0x150] sm:$0xff]
          %v3409 = vld [vmem:[%s7 + $0x158] sm:$0xff]
          %v3410 = vld [vmem:[%s7 + $0x160] sm:$0xff]
          %v3411 = vld [vmem:[%s7 + $0x168] sm:$0xff]
          %v3412 = vld [vmem:[%s7 + $0x170] sm:$0xff]
          %v3413 = vld [vmem:[%s7 + $0x178] sm:$0xff]
          %v3414 = vld [vmem:[%s7 + $0x180] sm:$0xff]
          %v3415 = vld [vmem:[%s7 + $0x188] sm:$0xff]
          %v3416 = vld [vmem:[%s7 + $0x190] sm:$0xff]
          %v3417 = vld [vmem:[%s7 + $0x198] sm:$0xff]
          %v3418 = vld [vmem:[%s7 + $0x1a0] sm:$0xff]
          %v3419 = vld [vmem:[%s7 + $0x1a8] sm:$0xff]
          %v3420 = vld [vmem:[%s7 + $0x1b0] sm:$0xff]
          %v3421 = vld [vmem:[%s7 + $0x1b8] sm:$0xff]
          %v3422 = vld [vmem:[%s7 + $0x1c0] sm:$0xff]
          %v3423 = vld [vmem:[%s7 + $0x1c8] sm:$0xff]
          %v3424 = vld [vmem:[%s7 + $0x1d0] sm:$0xff]
          %v3425 = vld [vmem:[%s7 + $0x1d8] sm:$0xff]
          %v3426 = vld [vmem:[%s7 + $0x1e0] sm:$0xff]
          %v3427 = vld [vmem:[%s7 + $0x1e8] sm:$0xff]
          %v3428 = vld [vmem:[%s7 + $0x1f0] sm:$0xff]
          %v3429 = vld [vmem:[%s7 + $0x1f8] sm:$0xff]
          %v3430 = vld [vmem:[%s7 + $0x200] sm:$0xff]
          %v3431 = vld [vmem:[%s7 + $0x208] sm:$0xff]
          %v3432 = vld [vmem:[%s7 + $0x210] sm:$0xff]
          %v3433 = vld [vmem:[%s7 + $0x218] sm:$0xff]
          %v3434 = vld [vmem:[%s7 + $0x220] sm:$0xff]
          %v3435 = vld [vmem:[%s7 + $0x228] sm:$0xff]
          %v3436 = vld [vmem:[%s7 + $0x230] sm:$0xff]
          %v3437 = vld [vmem:[%s7 + $0x238] sm:$0xff]
          %v3438 = vld [vmem:[%s7 + $0x240] sm:$0xff]
          %v3439 = vld [vmem:[%s7 + $0x248] sm:$0xff]
          %v3440 = vld [vmem:[%s7 + $0x250] sm:$0xff]
          %v3441 = vld [vmem:[%s7 + $0x258] sm:$0xff]
          %v3442 = vld [vmem:[%s7 + $0x260] sm:$0xff]
          %v3443 = vld [vmem:[%s7 + $0x268] sm:$0xff]
          %v3444 = vld [vmem:[%s7 + $0x270] sm:$0xff]
          %v3445 = vld [vmem:[%s7 + $0x278] sm:$0xff]
          %v3446 = vld [vmem:[%s7 + $0x280] sm:$0xff]
          %v3447 = vld [vmem:[%s7 + $0x288] sm:$0xff]
          %v3448 = vld [vmem:[%s7 + $0x290] sm:$0xff]
          %v3449 = vld [vmem:[%s7 + $0x298] sm:$0xff]
          %v3450 = vld [vmem:[%s7 + $0x2a0] sm:$0xff]
          %v3451 = vld [vmem:[%s7 + $0x2a8] sm:$0xff]
          %v3452 = vld [vmem:[%s7 + $0x2b0] sm:$0xff]
          %v3453 = vld [vmem:[%s7 + $0x2b8] sm:$0xff]
          %v3454 = vld [vmem:[%s7 + $0x2c0] sm:$0xff]
          %v3455 = vld [vmem:[%s7 + $0x2c8] sm:$0xff]
          %v3456 = vld [vmem:[%s7 + $0x2d0] sm:$0xff]
          %v3457 = vld [vmem:[%s7 + $0x2d8] sm:$0xff]
          %v3458 = vld [vmem:[%s7 + $0x2e0] sm:$0xff]
          %v3459 = vld [vmem:[%s7 + $0x2e8] sm:$0xff]
          %v3460 = vld [vmem:[%s7 + $0x2f0] sm:$0xff]
          %v3461 = vld [vmem:[%s7 + $0x2f8] sm:$0xff]
          %v3462 = vld [vmem:[%s7 + $0x300] sm:$0xff]
          %v3463 = vld [vmem:[%s7 + $0x308] sm:$0xff]
          %v3464 = vld [vmem:[%s7 + $0x310] sm:$0xff]
          %v3465 = vld [vmem:[%s7 + $0x318] sm:$0xff]
          %v3466 = vld [vmem:[%s7 + $0x320] sm:$0xff]
          %v3467 = vld [vmem:[%s7 + $0x328] sm:$0xff]
          %v3468 = vld [vmem:[%s7 + $0x330] sm:$0xff]
          %v3469 = vld [vmem:[%s7 + $0x338] sm:$0xff]
          %v3470 = vld [vmem:[%s7 + $0x340] sm:$0xff]
          %v3471 = vld [vmem:[%s7 + $0x348] sm:$0xff]
          %v3472 = vld [vmem:[%s7 + $0x350] sm:$0xff]
          %v3473 = vld [vmem:[%s7 + $0x358] sm:$0xff]
          %v3474 = vld [vmem:[%s7 + $0x360] sm:$0xff]
          %v3475 = vld [vmem:[%s7 + $0x368] sm:$0xff]
          %v3476 = vld [vmem:[%s7 + $0x370] sm:$0xff]
          %v3477 = vld [vmem:[%s7 + $0x378] sm:$0xff]
          %v3478 = vld [vmem:[%s7 + $0x380] sm:$0xff]
          %v3479 = vld [vmem:[%s7 + $0x388] sm:$0xff]
          %v3480 = vld [vmem:[%s7 + $0x390] sm:$0xff]
          %v3481 = vld [vmem:[%s7 + $0x398] sm:$0xff]
          %v3482 = vld [vmem:[%s7 + $0x3a0] sm:$0xff]
          %v3483 = vld [vmem:[%s7 + $0x3a8] sm:$0xff]
          %v3484 = vld [vmem:[%s7 + $0x3b0] sm:$0xff]
          %v3485 = vld [vmem:[%s7 + $0x3b8] sm:$0xff]
          %v3486 = vld [vmem:[%s7 + $0x3c0] sm:$0xff]
          %v3487 = vld [vmem:[%s7 + $0x3c8] sm:$0xff]
          %v3488 = vld [vmem:[%s7 + $0x3d0] sm:$0xff]
          %v3489 = vld [vmem:[%s7 + $0x3d8] sm:$0xff]
          %v3490 = vld [vmem:[%s7 + $0x3e0] sm:$0xff]
          %v3491 = vld [vmem:[%s7 + $0x3e8] sm:$0xff]
          %v3492 = vld [vmem:[%s7 + $0x3f0] sm:$0xff]
          %v3493 = vld [vmem:[%s7 + $0x3f8] sm:$0xff]
          %v3494 = vld [vmem:[%s8] sm:$0xf]
          %v3496 = vperm.slane %v3494, 0
          %v3497 = vperm.slane %v3494, 1
          %v3498 = vperm.slane %v3494, 2
          %v3499 = vperm.slane %v3494, 3
          %v3632 = vunpack.c.l.b16 %v3366
          %v3633 = vunpack.c.h.b16 %v3366
          %v3634 = vunpack.c.l.b16 %v3367
          %v3635 = vunpack.c.h.b16 %v3367
          %v3636 = vunpack.c.l.b16 %v3368
          %v3637 = vunpack.c.h.b16 %v3368
          %v3638 = vunpack.c.l.b16 %v3369
          %v3639 = vunpack.c.h.b16 %v3369
          %v3640 = vunpack.c.l.b16 %v3370
          %v3641 = vunpack.c.h.b16 %v3370
          %v3642 = vunpack.c.l.b16 %v3371
          %v3643 = vunpack.c.h.b16 %v3371
          %v3644 = vunpack.c.l.b16 %v3372
          %v3645 = vunpack.c.h.b16 %v3372
          %v3646 = vunpack.c.l.b16 %v3373
          %v3647 = vunpack.c.h.b16 %v3373
          %v3648 = vunpack.c.l.b16 %v3374
          %v3649 = vunpack.c.h.b16 %v3374
          %v3650 = vunpack.c.l.b16 %v3375
          %v3651 = vunpack.c.h.b16 %v3375
          %v3652 = vunpack.c.l.b16 %v3376
          %v3653 = vunpack.c.h.b16 %v3376
          %v3654 = vunpack.c.l.b16 %v3377
          %v3655 = vunpack.c.h.b16 %v3377
          %v3656 = vunpack.c.l.b16 %v3378
          %v3657 = vunpack.c.h.b16 %v3378
          %v3658 = vunpack.c.l.b16 %v3379
          %v3659 = vunpack.c.h.b16 %v3379
          %v3660 = vunpack.c.l.b16 %v3380
          %v3661 = vunpack.c.h.b16 %v3380
          %v3662 = vunpack.c.l.b16 %v3381
          %v3663 = vunpack.c.h.b16 %v3381
          %v3664 = vunpack.c.l.b16 %v3382
          %v3665 = vunpack.c.h.b16 %v3382
          %v3666 = vunpack.c.l.b16 %v3383
          %v3667 = vunpack.c.h.b16 %v3383
          %v3668 = vunpack.c.l.b16 %v3384
          %v3669 = vunpack.c.h.b16 %v3384
          %v3670 = vunpack.c.l.b16 %v3385
          %v3671 = vunpack.c.h.b16 %v3385
          %v3672 = vunpack.c.l.b16 %v3386
          %v3673 = vunpack.c.h.b16 %v3386
          %v3674 = vunpack.c.l.b16 %v3387
          %v3675 = vunpack.c.h.b16 %v3387
          %v3676 = vunpack.c.l.b16 %v3388
          %v3677 = vunpack.c.h.b16 %v3388
          %v3678 = vunpack.c.l.b16 %v3389
          %v3679 = vunpack.c.h.b16 %v3389
          %v3680 = vunpack.c.l.b16 %v3390
          %v3681 = vunpack.c.h.b16 %v3390
          %v3682 = vunpack.c.l.b16 %v3391
          %v3683 = vunpack.c.h.b16 %v3391
          %v3684 = vunpack.c.l.b16 %v3392
          %v3685 = vunpack.c.h.b16 %v3392
          %v3686 = vunpack.c.l.b16 %v3393
          %v3687 = vunpack.c.h.b16 %v3393
          %v3688 = vunpack.c.l.b16 %v3394
          %v3689 = vunpack.c.h.b16 %v3394
          %v3690 = vunpack.c.l.b16 %v3395
          %v3691 = vunpack.c.h.b16 %v3395
          %v3692 = vunpack.c.l.b16 %v3396
          %v3693 = vunpack.c.h.b16 %v3396
          %v3694 = vunpack.c.l.b16 %v3397
          %v3695 = vunpack.c.h.b16 %v3397
          %v3696 = vunpack.c.l.b16 %v3398
          %v3697 = vunpack.c.h.b16 %v3398
          %v3698 = vunpack.c.l.b16 %v3399
          %v3699 = vunpack.c.h.b16 %v3399
          %v3700 = vunpack.c.l.b16 %v3400
          %v3701 = vunpack.c.h.b16 %v3400
          %v3702 = vunpack.c.l.b16 %v3401
          %v3703 = vunpack.c.h.b16 %v3401
          %v3704 = vunpack.c.l.b16 %v3402
          %v3705 = vunpack.c.h.b16 %v3402
          %v3706 = vunpack.c.l.b16 %v3403
          %v3707 = vunpack.c.h.b16 %v3403
          %v3708 = vunpack.c.l.b16 %v3404
          %v3709 = vunpack.c.h.b16 %v3404
          %v3710 = vunpack.c.l.b16 %v3405
          %v3711 = vunpack.c.h.b16 %v3405
          %v3712 = vunpack.c.l.b16 %v3406
          %v3713 = vunpack.c.h.b16 %v3406
          %v3714 = vunpack.c.l.b16 %v3407
          %v3715 = vunpack.c.h.b16 %v3407
          %v3716 = vunpack.c.l.b16 %v3408
          %v3717 = vunpack.c.h.b16 %v3408
          %v3718 = vunpack.c.l.b16 %v3409
          %v3719 = vunpack.c.h.b16 %v3409
          %v3720 = vunpack.c.l.b16 %v3410
          %v3721 = vunpack.c.h.b16 %v3410
          %v3722 = vunpack.c.l.b16 %v3411
          %v3723 = vunpack.c.h.b16 %v3411
          %v3724 = vunpack.c.l.b16 %v3412
          %v3725 = vunpack.c.h.b16 %v3412
          %v3726 = vunpack.c.l.b16 %v3413
          %v3727 = vunpack.c.h.b16 %v3413
          %v3728 = vunpack.c.l.b16 %v3414
          %v3729 = vunpack.c.h.b16 %v3414
          %v3730 = vunpack.c.l.b16 %v3415
          %v3731 = vunpack.c.h.b16 %v3415
          %v3732 = vunpack.c.l.b16 %v3416
          %v3733 = vunpack.c.h.b16 %v3416
          %v3734 = vunpack.c.l.b16 %v3417
          %v3735 = vunpack.c.h.b16 %v3417
          %v3736 = vunpack.c.l.b16 %v3418
          %v3737 = vunpack.c.h.b16 %v3418
          %v3738 = vunpack.c.l.b16 %v3419
          %v3739 = vunpack.c.h.b16 %v3419
          %v3740 = vunpack.c.l.b16 %v3420
          %v3741 = vunpack.c.h.b16 %v3420
          %v3742 = vunpack.c.l.b16 %v3421
          %v3743 = vunpack.c.h.b16 %v3421
          %v3744 = vunpack.c.l.b16 %v3422
          %v3745 = vunpack.c.h.b16 %v3422
          %v3746 = vunpack.c.l.b16 %v3423
          %v3747 = vunpack.c.h.b16 %v3423
          %v3748 = vunpack.c.l.b16 %v3424
          %v3749 = vunpack.c.h.b16 %v3424
          %v3750 = vunpack.c.l.b16 %v3425
          %v3751 = vunpack.c.h.b16 %v3425
          %v3752 = vunpack.c.l.b16 %v3426
          %v3753 = vunpack.c.h.b16 %v3426
          %v3754 = vunpack.c.l.b16 %v3427
          %v3755 = vunpack.c.h.b16 %v3427
          %v3756 = vunpack.c.l.b16 %v3428
          %v3757 = vunpack.c.h.b16 %v3428
          %v3758 = vunpack.c.l.b16 %v3429
          %v3759 = vunpack.c.h.b16 %v3429
          %v3760 = vunpack.c.l.b16 %v3430
          %v3761 = vunpack.c.h.b16 %v3430
          %v3762 = vunpack.c.l.b16 %v3431
          %v3763 = vunpack.c.h.b16 %v3431
          %v3764 = vunpack.c.l.b16 %v3432
          %v3765 = vunpack.c.h.b16 %v3432
          %v3766 = vunpack.c.l.b16 %v3433
          %v3767 = vunpack.c.h.b16 %v3433
          %v3768 = vunpack.c.l.b16 %v3434
          %v3769 = vunpack.c.h.b16 %v3434
          %v3770 = vunpack.c.l.b16 %v3435
          %v3771 = vunpack.c.h.b16 %v3435
          %v3772 = vunpack.c.l.b16 %v3436
          %v3773 = vunpack.c.h.b16 %v3436
          %v3774 = vunpack.c.l.b16 %v3437
          %v3775 = vunpack.c.h.b16 %v3437
          %v3776 = vunpack.c.l.b16 %v3438
          %v3777 = vunpack.c.h.b16 %v3438
          %v3778 = vunpack.c.l.b16 %v3439
          %v3779 = vunpack.c.h.b16 %v3439
          %v3780 = vunpack.c.l.b16 %v3440
          %v3781 = vunpack.c.h.b16 %v3440
          %v3782 = vunpack.c.l.b16 %v3441
          %v3783 = vunpack.c.h.b16 %v3441
          %v3784 = vunpack.c.l.b16 %v3442
          %v3785 = vunpack.c.h.b16 %v3442
          %v3786 = vunpack.c.l.b16 %v3443
          %v3787 = vunpack.c.h.b16 %v3443
          %v3788 = vunpack.c.l.b16 %v3444
          %v3789 = vunpack.c.h.b16 %v3444
          %v3790 = vunpack.c.l.b16 %v3445
          %v3791 = vunpack.c.h.b16 %v3445
          %v3792 = vunpack.c.l.b16 %v3446
          %v3793 = vunpack.c.h.b16 %v3446
          %v3794 = vunpack.c.l.b16 %v3447
          %v3795 = vunpack.c.h.b16 %v3447
          %v3796 = vunpack.c.l.b16 %v3448
          %v3797 = vunpack.c.h.b16 %v3448
          %v3798 = vunpack.c.l.b16 %v3449
          %v3799 = vunpack.c.h.b16 %v3449
          %v3800 = vunpack.c.l.b16 %v3450
          %v3801 = vunpack.c.h.b16 %v3450
          %v3802 = vunpack.c.l.b16 %v3451
          %v3803 = vunpack.c.h.b16 %v3451
          %v3804 = vunpack.c.l.b16 %v3452
          %v3805 = vunpack.c.h.b16 %v3452
          %v3806 = vunpack.c.l.b16 %v3453
          %v3807 = vunpack.c.h.b16 %v3453
          %v3808 = vunpack.c.l.b16 %v3454
          %v3809 = vunpack.c.h.b16 %v3454
          %v3810 = vunpack.c.l.b16 %v3455
          %v3811 = vunpack.c.h.b16 %v3455
          %v3812 = vunpack.c.l.b16 %v3456
          %v3813 = vunpack.c.h.b16 %v3456
          %v3814 = vunpack.c.l.b16 %v3457
          %v3815 = vunpack.c.h.b16 %v3457
          %v3816 = vunpack.c.l.b16 %v3458
          %v3817 = vunpack.c.h.b16 %v3458
          %v3818 = vunpack.c.l.b16 %v3459
          %v3819 = vunpack.c.h.b16 %v3459
          %v3820 = vunpack.c.l.b16 %v3460
          %v3821 = vunpack.c.h.b16 %v3460
          %v3822 = vunpack.c.l.b16 %v3461
          %v3823 = vunpack.c.h.b16 %v3461
          %v3824 = vunpack.c.l.b16 %v3462
          %v3825 = vunpack.c.h.b16 %v3462
          %v3826 = vunpack.c.l.b16 %v3463
          %v3827 = vunpack.c.h.b16 %v3463
          %v3828 = vunpack.c.l.b16 %v3464
          %v3829 = vunpack.c.h.b16 %v3464
          %v3830 = vunpack.c.l.b16 %v3465
          %v3831 = vunpack.c.h.b16 %v3465
          %v3832 = vunpack.c.l.b16 %v3466
          %v3833 = vunpack.c.h.b16 %v3466
          %v3834 = vunpack.c.l.b16 %v3467
          %v3835 = vunpack.c.h.b16 %v3467
          %v3836 = vunpack.c.l.b16 %v3468
          %v3837 = vunpack.c.h.b16 %v3468
          %v3838 = vunpack.c.l.b16 %v3469
          %v3839 = vunpack.c.h.b16 %v3469
          %v3840 = vunpack.c.l.b16 %v3470
          %v3841 = vunpack.c.h.b16 %v3470
          %v3842 = vunpack.c.l.b16 %v3471
          %v3843 = vunpack.c.h.b16 %v3471
          %v3844 = vunpack.c.l.b16 %v3472
          %v3845 = vunpack.c.h.b16 %v3472
          %v3846 = vunpack.c.l.b16 %v3473
          %v3847 = vunpack.c.h.b16 %v3473
          %v3848 = vunpack.c.l.b16 %v3474
          %v3849 = vunpack.c.h.b16 %v3474
          %v3850 = vunpack.c.l.b16 %v3475
          %v3851 = vunpack.c.h.b16 %v3475
          %v3852 = vunpack.c.l.b16 %v3476
          %v3853 = vunpack.c.h.b16 %v3476
          %v3854 = vunpack.c.l.b16 %v3477
          %v3855 = vunpack.c.h.b16 %v3477
          %v3856 = vunpack.c.l.b16 %v3478
          %v3857 = vunpack.c.h.b16 %v3478
          %v3858 = vunpack.c.l.b16 %v3479
          %v3859 = vunpack.c.h.b16 %v3479
          %v3860 = vunpack.c.l.b16 %v3480
          %v3861 = vunpack.c.h.b16 %v3480
          %v3862 = vunpack.c.l.b16 %v3481
          %v3863 = vunpack.c.h.b16 %v3481
          %v3864 = vunpack.c.l.b16 %v3482
          %v3865 = vunpack.c.h.b16 %v3482
          %v3866 = vunpack.c.l.b16 %v3483
          %v3867 = vunpack.c.h.b16 %v3483
          %v3868 = vunpack.c.l.b16 %v3484
          %v3869 = vunpack.c.h.b16 %v3484
          %v3870 = vunpack.c.l.b16 %v3485
          %v3871 = vunpack.c.h.b16 %v3485
          %v3872 = vunpack.c.l.b16 %v3486
          %v3873 = vunpack.c.h.b16 %v3486
          %v3874 = vunpack.c.l.b16 %v3487
          %v3875 = vunpack.c.h.b16 %v3487
          %v3876 = vunpack.c.l.b16 %v3488
          %v3877 = vunpack.c.h.b16 %v3488
          %v3878 = vunpack.c.l.b16 %v3489
          %v3879 = vunpack.c.h.b16 %v3489
          %v3880 = vunpack.c.l.b16 %v3490
          %v3881 = vunpack.c.h.b16 %v3490
          %v3882 = vunpack.c.l.b16 %v3491
          %v3883 = vunpack.c.h.b16 %v3491
          %v3884 = vunpack.c.l.b16 %v3492
          %v3885 = vunpack.c.h.b16 %v3492
          %v3886 = vunpack.c.l.b16 %v3493
          %v3887 = vunpack.c.h.b16 %v3493
          %v3888 = vpack.c.b16 %v3636, %v3632
          %v3889 = vpack.c.b16 %v3637, %v3633
          %v3890 = vpack.c.b16 %v3638, %v3634
          %v3891 = vpack.c.b16 %v3639, %v3635
          %v3892 = vpack.c.b16 %v3644, %v3640
          %v3893 = vpack.c.b16 %v3645, %v3641
          %v3894 = vpack.c.b16 %v3646, %v3642
          %v3895 = vpack.c.b16 %v3647, %v3643
          %v3896 = vpack.c.b16 %v3652, %v3648
          %v3897 = vpack.c.b16 %v3653, %v3649
          %v3898 = vpack.c.b16 %v3654, %v3650
          %v3899 = vpack.c.b16 %v3655, %v3651
          %v3900 = vpack.c.b16 %v3660, %v3656
          %v3901 = vpack.c.b16 %v3661, %v3657
          %v3902 = vpack.c.b16 %v3662, %v3658
          %v3903 = vpack.c.b16 %v3663, %v3659
          %v3904 = vpack.c.b16 %v3668, %v3664
          %v3905 = vpack.c.b16 %v3669, %v3665
          %v3906 = vpack.c.b16 %v3670, %v3666
          %v3907 = vpack.c.b16 %v3671, %v3667
          %v3908 = vpack.c.b16 %v3676, %v3672
          %v3909 = vpack.c.b16 %v3677, %v3673
          %v3910 = vpack.c.b16 %v3678, %v3674
          %v3911 = vpack.c.b16 %v3679, %v3675
          %v3912 = vpack.c.b16 %v3684, %v3680
          %v3913 = vpack.c.b16 %v3685, %v3681
          %v3914 = vpack.c.b16 %v3686, %v3682
          %v3915 = vpack.c.b16 %v3687, %v3683
          %v3916 = vpack.c.b16 %v3692, %v3688
          %v3917 = vpack.c.b16 %v3693, %v3689
          %v3918 = vpack.c.b16 %v3694, %v3690
          %v3919 = vpack.c.b16 %v3695, %v3691
          %v3920 = vpack.c.b16 %v3700, %v3696
          %v3921 = vpack.c.b16 %v3701, %v3697
          %v3922 = vpack.c.b16 %v3702, %v3698
          %v3923 = vpack.c.b16 %v3703, %v3699
          %v3924 = vpack.c.b16 %v3708, %v3704
          %v3925 = vpack.c.b16 %v3709, %v3705
          %v3926 = vpack.c.b16 %v3710, %v3706
          %v3927 = vpack.c.b16 %v3711, %v3707
          %v3928 = vpack.c.b16 %v3716, %v3712
          %v3929 = vpack.c.b16 %v3717, %v3713
          %v3930 = vpack.c.b16 %v3718, %v3714
          %v3931 = vpack.c.b16 %v3719, %v3715
          %v3932 = vpack.c.b16 %v3724, %v3720
          %v3933 = vpack.c.b16 %v3725, %v3721
          %v3934 = vpack.c.b16 %v3726, %v3722
          %v3935 = vpack.c.b16 %v3727, %v3723
          %v3936 = vpack.c.b16 %v3732, %v3728
          %v3937 = vpack.c.b16 %v3733, %v3729
          %v3938 = vpack.c.b16 %v3734, %v3730
          %v3939 = vpack.c.b16 %v3735, %v3731
          %v3940 = vpack.c.b16 %v3740, %v3736
          %v3941 = vpack.c.b16 %v3741, %v3737
          %v3942 = vpack.c.b16 %v3742, %v3738
          %v3943 = vpack.c.b16 %v3743, %v3739
          %v3944 = vpack.c.b16 %v3748, %v3744
          %v3945 = vpack.c.b16 %v3749, %v3745
          %v3946 = vpack.c.b16 %v3750, %v3746
          %v3947 = vpack.c.b16 %v3751, %v3747
          %v3948 = vpack.c.b16 %v3756, %v3752
          %v3949 = vpack.c.b16 %v3757, %v3753
          %v3950 = vpack.c.b16 %v3758, %v3754
          %v3951 = vpack.c.b16 %v3759, %v3755
          %v3952 = vpack.c.b16 %v3764, %v3760
          %v3953 = vpack.c.b16 %v3765, %v3761
          %v3954 = vpack.c.b16 %v3766, %v3762
          %v3955 = vpack.c.b16 %v3767, %v3763
          %v3956 = vpack.c.b16 %v3772, %v3768
          %v3957 = vpack.c.b16 %v3773, %v3769
          %v3958 = vpack.c.b16 %v3774, %v3770
          %v3959 = vpack.c.b16 %v3775, %v3771
          %v3960 = vpack.c.b16 %v3780, %v3776
          %v3961 = vpack.c.b16 %v3781, %v3777
          %v3962 = vpack.c.b16 %v3782, %v3778
          %v3963 = vpack.c.b16 %v3783, %v3779
          %v3964 = vpack.c.b16 %v3788, %v3784
          %v3965 = vpack.c.b16 %v3789, %v3785
          %v3966 = vpack.c.b16 %v3790, %v3786
          %v3967 = vpack.c.b16 %v3791, %v3787
          %v3968 = vpack.c.b16 %v3796, %v3792
          %v3969 = vpack.c.b16 %v3797, %v3793
          %v3970 = vpack.c.b16 %v3798, %v3794
          %v3971 = vpack.c.b16 %v3799, %v3795
          %v3972 = vpack.c.b16 %v3804, %v3800
          %v3973 = vpack.c.b16 %v3805, %v3801
          %v3974 = vpack.c.b16 %v3806, %v3802
          %v3975 = vpack.c.b16 %v3807, %v3803
          %v3976 = vpack.c.b16 %v3812, %v3808
          %v3977 = vpack.c.b16 %v3813, %v3809
          %v3978 = vpack.c.b16 %v3814, %v3810
          %v3979 = vpack.c.b16 %v3815, %v3811
          %v3980 = vpack.c.b16 %v3820, %v3816
          %v3981 = vpack.c.b16 %v3821, %v3817
          %v3982 = vpack.c.b16 %v3822, %v3818
          %v3983 = vpack.c.b16 %v3823, %v3819
          %v3984 = vpack.c.b16 %v3828, %v3824
          %v3985 = vpack.c.b16 %v3829, %v3825
          %v3986 = vpack.c.b16 %v3830, %v3826
          %v3987 = vpack.c.b16 %v3831, %v3827
          %v3988 = vpack.c.b16 %v3836, %v3832
          %v3989 = vpack.c.b16 %v3837, %v3833
          %v3990 = vpack.c.b16 %v3838, %v3834
          %v3991 = vpack.c.b16 %v3839, %v3835
          %v3992 = vpack.c.b16 %v3844, %v3840
          %v3993 = vpack.c.b16 %v3845, %v3841
          %v3994 = vpack.c.b16 %v3846, %v3842
          %v3995 = vpack.c.b16 %v3847, %v3843
          %v3996 = vpack.c.b16 %v3852, %v3848
          %v3997 = vpack.c.b16 %v3853, %v3849
          %v3998 = vpack.c.b16 %v3854, %v3850
          %v3999 = vpack.c.b16 %v3855, %v3851
          %v4000 = vpack.c.b16 %v3860, %v3856
          %v4001 = vpack.c.b16 %v3861, %v3857
          %v4002 = vpack.c.b16 %v3862, %v3858
          %v4003 = vpack.c.b16 %v3863, %v3859
          %v4004 = vpack.c.b16 %v3868, %v3864
          %v4005 = vpack.c.b16 %v3869, %v3865
          %v4006 = vpack.c.b16 %v3870, %v3866
          %v4007 = vpack.c.b16 %v3871, %v3867
          %v4008 = vpack.c.b16 %v3876, %v3872
          %v4009 = vpack.c.b16 %v3877, %v3873
          %v4010 = vpack.c.b16 %v3878, %v3874
          %v4011 = vpack.c.b16 %v3879, %v3875
          %v4012 = vpack.c.b16 %v3884, %v3880
          %v4013 = vpack.c.b16 %v3885, %v3881
          %v4014 = vpack.c.b16 %v3886, %v3882
          %v4015 = vpack.c.b16 %v3887, %v3883
          %4144 = vmatpush.bf16.msra.mxu0 %v3916
          %4145 = vmatpush.bf16.msra.mxu0 %v3912
          %4146 = vmatpush.bf16.msra.mxu0 %v3908
          %4147 = vmatpush.bf16.msra.mxu0 %v3904
          %4148 = vmatpush.bf16.msra.mxu0 %v3900
          %4149 = vmatpush.bf16.msra.mxu0 %v3896
          %4150 = vmatpush.bf16.msra.mxu0 %v3892
          %4151 = vmatpush.bf16.msra.mxu0 %v3888
          %4152 = vmatmul.bf16.gmra.mxu0 %v3362
          %v4153 = vpop.f32.mrf.mxu0
          %v4154 = vadd.f32 %v3496, %v4153
          %v4155 = vpop.f32.mrf.mxu0
          %4156 = vdwg.mxu0
          %4157 = vmatpush.bf16.msra.mxu0 %v3948
          %4158 = vmatpush.bf16.msra.mxu0 %v3944
          %4159 = vmatpush.bf16.msra.mxu0 %v3940
          %4160 = vmatpush.bf16.msra.mxu0 %v3936
          %4161 = vmatpush.bf16.msra.mxu0 %v3932
          %4162 = vmatpush.bf16.msra.mxu0 %v3928
          %4163 = vmatpush.bf16.msra.mxu0 %v3924
          %4164 = vmatpush.bf16.msra.mxu0 %v3920
          %4165 = vmatmul.bf16.gmra.mxu0 %v3363
          %v4166 = vpop.f32.mrf.mxu0
          %v4167 = vadd.f32 %v4154, %v4166
          %v4168 = vpop.f32.mrf.mxu0
          %4169 = vdwg.mxu0
          %4170 = vmatpush.bf16.msra.mxu0 %v3980
          %4171 = vmatpush.bf16.msra.mxu0 %v3976
          %4172 = vmatpush.bf16.msra.mxu0 %v3972
          %4173 = vmatpush.bf16.msra.mxu0 %v3968
          %4174 = vmatpush.bf16.msra.mxu0 %v3964
          %4175 = vmatpush.bf16.msra.mxu0 %v3960
          %4176 = vmatpush.bf16.msra.mxu0 %v3956
          %4177 = vmatpush.bf16.msra.mxu0 %v3952
          %4178 = vmatmul.bf16.gmra.mxu0 %v3364
          %v4179 = vpop.f32.mrf.mxu0
          %v4180 = vadd.f32 %v4167, %v4179
          %v4181 = vpop.f32.mrf.mxu0
          %4182 = vdwg.mxu0
          %4183 = vmatpush.bf16.msra.mxu0 %v4012
          %4184 = vmatpush.bf16.msra.mxu0 %v4008
          %4185 = vmatpush.bf16.msra.mxu0 %v4004
          %4186 = vmatpush.bf16.msra.mxu0 %v4000
          %4187 = vmatpush.bf16.msra.mxu0 %v3996
          %4188 = vmatpush.bf16.msra.mxu0 %v3992
          %4189 = vmatpush.bf16.msra.mxu0 %v3988
          %4190 = vmatpush.bf16.msra.mxu0 %v3984
          %4191 = vmatmul.bf16.gmra.mxu0 %v3365
          %v4192 = vpop.f32.mrf.mxu0
          %v4193 = vadd.f32 %v4180, %v4192
          %v4194 = vpop.f32.mrf.mxu0
          %4195 = vdwg.mxu0
          %4196 = vmatpush.bf16.msra.mxu0 %v3917
          %4197 = vmatpush.bf16.msra.mxu0 %v3913
          %4198 = vmatpush.bf16.msra.mxu0 %v3909
          %4199 = vmatpush.bf16.msra.mxu0 %v3905
          %4200 = vmatpush.bf16.msra.mxu0 %v3901
          %4201 = vmatpush.bf16.msra.mxu0 %v3897
          %4202 = vmatpush.bf16.msra.mxu0 %v3893
          %4203 = vmatpush.bf16.msra.mxu0 %v3889
          %4204 = vmatmul.bf16.gmra.mxu0 %v3362
          %v4205 = vpop.f32.mrf.mxu0
          %v4206 = vadd.f32 %v3497, %v4205
          %v4207 = vpop.f32.mrf.mxu0
          %4208 = vdwg.mxu0
          %4209 = vmatpush.bf16.msra.mxu0 %v3949
          %4210 = vmatpush.bf16.msra.mxu0 %v3945
          %4211 = vmatpush.bf16.msra.mxu0 %v3941
          %4212 = vmatpush.bf16.msra.mxu0 %v3937
          %4213 = vmatpush.bf16.msra.mxu0 %v3933
          %4214 = vmatpush.bf16.msra.mxu0 %v3929
          %4215 = vmatpush.bf16.msra.mxu0 %v3925
          %4216 = vmatpush.bf16.msra.mxu0 %v3921
          %4217 = vmatmul.bf16.gmra.mxu0 %v3363
          %v4218 = vpop.f32.mrf.mxu0
          %v4219 = vadd.f32 %v4206, %v4218
          %v4220 = vpop.f32.mrf.mxu0
          %4221 = vdwg.mxu0
          %4222 = vmatpush.bf16.msra.mxu0 %v3981
          %4223 = vmatpush.bf16.msra.mxu0 %v3977
          %4224 = vmatpush.bf16.msra.mxu0 %v3973
          %4225 = vmatpush.bf16.msra.mxu0 %v3969
          %4226 = vmatpush.bf16.msra.mxu0 %v3965
          %4227 = vmatpush.bf16.msra.mxu0 %v3961
          %4228 = vmatpush.bf16.msra.mxu0 %v3957
          %4229 = vmatpush.bf16.msra.mxu0 %v3953
          %4230 = vmatmul.bf16.gmra.mxu0 %v3364
          %v4231 = vpop.f32.mrf.mxu0
          %v4232 = vadd.f32 %v4219, %v4231
          %v4233 = vpop.f32.mrf.mxu0
          %4234 = vdwg.mxu0
          %4235 = vmatpush.bf16.msra.mxu0 %v4013
          %4236 = vmatpush.bf16.msra.mxu0 %v4009
          %4237 = vmatpush.bf16.msra.mxu0 %v4005
          %4238 = vmatpush.bf16.msra.mxu0 %v4001
          %4239 = vmatpush.bf16.msra.mxu0 %v3997
          %4240 = vmatpush.bf16.msra.mxu0 %v3993
          %4241 = vmatpush.bf16.msra.mxu0 %v3989
          %4242 = vmatpush.bf16.msra.mxu0 %v3985
          %4243 = vmatmul.bf16.gmra.mxu0 %v3365
          %v4244 = vpop.f32.mrf.mxu0
          %v4245 = vadd.f32 %v4232, %v4244
          %v4246 = vpop.f32.mrf.mxu0
          %4247 = vdwg.mxu0
          %4248 = vmatpush.bf16.msra.mxu0 %v3918
          %4249 = vmatpush.bf16.msra.mxu0 %v3914
          %4250 = vmatpush.bf16.msra.mxu0 %v3910
          %4251 = vmatpush.bf16.msra.mxu0 %v3906
          %4252 = vmatpush.bf16.msra.mxu0 %v3902
          %4253 = vmatpush.bf16.msra.mxu0 %v3898
          %4254 = vmatpush.bf16.msra.mxu0 %v3894
          %4255 = vmatpush.bf16.msra.mxu0 %v3890
          %4256 = vmatmul.bf16.gmra.mxu0 %v3362
          %v4257 = vpop.f32.mrf.mxu0
          %v4258 = vadd.f32 %v3498, %v4257
          %v4259 = vpop.f32.mrf.mxu0
          %4260 = vdwg.mxu0
          %4261 = vmatpush.bf16.msra.mxu0 %v3950
          %4262 = vmatpush.bf16.msra.mxu0 %v3946
          %4263 = vmatpush.bf16.msra.mxu0 %v3942
          %4264 = vmatpush.bf16.msra.mxu0 %v3938
          %4265 = vmatpush.bf16.msra.mxu0 %v3934
          %4266 = vmatpush.bf16.msra.mxu0 %v3930
          %4267 = vmatpush.bf16.msra.mxu0 %v3926
          %4268 = vmatpush.bf16.msra.mxu0 %v3922
          %4269 = vmatmul.bf16.gmra.mxu0 %v3363
          %v4270 = vpop.f32.mrf.mxu0
          %v4271 = vadd.f32 %v4258, %v4270
          %v4272 = vpop.f32.mrf.mxu0
          %4273 = vdwg.mxu0
          %4274 = vmatpush.bf16.msra.mxu0 %v3982
          %4275 = vmatpush.bf16.msra.mxu0 %v3978
          %4276 = vmatpush.bf16.msra.mxu0 %v3974
          %4277 = vmatpush.bf16.msra.mxu0 %v3970
          %4278 = vmatpush.bf16.msra.mxu0 %v3966
          %4279 = vmatpush.bf16.msra.mxu0 %v3962
          %4280 = vmatpush.bf16.msra.mxu0 %v3958
          %4281 = vmatpush.bf16.msra.mxu0 %v3954
          %4282 = vmatmul.bf16.gmra.mxu0 %v3364
          %v4283 = vpop.f32.mrf.mxu0
          %v4284 = vadd.f32 %v4271, %v4283
          %v4285 = vpop.f32.mrf.mxu0
          %4286 = vdwg.mxu0
          %4287 = vmatpush.bf16.msra.mxu0 %v4014
          %4288 = vmatpush.bf16.msra.mxu0 %v4010
          %4289 = vmatpush.bf16.msra.mxu0 %v4006
          %4290 = vmatpush.bf16.msra.mxu0 %v4002
          %4291 = vmatpush.bf16.msra.mxu0 %v3998
          %4292 = vmatpush.bf16.msra.mxu0 %v3994
          %4293 = vmatpush.bf16.msra.mxu0 %v3990
          %4294 = vmatpush.bf16.msra.mxu0 %v3986
          %4295 = vmatmul.bf16.gmra.mxu0 %v3365
          %v4296 = vpop.f32.mrf.mxu0
          %v4297 = vadd.f32 %v4284, %v4296
          %v4298 = vpop.f32.mrf.mxu0
          %4299 = vdwg.mxu0
          %4300 = vmatpush.bf16.msra.mxu0 %v3919
          %4301 = vmatpush.bf16.msra.mxu0 %v3915
          %4302 = vmatpush.bf16.msra.mxu0 %v3911
          %4303 = vmatpush.bf16.msra.mxu0 %v3907
          %4304 = vmatpush.bf16.msra.mxu0 %v3903
          %4305 = vmatpush.bf16.msra.mxu0 %v3899
          %4306 = vmatpush.bf16.msra.mxu0 %v3895
          %4307 = vmatpush.bf16.msra.mxu0 %v3891
          %4308 = vmatmul.bf16.gmra.mxu0 %v3362
          %v4309 = vpop.f32.mrf.mxu0
          %v4310 = vadd.f32 %v3499, %v4309
          %v4311 = vpop.f32.mrf.mxu0
          %4312 = vdwg.mxu0
          %4313 = vmatpush.bf16.msra.mxu0 %v3951
          %4314 = vmatpush.bf16.msra.mxu0 %v3947
          %4315 = vmatpush.bf16.msra.mxu0 %v3943
          %4316 = vmatpush.bf16.msra.mxu0 %v3939
          %4317 = vmatpush.bf16.msra.mxu0 %v3935
          %4318 = vmatpush.bf16.msra.mxu0 %v3931
          %4319 = vmatpush.bf16.msra.mxu0 %v3927
          %4320 = vmatpush.bf16.msra.mxu0 %v3923
          %4321 = vmatmul.bf16.gmra.mxu0 %v3363
          %v4322 = vpop.f32.mrf.mxu0
          %v4323 = vadd.f32 %v4310, %v4322
          %v4324 = vpop.f32.mrf.mxu0
          %4325 = vdwg.mxu0
          %4326 = vmatpush.bf16.msra.mxu0 %v3983
          %4327 = vmatpush.bf16.msra.mxu0 %v3979
          %4328 = vmatpush.bf16.msra.mxu0 %v3975
          %4329 = vmatpush.bf16.msra.mxu0 %v3971
          %4330 = vmatpush.bf16.msra.mxu0 %v3967
          %4331 = vmatpush.bf16.msra.mxu0 %v3963
          %4332 = vmatpush.bf16.msra.mxu0 %v3959
          %4333 = vmatpush.bf16.msra.mxu0 %v3955
          %4334 = vmatmul.bf16.gmra.mxu0 %v3364
          %v4335 = vpop.f32.mrf.mxu0
          %v4336 = vadd.f32 %v4323, %v4335
          %v4337 = vpop.f32.mrf.mxu0
          %4338 = vdwg.mxu0
          %4339 = vmatpush.bf16.msra.mxu0 %v4015
          %4340 = vmatpush.bf16.msra.mxu0 %v4011
          %4341 = vmatpush.bf16.msra.mxu0 %v4007
          %4342 = vmatpush.bf16.msra.mxu0 %v4003
          %4343 = vmatpush.bf16.msra.mxu0 %v3999
          %4344 = vmatpush.bf16.msra.mxu0 %v3995
          %4345 = vmatpush.bf16.msra.mxu0 %v3991
          %4346 = vmatpush.bf16.msra.mxu0 %v3987
          %4347 = vmatmul.bf16.gmra.mxu0 %v3365
          %v4348 = vpop.f32.mrf.mxu0
          %v4349 = vadd.f32 %v4336, %v4348
          %v4350 = vpop.f32.mrf.mxu0
          %4351 = vdwg.mxu0
          %v4352 = vmax.f32 %v4193, 0.0
          %v4353 = vmax.f32 %v4245, 0.0
          %v4354 = vmax.f32 %v4297, 0.0
          %v4355 = vmax.f32 %v4349, 0.0
          %v4356 = vpack.c.bf16 %v4352, %v4352
          %v4357 = vpack.c.bf16 %v4353, %v4353
          %v4358 = vpack.c.bf16 %v4354, %v4354
          %v4359 = vpack.c.bf16 %v4355, %v4355
          %v4360 = vld [vmem:[%s9] sm:$0xf]
          %v4361 = vld [vmem:[%s9 + $0x4] sm:$0xf]
          %v4362 = vld [vmem:[%s9 + $0x8] sm:$0xf]
          %v4363 = vld [vmem:[%s9 + $0xc] sm:$0xf]
          %v4364 = vld [vmem:[%s9 + $0x10] sm:$0xf]
          %v4365 = vld [vmem:[%s9 + $0x14] sm:$0xf]
          %v4366 = vld [vmem:[%s9 + $0x18] sm:$0xf]
          %v4367 = vld [vmem:[%s9 + $0x1c] sm:$0xf]
          %v4368 = vld [vmem:[%s9 + $0x20] sm:$0xf]
          %v4369 = vld [vmem:[%s9 + $0x24] sm:$0xf]
          %v4370 = vld [vmem:[%s9 + $0x28] sm:$0xf]
          %v4371 = vld [vmem:[%s9 + $0x2c] sm:$0xf]
          %v4372 = vld [vmem:[%s9 + $0x30] sm:$0xf]
          %v4373 = vld [vmem:[%s9 + $0x34] sm:$0xf]
          %v4374 = vld [vmem:[%s9 + $0x38] sm:$0xf]
          %v4375 = vld [vmem:[%s9 + $0x3c] sm:$0xf]
          %v4376 = vld [vmem:[%s9 + $0x40] sm:$0xf]
          %v4377 = vld [vmem:[%s9 + $0x44] sm:$0xf]
          %v4378 = vld [vmem:[%s9 + $0x48] sm:$0xf]
          %v4379 = vld [vmem:[%s9 + $0x4c] sm:$0xf]
          %v4380 = vld [vmem:[%s9 + $0x50] sm:$0xf]
          %v4381 = vld [vmem:[%s9 + $0x54] sm:$0xf]
          %v4382 = vld [vmem:[%s9 + $0x58] sm:$0xf]
          %v4383 = vld [vmem:[%s9 + $0x5c] sm:$0xf]
          %v4384 = vld [vmem:[%s9 + $0x60] sm:$0xf]
          %v4385 = vld [vmem:[%s9 + $0x64] sm:$0xf]
          %v4386 = vld [vmem:[%s9 + $0x68] sm:$0xf]
          %v4387 = vld [vmem:[%s9 + $0x6c] sm:$0xf]
          %v4388 = vld [vmem:[%s9 + $0x70] sm:$0xf]
          %v4389 = vld [vmem:[%s9 + $0x74] sm:$0xf]
          %v4390 = vld [vmem:[%s9 + $0x78] sm:$0xf]
          %v4391 = vld [vmem:[%s9 + $0x7c] sm:$0xf]
          %v4392 = vld [vmem:[%s9 + $0x80] sm:$0xf]
          %v4393 = vld [vmem:[%s9 + $0x84] sm:$0xf]
          %v4394 = vld [vmem:[%s9 + $0x88] sm:$0xf]
          %v4395 = vld [vmem:[%s9 + $0x8c] sm:$0xf]
          %v4396 = vld [vmem:[%s9 + $0x90] sm:$0xf]
          %v4397 = vld [vmem:[%s9 + $0x94] sm:$0xf]
          %v4398 = vld [vmem:[%s9 + $0x98] sm:$0xf]
          %v4399 = vld [vmem:[%s9 + $0x9c] sm:$0xf]
          %v4400 = vld [vmem:[%s9 + $0xa0] sm:$0xf]
          %v4401 = vld [vmem:[%s9 + $0xa4] sm:$0xf]
          %v4402 = vld [vmem:[%s9 + $0xa8] sm:$0xf]
          %v4403 = vld [vmem:[%s9 + $0xac] sm:$0xf]
          %v4404 = vld [vmem:[%s9 + $0xb0] sm:$0xf]
          %v4405 = vld [vmem:[%s9 + $0xb4] sm:$0xf]
          %v4406 = vld [vmem:[%s9 + $0xb8] sm:$0xf]
          %v4407 = vld [vmem:[%s9 + $0xbc] sm:$0xf]
          %v4408 = vld [vmem:[%s9 + $0xc0] sm:$0xf]
          %v4409 = vld [vmem:[%s9 + $0xc4] sm:$0xf]
          %v4410 = vld [vmem:[%s9 + $0xc8] sm:$0xf]
          %v4411 = vld [vmem:[%s9 + $0xcc] sm:$0xf]
          %v4412 = vld [vmem:[%s9 + $0xd0] sm:$0xf]
          %v4413 = vld [vmem:[%s9 + $0xd4] sm:$0xf]
          %v4414 = vld [vmem:[%s9 + $0xd8] sm:$0xf]
          %v4415 = vld [vmem:[%s9 + $0xdc] sm:$0xf]
          %v4416 = vld [vmem:[%s9 + $0xe0] sm:$0xf]
          %v4417 = vld [vmem:[%s9 + $0xe4] sm:$0xf]
          %v4418 = vld [vmem:[%s9 + $0xe8] sm:$0xf]
          %v4419 = vld [vmem:[%s9 + $0xec] sm:$0xf]
          %v4420 = vld [vmem:[%s9 + $0xf0] sm:$0xf]
          %v4421 = vld [vmem:[%s9 + $0xf4] sm:$0xf]
          %v4422 = vld [vmem:[%s9 + $0xf8] sm:$0xf]
          %v4423 = vld [vmem:[%s9 + $0xfc] sm:$0xf]
          %v4424 = vld [vmem:[%s10] sm:$0x1]
          %v4426 = vperm.slane %v4424, 0
          %v4492 = vunpack.c.l.b16 %v4360
          %v4493 = vunpack.c.l.b16 %v4361
          %v4494 = vunpack.c.l.b16 %v4362
          %v4495 = vunpack.c.l.b16 %v4363
          %v4496 = vunpack.c.l.b16 %v4364
          %v4497 = vunpack.c.l.b16 %v4365
          %v4498 = vunpack.c.l.b16 %v4366
          %v4499 = vunpack.c.l.b16 %v4367
          %v4500 = vunpack.c.l.b16 %v4368
          %v4501 = vunpack.c.l.b16 %v4369
          %v4502 = vunpack.c.l.b16 %v4370
          %v4503 = vunpack.c.l.b16 %v4371
          %v4504 = vunpack.c.l.b16 %v4372
          %v4505 = vunpack.c.l.b16 %v4373
          %v4506 = vunpack.c.l.b16 %v4374
          %v4507 = vunpack.c.l.b16 %v4375
          %v4508 = vunpack.c.l.b16 %v4376
          %v4509 = vunpack.c.l.b16 %v4377
          %v4510 = vunpack.c.l.b16 %v4378
          %v4511 = vunpack.c.l.b16 %v4379
          %v4512 = vunpack.c.l.b16 %v4380
          %v4513 = vunpack.c.l.b16 %v4381
          %v4514 = vunpack.c.l.b16 %v4382
          %v4515 = vunpack.c.l.b16 %v4383
          %v4516 = vunpack.c.l.b16 %v4384
          %v4517 = vunpack.c.l.b16 %v4385
          %v4518 = vunpack.c.l.b16 %v4386
          %v4519 = vunpack.c.l.b16 %v4387
          %v4520 = vunpack.c.l.b16 %v4388
          %v4521 = vunpack.c.l.b16 %v4389
          %v4522 = vunpack.c.l.b16 %v4390
          %v4523 = vunpack.c.l.b16 %v4391
          %v4524 = vunpack.c.l.b16 %v4392
          %v4525 = vunpack.c.l.b16 %v4393
          %v4526 = vunpack.c.l.b16 %v4394
          %v4527 = vunpack.c.l.b16 %v4395
          %v4528 = vunpack.c.l.b16 %v4396
          %v4529 = vunpack.c.l.b16 %v4397
          %v4530 = vunpack.c.l.b16 %v4398
          %v4531 = vunpack.c.l.b16 %v4399
          %v4532 = vunpack.c.l.b16 %v4400
          %v4533 = vunpack.c.l.b16 %v4401
          %v4534 = vunpack.c.l.b16 %v4402
          %v4535 = vunpack.c.l.b16 %v4403
          %v4536 = vunpack.c.l.b16 %v4404
          %v4537 = vunpack.c.l.b16 %v4405
          %v4538 = vunpack.c.l.b16 %v4406
          %v4539 = vunpack.c.l.b16 %v4407
          %v4540 = vunpack.c.l.b16 %v4408
          %v4541 = vunpack.c.l.b16 %v4409
          %v4542 = vunpack.c.l.b16 %v4410
          %v4543 = vunpack.c.l.b16 %v4411
          %v4544 = vunpack.c.l.b16 %v4412
          %v4545 = vunpack.c.l.b16 %v4413
          %v4546 = vunpack.c.l.b16 %v4414
          %v4547 = vunpack.c.l.b16 %v4415
          %v4548 = vunpack.c.l.b16 %v4416
          %v4549 = vunpack.c.l.b16 %v4417
          %v4550 = vunpack.c.l.b16 %v4418
          %v4551 = vunpack.c.l.b16 %v4419
          %v4552 = vunpack.c.l.b16 %v4420
          %v4553 = vunpack.c.l.b16 %v4421
          %v4554 = vunpack.c.l.b16 %v4422
          %v4555 = vunpack.c.l.b16 %v4423
          %v4556 = vpack.c.b16 %v4493, %v4492
          %v4557 = vpack.c.b16 %v4495, %v4494
          %v4558 = vpack.c.b16 %v4497, %v4496
          %v4559 = vpack.c.b16 %v4499, %v4498
          %v4560 = vpack.c.b16 %v4501, %v4500
          %v4561 = vpack.c.b16 %v4503, %v4502
          %v4562 = vpack.c.b16 %v4505, %v4504
          %v4563 = vpack.c.b16 %v4507, %v4506
          %v4564 = vpack.c.b16 %v4509, %v4508
          %v4565 = vpack.c.b16 %v4511, %v4510
          %v4566 = vpack.c.b16 %v4513, %v4512
          %v4567 = vpack.c.b16 %v4515, %v4514
          %v4568 = vpack.c.b16 %v4517, %v4516
          %v4569 = vpack.c.b16 %v4519, %v4518
          %v4570 = vpack.c.b16 %v4521, %v4520
          %v4571 = vpack.c.b16 %v4523, %v4522
          %v4572 = vpack.c.b16 %v4525, %v4524
          %v4573 = vpack.c.b16 %v4527, %v4526
          %v4574 = vpack.c.b16 %v4529, %v4528
          %v4575 = vpack.c.b16 %v4531, %v4530
          %v4576 = vpack.c.b16 %v4533, %v4532
          %v4577 = vpack.c.b16 %v4535, %v4534
          %v4578 = vpack.c.b16 %v4537, %v4536
          %v4579 = vpack.c.b16 %v4539, %v4538
          %v4580 = vpack.c.b16 %v4541, %v4540
          %v4581 = vpack.c.b16 %v4543, %v4542
          %v4582 = vpack.c.b16 %v4545, %v4544
          %v4583 = vpack.c.b16 %v4547, %v4546
          %v4584 = vpack.c.b16 %v4549, %v4548
          %v4585 = vpack.c.b16 %v4551, %v4550
          %v4586 = vpack.c.b16 %v4553, %v4552
          %v4587 = vpack.c.b16 %v4555, %v4554
          %4620 = vmatpush.bf16.msra.mxu0 %v4563
          %4621 = vmatpush.bf16.msra.mxu0 %v4562
          %4622 = vmatpush.bf16.msra.mxu0 %v4561
          %4623 = vmatpush.bf16.msra.mxu0 %v4560
          %4624 = vmatpush.bf16.msra.mxu0 %v4559
          %4625 = vmatpush.bf16.msra.mxu0 %v4558
          %4626 = vmatpush.bf16.msra.mxu0 %v4557
          %4627 = vmatpush.bf16.msra.mxu0 %v4556
          %4628 = vmatmul.bf16.gmra.mxu0 %v4356
          %v4629 = vpop.f32.mrf.mxu0
          %v4630 = vadd.f32 %v4426, %v4629
          %v4631 = vpop.f32.mrf.mxu0
          %4632 = vdwg.mxu0
          %4633 = vmatpush.bf16.msra.mxu0 %v4571
          %4634 = vmatpush.bf16.msra.mxu0 %v4570
          %4635 = vmatpush.bf16.msra.mxu0 %v4569
          %4636 = vmatpush.bf16.msra.mxu0 %v4568
          %4637 = vmatpush.bf16.msra.mxu0 %v4567
          %4638 = vmatpush.bf16.msra.mxu0 %v4566
          %4639 = vmatpush.bf16.msra.mxu0 %v4565
          %4640 = vmatpush.bf16.msra.mxu0 %v4564
          %4641 = vmatmul.bf16.gmra.mxu0 %v4357
          %v4642 = vpop.f32.mrf.mxu0
          %v4643 = vadd.f32 %v4630, %v4642
          %v4644 = vpop.f32.mrf.mxu0
          %4645 = vdwg.mxu0
          %4646 = vmatpush.bf16.msra.mxu0 %v4579
          %4647 = vmatpush.bf16.msra.mxu0 %v4578
          %4648 = vmatpush.bf16.msra.mxu0 %v4577
          %4649 = vmatpush.bf16.msra.mxu0 %v4576
          %4650 = vmatpush.bf16.msra.mxu0 %v4575
          %4651 = vmatpush.bf16.msra.mxu0 %v4574
          %4652 = vmatpush.bf16.msra.mxu0 %v4573
          %4653 = vmatpush.bf16.msra.mxu0 %v4572
          %4654 = vmatmul.bf16.gmra.mxu0 %v4358
          %v4655 = vpop.f32.mrf.mxu0
          %v4656 = vadd.f32 %v4643, %v4655
          %v4657 = vpop.f32.mrf.mxu0
          %4658 = vdwg.mxu0
          %4659 = vmatpush.bf16.msra.mxu0 %v4587
          %4660 = vmatpush.bf16.msra.mxu0 %v4586
          %4661 = vmatpush.bf16.msra.mxu0 %v4585
          %4662 = vmatpush.bf16.msra.mxu0 %v4584
          %4663 = vmatpush.bf16.msra.mxu0 %v4583
          %4664 = vmatpush.bf16.msra.mxu0 %v4582
          %4665 = vmatpush.bf16.msra.mxu0 %v4581
          %4666 = vmatpush.bf16.msra.mxu0 %v4580
          %4667 = vmatmul.bf16.gmra.mxu0 %v4359
          %v4668 = vpop.f32.mrf.mxu0
          %v4669 = vadd.f32 %v4656, %v4668
          %v4670 = vpop.f32.mrf.mxu0
          %4671 = vdwg.mxu0
          %4672 = vst [vmem:[#allocation4] sm:$0x3] %v4669
        $region72: #{net_forward.1} parent=63 // pred_fallthru
          _
        // Predicated region
        $region73: #{net_forward.1} parent=63 // pred_check
          %p4673 = pneg %p272
        $region74: #{net_forward.1} parent=63 // pred_check_branch
          %4675 = sbr.rel (%p4673) target = $region76
        $region75: #{net_forward.1} parent=63 // pred_region
          %4677 = vsyncadd [#allocation5], 0
          %s4679 = sshll.u32 [#allocation4], 4
          %s4680 = int_to_ptr.vmem [resolvable:$true] %s4679
          %s4681 = sshll.u32 %s11, 4
          %s4682 = int_to_ptr.hbm [resolvable:$true] %s4681
          %4684 = dma.vmem_to_hbm [thread:$0]  %s4680, 32, %s4682, [#allocation5]
        $region76: #{net_forward.1} parent=63 // pred_fallthru
          _
        // Predicated region
        $region77: #{net_forward.1} parent=63 // pred_check
          %p4685 = pneg %p272
        $region78: #{net_forward.1} parent=63 // pred_check_branch
          %4687 = sbr.rel (%p4685) target = $region80
        $region79: #{net_forward.1} parent=63 // pred_region
          %4689 = dma.done [#allocation5], 32
        $region80: #{net_forward.1} parent=63 // pred_fallthru
          _
      $region64: #{net_forward.1} parent=5 // pred_fallthru
        _
      %p4690 = scmp.le.s32.totalorder 2, %s18
      // Predicated region
      $region81: #{net_forward.1} parent=5 // pred_check
        %p4691 = pneg %p4690
      $region82: #{net_forward.1} parent=5 // pred_check_branch
        %4693 = sbr.rel (%p4691) target = $region84
      $region83: #{net_forward.1} parent=5 // pred_region
        %s4694 = ssub.s32 %s18, 2
      $region84: #{net_forward.1} parent=5 // pred_fallthru
        _
    $region6: #{net_forward.1} parent=1 // loop_footer
      %s22 = sadd.s32 1, %s18
    $region7: #{net_forward.1} parent=1 // loop_footer_branch
      %17 = sbr.rel target = $region3
    $region8: #{net_forward.1} parent=1 // loop_exit
      _
    %4695 = vsyncpa [#allocation5], 1
    %s4696 = scalar_lea.sflag [#allocation5], 1
    %4697 = vsyncpa %s4696, 1

</llo_original>
